<compile_context>
chip_gen: v5e
topology: v5e:2x2
jax: 0.10.0
libtpu: 0.0.40
codegen_flags: <defaults>
</compile_context>

<pallas_src>
import jax
import jax.numpy as jnp
from jax import lax
from jax.experimental import pallas as pl
from jax.experimental.pallas import tpu as pltpu

LEAKY_SLOPE = 0.01            # nn.LeakyReLU default
BN_EPS = 1e-5                 # nn.BatchNorm2d default
LANE = 128


# ----------------------------------------------------------------------------
# Small helpers.
# ----------------------------------------------------------------------------
def _round_up(x, m):
    return (x + m - 1) // m * m


def _vmem_limit_bytes():
    """Generation-aware scoped-VMEM limit (128 MiB parts -> ~112 MiB,
    64 MiB v7x -> 48 MiB)."""
    cap = 64 * 1024 * 1024                      # assume smallest generation
    try:
        cap = int(pltpu.get_tpu_info().vmem_capacity_bytes)
    except Exception:
        pass
    return int(min(cap - 16 * 1024 * 1024, 112 * 1024 * 1024))


def _compiler_params():
    return pltpu.CompilerParams(
        dimension_semantics=("parallel",),      # grid over N: both v7x TCs
        vmem_limit_bytes=_vmem_limit_bytes())


def _conv_w_to_taps(w_oihw, cin_p, cout_p):
    """(Cout, Cin, kh, kw) -> (kh*kw, Cin_p, Cout_p) bf16, tap index kh*kw_w+kw."""
    cout, cin, kh, kw = w_oihw.shape
    w = jnp.transpose(w_oihw, (2, 3, 1, 0)).reshape(kh * kw, cin, cout)
    w = jnp.pad(w, ((0, 0), (0, cin_p - cin), (0, cout_p - cout)))
    return w.astype(jnp.bfloat16)


def _pad_vec(v, n):
    return jnp.pad(v.astype(jnp.float32), (0, n - v.shape[0]))


def _bn_scale_shift(stat_sum, stat_sumsq, count, gamma_p, beta_p):
    """Train-mode BN (biased variance) folded into per-channel scale/shift.

    TODO(synk): single-pass var = E[y^2] - mean^2 in f32 is cancellation-prone
    if |mean| >> std; switch to Welford partials if BN inputs ever drift."""
    mean = stat_sum / count
    var = stat_sumsq / count - mean * mean
    inv = lax.rsqrt(jnp.maximum(var, 0.0) + BN_EPS)
    scale = gamma_p * inv
    shift = beta_p - mean * scale
    return scale.reshape(1, -1), shift.reshape(1, -1)


# ----------------------------------------------------------------------------
# Kernel A: conv1 (3x3 / stride, pad 1) [+ fused 1x1 projection shortcut]
#           + per-image BN partials.  One batch image per grid step.
# ----------------------------------------------------------------------------
def _conv1_proj_call(phases, w1_taps, ws_mat, dims, has_proj):
    (N, Ho, Wo, Cin_p, Cp, stride) = dims
    n_ph = stride * stride

    def kernel(*refs):
        ph_refs = refs[:n_ph]
        w_ref = refs[n_ph]
        if has_proj:
            ws_ref = refs[n_ph + 1]
            y_ref, sc_ref, st_ref = refs[n_ph + 2:]
        else:
            y_ref, st_ref = refs[n_ph + 1:]

        acc = jnp.zeros((Ho * Wo, Cp), jnp.float32)
        center = None
        for kh in range(3):
            for kw in range(3):
                ph = ph_refs[(kh % stride) * stride + (kw % stride)]
                oh, ow = kh // stride, kw // stride
                patch = ph[0, oh:oh + Ho, ow:ow + Wo, :].reshape(Ho * Wo, Cin_p)
                if kh == 1 and kw == 1:
                    center = patch            # reused by the 1x1 shortcut
                acc = acc + jnp.dot(patch, w_ref[kh * 3 + kw],
                                    preferred_element_type=jnp.float32)

        y_ref[0] = acc.reshape(Ho, Wo, Cp).astype(y_ref.dtype)
        zero_row = jnp.zeros((1, Cp), jnp.float32)
        rows = [jnp.sum(acc, axis=0, keepdims=True),
                jnp.sum(acc * acc, axis=0, keepdims=True)]
        if has_proj:
            sc = jnp.dot(center, ws_ref[...], preferred_element_type=jnp.float32)
            sc_ref[0] = sc.reshape(Ho, Wo, Cp).astype(sc_ref.dtype)
            rows += [jnp.sum(sc, axis=0, keepdims=True),
                     jnp.sum(sc * sc, axis=0, keepdims=True)]
        rows += [zero_row] * (8 - len(rows))
        st_ref[0] = jnp.concatenate(rows, axis=0)     # full (8, Cp) store

    img_spec = pl.BlockSpec((1, Ho, Wo, Cp), lambda n: (n, 0, 0, 0))
    in_arrays = list(phases) + [w1_taps]
    in_specs = [pl.BlockSpec((1,) + p.shape[1:], lambda n: (n, 0, 0, 0))
                for p in phases]
    in_specs.append(pl.BlockSpec(w1_taps.shape, lambda n: (0, 0, 0)))
    out_shapes = [jax.ShapeDtypeStruct((N, Ho, Wo, Cp), jnp.bfloat16)]
    out_specs = [img_spec]
    if has_proj:
        in_arrays.append(ws_mat)
        in_specs.append(pl.BlockSpec(ws_mat.shape, lambda n: (0, 0)))
        out_shapes.append(jax.ShapeDtypeStruct((N, Ho, Wo, Cp), jnp.bfloat16))
        out_specs.append(img_spec)
    out_shapes.append(jax.ShapeDtypeStruct((N, 8, Cp), jnp.float32))
    out_specs.append(pl.BlockSpec((1, 8, Cp), lambda n: (n, 0, 0)))

    return pl.pallas_call(
        kernel,
        grid=(N,),
        in_specs=in_specs,
        out_specs=tuple(out_specs),
        out_shape=tuple(out_shapes),
        compiler_params=_compiler_params(),
    )(*in_arrays)


# ----------------------------------------------------------------------------
# Kernel B: BN1 + LeakyReLU fused into conv2 (3x3 / 1, pad 1) + BN partials.
# The conv1 activation lives only in a zero-bordered VMEM scratch.
# ----------------------------------------------------------------------------
def _bnact_conv2_call(y1, scale1, shift1, w2_taps, dims):
    (N, Ho, Wo, Cp) = dims

    def kernel(y1_ref, s_ref, b_ref, w_ref, y2_ref, st_ref, a_ref):
        # BN1 + LeakyReLU in f32 (no bf16 VPU on v5e), stored bf16 in VMEM.
        a = y1_ref[0].astype(jnp.float32) * s_ref[...] + b_ref[...]
        a = jnp.where(a > 0, a, LEAKY_SLOPE * a)
        a_ref[...] = jnp.zeros_like(a_ref)            # zero halo border
        a_ref[1:Ho + 1, 1:Wo + 1, :] = a.astype(a_ref.dtype)

        acc = jnp.zeros((Ho * Wo, Cp), jnp.float32)
        for kh in range(3):
            for kw in range(3):
                patch = a_ref[kh:kh + Ho, kw:kw + Wo, :].reshape(Ho * Wo, Cp)
                acc = acc + jnp.dot(patch, w_ref[kh * 3 + kw],
                                    preferred_element_type=jnp.float32)

        y2_ref[0] = acc.reshape(Ho, Wo, Cp).astype(y2_ref.dtype)
        zero_row = jnp.zeros((1, Cp), jnp.float32)
        st_ref[0] = jnp.concatenate(
            [jnp.sum(acc, axis=0, keepdims=True),
             jnp.sum(acc * acc, axis=0, keepdims=True)] + [zero_row] * 6,
            axis=0)

    img_spec = pl.BlockSpec((1, Ho, Wo, Cp), lambda n: (n, 0, 0, 0))
    vec_spec = pl.BlockSpec((1, Cp), lambda n: (0, 0))
    return pl.pallas_call(
        kernel,
        grid=(N,),
        in_specs=[img_spec, vec_spec, vec_spec,
                  pl.BlockSpec(w2_taps.shape, lambda n: (0, 0, 0))],
        out_specs=(img_spec, pl.BlockSpec((1, 8, Cp), lambda n: (n, 0, 0))),
        out_shape=(jax.ShapeDtypeStruct((N, Ho, Wo, Cp), jnp.bfloat16),
                   jax.ShapeDtypeStruct((N, 8, Cp), jnp.float32)),
        scratch_shapes=[pltpu.VMEM((Ho + 2, Wo + 2, Cp), jnp.bfloat16)],
        compiler_params=_compiler_params(),
    )(y1, scale1, shift1, w2_taps)


# ----------------------------------------------------------------------------
# Kernel C: BN2 + residual (raw bf16 x, or BN-ed projection) + LeakyReLU.
# ----------------------------------------------------------------------------
def _bn_residual_act_call(y2, scale2, shift2, residual, res_scale_shift, dims,
                          out_dtype=jnp.float32):
    (N, Ho, Wo, Cp) = dims
    proj = res_scale_shift is not None

    def kernel(*refs):
        if proj:
            y_ref, s_ref, b_ref, r_ref, rs_ref, rb_ref, o_ref = refs
        else:
            y_ref, s_ref, b_ref, r_ref, o_ref = refs
        out = y_ref[0].astype(jnp.float32) * s_ref[...] + b_ref[...]
        res = r_ref[0].astype(jnp.float32)
        if proj:
            res = res * rs_ref[...] + rb_ref[...]
        out = out + res
        out = jnp.where(out > 0, out, LEAKY_SLOPE * out)
        o_ref[0] = out.astype(o_ref.dtype)

    img_spec = pl.BlockSpec((1, Ho, Wo, Cp), lambda n: (n, 0, 0, 0))
    vec_spec = pl.BlockSpec((1, Cp), lambda n: (0, 0))
    in_arrays = [y2, scale2, shift2, residual]
    in_specs = [img_spec, vec_spec, vec_spec, img_spec]
    if proj:
        in_arrays += list(res_scale_shift)
        in_specs += [vec_spec, vec_spec]
    return pl.pallas_call(
        kernel,
        grid=(N,),
        in_specs=in_specs,
        out_specs=img_spec,
        out_shape=jax.ShapeDtypeStruct((N, Ho, Wo, Cp), out_dtype),
        compiler_params=_compiler_params(),
    )(*in_arrays)


# ----------------------------------------------------------------------------
# BasicBlock forward (NCHW in / NCHW out, like PyTorch, train-mode BN).
# ----------------------------------------------------------------------------
def basic_block_forward(x_nchw, params, stride):
    # NHWC + bf16 up-front: every HBM-resident activation from here is bf16.
    x = jnp.transpose(x_nchw, (0, 2, 3, 1)).astype(jnp.bfloat16)
    N, H, W, Cin = x.shape
    Cout = params["w1"].shape[0]
    has_proj = (stride != 1) or (Cin != Cout)

    Cp = _round_up(Cout, LANE)
    Cin_p = _round_up(Cin, LANE)
    Ho = (H + 2 - 3) // stride + 1
    Wo = (W + 2 - 3) // stride + 1
    count = float(N * Ho * Wo)            # exact BN divisor, no padded rows

    # Channel-pad once (lane-dense MXU operands), then the spatial halo pad.
    x_c = jnp.pad(x, ((0, 0), (0, 0), (0, 0), (0, Cin_p - Cin)))
    x_p = jnp.pad(x_c, ((0, 0), (1, 1), (1, 1), (0, 0)))
    if stride == 1:
        phases = [x_p]
    else:
        # A stride-s conv only reads s*s interleaved sub-grids of x_p; the
        # phase split (total ~1x of x) makes every in-kernel tap slice
        # unit-stride.  This replaces the old 9x im2col entirely.
        phases = [x_p[:, ph::stride, pw::stride, :]
                  for ph in range(stride) for pw in range(stride)]

    w1 = _conv_w_to_taps(params["w1"], Cin_p, Cp)
    ws = _conv_w_to_taps(params["ws"], Cin_p, Cp)[0] if has_proj else None
    g1, b1 = _pad_vec(params["g1"], Cp), _pad_vec(params["b1"], Cp)
    g2, b2 = _pad_vec(params["g2"], Cp), _pad_vec(params["b2"], Cp)

    # --- conv1 (+ projection shortcut) + BN partials --------------------------
    outs = _conv1_proj_call(phases, w1, ws, (N, Ho, Wo, Cin_p, Cp, stride),
                            has_proj)
    if has_proj:
        y1, sc, st1 = outs
    else:
        (y1, st1), sc = outs, None
    st1 = st1.sum(axis=0)                                  # tiny (8, Cp) reduce
    s1, sh1 = _bn_scale_shift(st1[0], st1[1], count, g1, b1)

    # --- BN1 + LeakyReLU fused into conv2, + BN2 partials ---------------------
    w2 = _conv_w_to_taps(params["w2"], Cp, Cp)
    y2, st2 = _bnact_conv2_call(y1, s1, sh1, w2, (N, Ho, Wo, Cp))
    st2 = st2.sum(axis=0)
    s2, sh2 = _bn_scale_shift(st2[0], st2[1], count, g2, b2)

    # --- BN2 + residual + LeakyReLU --------------------------------------------
    if has_proj:
        gsc, bsc = _pad_vec(params["gs"], Cp), _pad_vec(params["bs"], Cp)
        ssc, shsc = _bn_scale_shift(st1[2], st1[3], count, gsc, bsc)
        residual, rss = sc, (ssc, shsc)
    else:
        residual, rss = x_c, None         # identity: raw bf16 x, no f32 copy

    out = _bn_residual_act_call(y2, s2, sh2, residual, rss, (N, Ho, Wo, Cp))

    # TODO(synk): consumers that accept NHWC / bf16 should use `out` directly;
    # the slice + transpose below only matches the PyTorch NCHW f32 contract.
    out = out[..., :Cout]
    return jnp.transpose(out, (0, 3, 1, 2))


# ----------------------------------------------------------------------------
# Pure-JAX reference (train-mode BN, bf16 conv operands like the kernel path).
# ----------------------------------------------------------------------------
def _leaky(x):
    return jnp.where(x > 0, x, LEAKY_SLOPE * x)


def _bn_train(y_nhwc, gamma, beta):
    mean = jnp.mean(y_nhwc, axis=(0, 1, 2), keepdims=True)
    var = jnp.mean((y_nhwc - mean) ** 2, axis=(0, 1, 2), keepdims=True)
    return (y_nhwc - mean) * lax.rsqrt(var + BN_EPS) * gamma + beta


def ref_forward(x_nchw, params, stride):
    x = jnp.transpose(x_nchw, (0, 2, 3, 1)).astype(jnp.float32)
    dn = ("NHWC", "HWIO", "NHWC")

    def conv(inp, w_oihw, s, pad):
        w = jnp.transpose(w_oihw, (2, 3, 1, 0))
        return lax.conv_general_dilated(
            inp.astype(jnp.bfloat16), w.astype(jnp.bfloat16), (s, s),
            ((pad, pad), (pad, pad)), dimension_numbers=dn,
            preferred_element_type=jnp.float32)

    y = conv(x, params["w1"], stride, 1)
    y = _leaky(_bn_train(y, params["g1"], params["b1"]))
    y = conv(y, params["w2"], 1, 1)
    y = _bn_train(y, params["g2"], params["b2"])

    Cin, Cout = x.shape[-1], params["w1"].shape[0]
    if stride != 1 or Cin != Cout:
        sc = _bn_train(conv(x, params["ws"], stride, 0),
                       params["gs"], params["bs"])
    else:
        sc = x
    return jnp.transpose(_leaky(y + sc), (0, 3, 1, 2))


# ----------------------------------------------------------------------------
if __name__ == "__main__":
    def make_params(key, cin, cout, with_proj):
        ks = jax.random.split(key, 9)
        p = {
            "w1": jax.random.normal(ks[0], (cout, cin, 3, 3), jnp.float32) * 0.1,
            "g1": 1.0 + 0.1 * jax.random.normal(ks[1], (cout,), jnp.float32),
            "b1": 0.1 * jax.random.normal(ks[2], (cout,), jnp.float32),
            "w2": jax.random.normal(ks[3], (cout, cout, 3, 3), jnp.float32) * 0.1,
            "g2": 1.0 + 0.1 * jax.random.normal(ks[4], (cout,), jnp.float32),
            "b2": 0.1 * jax.random.normal(ks[5], (cout,), jnp.float32),
        }
        if with_proj:
            p["ws"] = jax.random.normal(ks[6], (cout, cin, 1, 1), jnp.float32) * 0.1
            p["gs"] = 1.0 + 0.1 * jax.random.normal(ks[7], (cout,), jnp.float32)
            p["bs"] = 0.1 * jax.random.normal(ks[8], (cout,), jnp.float32)
        return p

    key = jax.random.PRNGKey(0)
    k1, k2, kx1, kx2 = jax.random.split(key, 4)
    fwd = jax.jit(basic_block_forward, static_argnames=("stride",))

    # Tolerance: all intermediates / residual are bf16 on the kernel path
    # (f32 accumulation + f32 BN stats), so ~3e-2 worst-case element error.
    TOL = 6e-2

    # Config A: downsampling block (stride 2, channel expansion); projection
    # shortcut fused into the conv1 kernel.
    N, Cin, H, W, Cout, stride = 2, 4, 16, 16, 8, 2
    params_a = make_params(k1, Cin, Cout, with_proj=True)
    x_a = jax.random.normal(kx1, (N, Cin, H, W), jnp.float32)
    out_a = jax.block_until_ready(fwd(x_a, params_a, stride=stride))
    ref_a = jax.block_until_ready(ref_forward(x_a, params_a, stride))
    assert out_a.shape == (N, Cout, H // stride, W // stride), out_a.shape
    err_a = float(jnp.max(jnp.abs(out_a - ref_a)))
    assert err_a < TOL, err_a

    # Config B: identity-shortcut block (stride 1, Cin == Cout).
    Cb = 8
    params_b = make_params(k2, Cb, Cb, with_proj=False)
    x_b = jax.random.normal(kx2, (N, Cb, H, W), jnp.float32)
    out_b = jax.block_until_ready(fwd(x_b, params_b, stride=1))
    ref_b = jax.block_until_ready(ref_forward(x_b, params_b, 1))
    assert out_b.shape == (N, Cb, H, W), out_b.shape
    err_b = float(jnp.max(jnp.abs(out_b - ref_b)))
    assert err_b < TOL, err_b

    print("KERNEL_OK")
</pallas_src>

<mosaic_0001>
module attributes {stable_mosaic.version = 11 : i64} {
  func.func @kernel(%arg0: i32, %arg1: memref<1x9x9x128xbf16, #tpu.memory_space<vmem>>, %arg2: memref<1x9x9x128xbf16, #tpu.memory_space<vmem>>, %arg3: memref<1x9x9x128xbf16, #tpu.memory_space<vmem>>, %arg4: memref<1x9x9x128xbf16, #tpu.memory_space<vmem>>, %arg5: memref<9x128x128xbf16, #tpu.memory_space<vmem>>, %arg6: memref<128x128xbf16, #tpu.memory_space<vmem>>, %arg7: memref<1x8x8x128xbf16, #tpu.memory_space<vmem>>, %arg8: memref<1x8x8x128xbf16, #tpu.memory_space<vmem>>, %arg9: memref<1x8x128xf32, #tpu.memory_space<vmem>>) attributes {dimension_semantics = [#tpu.dimension_semantics<parallel>], iteration_bounds = array<i64: 2>, scalar_prefetch = 0 : i64, scratch_operands = 0 : i64, tpu.core_type = #tpu.core_type<tc>, window_params = [{transform_indices = @transform_0, window_bounds = array<i64: 1, 9, 9, 128>}, {transform_indices = @transform_1, window_bounds = array<i64: 1, 9, 9, 128>}, {transform_indices = @transform_2, window_bounds = array<i64: 1, 9, 9, 128>}, {transform_indices = @transform_3, window_bounds = array<i64: 1, 9, 9, 128>}, {pipeline_mode = #tpu.pipeline_mode<synchronous>, transform_indices = @transform_4, window_bounds = array<i64: 9, 128, 128>}, {pipeline_mode = #tpu.pipeline_mode<synchronous>, transform_indices = @transform_5, window_bounds = array<i64: 128, 128>}, {transform_indices = @transform_6, window_bounds = array<i64: 1, 8, 8, 128>}, {transform_indices = @transform_7, window_bounds = array<i64: 1, 8, 8, 128>}, {transform_indices = @transform_8, window_bounds = array<i64: 1, 8, 128>}]} {
    %cst = arith.constant 0.000000e+00 : f32
    %0 = vector.broadcast %cst : f32 to vector<64x128xf32>
    %c0 = arith.constant 0 : index
    %c0_0 = arith.constant 0 : index
    %c0_1 = arith.constant 0 : index
    %c0_2 = arith.constant 0 : index
    %1 = vector.load %arg1[%c0, %c0_0, %c0_1, %c0_2] : memref<1x9x9x128xbf16, #tpu.memory_space<vmem>>, vector<1x8x8x128xbf16>
    %2 = vector.shape_cast %1 : vector<1x8x8x128xbf16> to vector<8x8x128xbf16>
    %3 = vector.shape_cast %2 : vector<8x8x128xbf16> to vector<64x128xbf16>
    %c0_3 = arith.constant 0 : index
    %c0_4 = arith.constant 0 : index
    %c0_5 = arith.constant 0 : index
    %4 = vector.load %arg5[%c0_3, %c0_4, %c0_5] : memref<9x128x128xbf16, #tpu.memory_space<vmem>>, vector<1x128x128xbf16>
    %5 = vector.shape_cast %4 : vector<1x128x128xbf16> to vector<128x128xbf16>
    %cst_6 = arith.constant dense<0.000000e+00> : vector<64x128xf32>
    %6 = tpu.matmul %3, %5, %cst_6 {dimension_numbers = #tpu.dot_dimension_numbers<[1], [0], [0], [1], [0, 0, 1, 1], [], []>} : vector<64x128xbf16>, vector<128x128xbf16>, vector<64x128xf32> -> vector<64x128xf32>
    %7 = arith.addf %0, %6 : vector<64x128xf32>
    %c0_7 = arith.constant 0 : index
    %c0_8 = arith.constant 0 : index
    %c0_9 = arith.constant 0 : index
    %c0_10 = arith.constant 0 : index
    %8 = vector.load %arg2[%c0_7, %c0_8, %c0_9, %c0_10] : memref<1x9x9x128xbf16, #tpu.memory_space<vmem>>, vector<1x8x8x128xbf16>
    %9 = vector.shape_cast %8 : vector<1x8x8x128xbf16> to vector<8x8x128xbf16>
    %10 = vector.shape_cast %9 : vector<8x8x128xbf16> to vector<64x128xbf16>
    %c1 = arith.constant 1 : index
    %c0_11 = arith.constant 0 : index
    %c0_12 = arith.constant 0 : index
    %11 = vector.load %arg5[%c1, %c0_11, %c0_12] : memref<9x128x128xbf16, #tpu.memory_space<vmem>>, vector<1x128x128xbf16>
    %12 = vector.shape_cast %11 : vector<1x128x128xbf16> to vector<128x128xbf16>
    %cst_13 = arith.constant dense<0.000000e+00> : vector<64x128xf32>
    %13 = tpu.matmul %10, %12, %cst_13 {dimension_numbers = #tpu.dot_dimension_numbers<[1], [0], [0], [1], [0, 0, 1, 1], [], []>} : vector<64x128xbf16>, vector<128x128xbf16>, vector<64x128xf32> -> vector<64x128xf32>
    %14 = arith.addf %7, %13 : vector<64x128xf32>
    %c0_14 = arith.constant 0 : index
    %c0_15 = arith.constant 0 : index
    %c1_16 = arith.constant 1 : index
    %c0_17 = arith.constant 0 : index
    %15 = vector.load %arg1[%c0_14, %c0_15, %c1_16, %c0_17] : memref<1x9x9x128xbf16, #tpu.memory_space<vmem>>, vector<1x8x8x128xbf16>
    %16 = vector.shape_cast %15 : vector<1x8x8x128xbf16> to vector<8x8x128xbf16>
    %17 = vector.shape_cast %16 : vector<8x8x128xbf16> to vector<64x128xbf16>
    %c2 = arith.constant 2 : index
    %c0_18 = arith.constant 0 : index
    %c0_19 = arith.constant 0 : index
    %18 = vector.load %arg5[%c2, %c0_18, %c0_19] : memref<9x128x128xbf16, #tpu.memory_space<vmem>>, vector<1x128x128xbf16>
    %19 = vector.shape_cast %18 : vector<1x128x128xbf16> to vector<128x128xbf16>
    %cst_20 = arith.constant dense<0.000000e+00> : vector<64x128xf32>
    %20 = tpu.matmul %17, %19, %cst_20 {dimension_numbers = #tpu.dot_dimension_numbers<[1], [0], [0], [1], [0, 0, 1, 1], [], []>} : vector<64x128xbf16>, vector<128x128xbf16>, vector<64x128xf32> -> vector<64x128xf32>
    %21 = arith.addf %14, %20 : vector<64x128xf32>
    %c0_21 = arith.constant 0 : index
    %c0_22 = arith.constant 0 : index
    %c0_23 = arith.constant 0 : index
    %c0_24 = arith.constant 0 : index
    %22 = vector.load %arg3[%c0_21, %c0_22, %c0_23, %c0_24] : memref<1x9x9x128xbf16, #tpu.memory_space<vmem>>, vector<1x8x8x128xbf16>
    %23 = vector.shape_cast %22 : vector<1x8x8x128xbf16> to vector<8x8x128xbf16>
    %24 = vector.shape_cast %23 : vector<8x8x128xbf16> to vector<64x128xbf16>
    %c3 = arith.constant 3 : index
    %c0_25 = arith.constant 0 : index
    %c0_26 = arith.constant 0 : index
    %25 = vector.load %arg5[%c3, %c0_25, %c0_26] : memref<9x128x128xbf16, #tpu.memory_space<vmem>>, vector<1x128x128xbf16>
    %26 = vector.shape_cast %25 : vector<1x128x128xbf16> to vector<128x128xbf16>
    %cst_27 = arith.constant dense<0.000000e+00> : vector<64x128xf32>
    %27 = tpu.matmul %24, %26, %cst_27 {dimension_numbers = #tpu.dot_dimension_numbers<[1], [0], [0], [1], [0, 0, 1, 1], [], []>} : vector<64x128xbf16>, vector<128x128xbf16>, vector<64x128xf32> -> vector<64x128xf32>
    %28 = arith.addf %21, %27 : vector<64x128xf32>
    %c0_28 = arith.constant 0 : index
    %c0_29 = arith.constant 0 : index
    %c0_30 = arith.constant 0 : index
    %c0_31 = arith.constant 0 : index
    %29 = vector.load %arg4[%c0_28, %c0_29, %c0_30, %c0_31] : memref<1x9x9x128xbf16, #tpu.memory_space<vmem>>, vector<1x8x8x128xbf16>
    %30 = vector.shape_cast %29 : vector<1x8x8x128xbf16> to vector<8x8x128xbf16>
    %31 = vector.shape_cast %30 : vector<8x8x128xbf16> to vector<64x128xbf16>
    %c4 = arith.constant 4 : index
    %c0_32 = arith.constant 0 : index
    %c0_33 = arith.constant 0 : index
    %32 = vector.load %arg5[%c4, %c0_32, %c0_33] : memref<9x128x128xbf16, #tpu.memory_space<vmem>>, vector<1x128x128xbf16>
    %33 = vector.shape_cast %32 : vector<1x128x128xbf16> to vector<128x128xbf16>
    %cst_34 = arith.constant dense<0.000000e+00> : vector<64x128xf32>
    %34 = tpu.matmul %31, %33, %cst_34 {dimension_numbers = #tpu.dot_dimension_numbers<[1], [0], [0], [1], [0, 0, 1, 1], [], []>} : vector<64x128xbf16>, vector<128x128xbf16>, vector<64x128xf32> -> vector<64x128xf32>
    %35 = arith.addf %28, %34 : vector<64x128xf32>
    %c0_35 = arith.constant 0 : index
    %c0_36 = arith.constant 0 : index
    %c1_37 = arith.constant 1 : index
    %c0_38 = arith.constant 0 : index
    %36 = vector.load %arg3[%c0_35, %c0_36, %c1_37, %c0_38] : memref<1x9x9x128xbf16, #tpu.memory_space<vmem>>, vector<1x8x8x128xbf16>
    %37 = vector.shape_cast %36 : vector<1x8x8x128xbf16> to vector<8x8x128xbf16>
    %38 = vector.shape_cast %37 : vector<8x8x128xbf16> to vector<64x128xbf16>
    %c5 = arith.constant 5 : index
    %c0_39 = arith.constant 0 : index
    %c0_40 = arith.constant 0 : index
    %39 = vector.load %arg5[%c5, %c0_39, %c0_40] : memref<9x128x128xbf16, #tpu.memory_space<vmem>>, vector<1x128x128xbf16>
    %40 = vector.shape_cast %39 : vector<1x128x128xbf16> to vector<128x128xbf16>
    %cst_41 = arith.constant dense<0.000000e+00> : vector<64x128xf32>
    %41 = tpu.matmul %38, %40, %cst_41 {dimension_numbers = #tpu.dot_dimension_numbers<[1], [0], [0], [1], [0, 0, 1, 1], [], []>} : vector<64x128xbf16>, vector<128x128xbf16>, vector<64x128xf32> -> vector<64x128xf32>
    %42 = arith.addf %35, %41 : vector<64x128xf32>
    %c0_42 = arith.constant 0 : index
    %c1_43 = arith.constant 1 : index
    %c0_44 = arith.constant 0 : index
    %c0_45 = arith.constant 0 : index
    %43 = vector.load %arg1[%c0_42, %c1_43, %c0_44, %c0_45] : memref<1x9x9x128xbf16, #tpu.memory_space<vmem>>, vector<1x8x8x128xbf16>
    %44 = vector.shape_cast %43 : vector<1x8x8x128xbf16> to vector<8x8x128xbf16>
    %45 = vector.shape_cast %44 : vector<8x8x128xbf16> to vector<64x128xbf16>
    %c6 = arith.constant 6 : index
    %c0_46 = arith.constant 0 : index
    %c0_47 = arith.constant 0 : index
    %46 = vector.load %arg5[%c6, %c0_46, %c0_47] : memref<9x128x128xbf16, #tpu.memory_space<vmem>>, vector<1x128x128xbf16>
    %47 = vector.shape_cast %46 : vector<1x128x128xbf16> to vector<128x128xbf16>
    %cst_48 = arith.constant dense<0.000000e+00> : vector<64x128xf32>
    %48 = tpu.matmul %45, %47, %cst_48 {dimension_numbers = #tpu.dot_dimension_numbers<[1], [0], [0], [1], [0, 0, 1, 1], [], []>} : vector<64x128xbf16>, vector<128x128xbf16>, vector<64x128xf32> -> vector<64x128xf32>
    %49 = arith.addf %42, %48 : vector<64x128xf32>
    %c0_49 = arith.constant 0 : index
    %c1_50 = arith.constant 1 : index
    %c0_51 = arith.constant 0 : index
    %c0_52 = arith.constant 0 : index
    %50 = vector.load %arg2[%c0_49, %c1_50, %c0_51, %c0_52] : memref<1x9x9x128xbf16, #tpu.memory_space<vmem>>, vector<1x8x8x128xbf16>
    %51 = vector.shape_cast %50 : vector<1x8x8x128xbf16> to vector<8x8x128xbf16>
    %52 = vector.shape_cast %51 : vector<8x8x128xbf16> to vector<64x128xbf16>
    %c7 = arith.constant 7 : index
    %c0_53 = arith.constant 0 : index
    %c0_54 = arith.constant 0 : index
    %53 = vector.load %arg5[%c7, %c0_53, %c0_54] : memref<9x128x128xbf16, #tpu.memory_space<vmem>>, vector<1x128x128xbf16>
    %54 = vector.shape_cast %53 : vector<1x128x128xbf16> to vector<128x128xbf16>
    %cst_55 = arith.constant dense<0.000000e+00> : vector<64x128xf32>
    %55 = tpu.matmul %52, %54, %cst_55 {dimension_numbers = #tpu.dot_dimension_numbers<[1], [0], [0], [1], [0, 0, 1, 1], [], []>} : vector<64x128xbf16>, vector<128x128xbf16>, vector<64x128xf32> -> vector<64x128xf32>
    %56 = arith.addf %49, %55 : vector<64x128xf32>
    %c0_56 = arith.constant 0 : index
    %c1_57 = arith.constant 1 : index
    %c1_58 = arith.constant 1 : index
    %c0_59 = arith.constant 0 : index
    %57 = vector.load %arg1[%c0_56, %c1_57, %c1_58, %c0_59] : memref<1x9x9x128xbf16, #tpu.memory_space<vmem>>, vector<1x8x8x128xbf16>
    %58 = vector.shape_cast %57 : vector<1x8x8x128xbf16> to vector<8x8x128xbf16>
    %59 = vector.shape_cast %58 : vector<8x8x128xbf16> to vector<64x128xbf16>
    %c8 = arith.constant 8 : index
    %c0_60 = arith.constant 0 : index
    %c0_61 = arith.constant 0 : index
    %60 = vector.load %arg5[%c8, %c0_60, %c0_61] : memref<9x128x128xbf16, #tpu.memory_space<vmem>>, vector<1x128x128xbf16>
    %61 = vector.shape_cast %60 : vector<1x128x128xbf16> to vector<128x128xbf16>
    %cst_62 = arith.constant dense<0.000000e+00> : vector<64x128xf32>
    %62 = tpu.matmul %59, %61, %cst_62 {dimension_numbers = #tpu.dot_dimension_numbers<[1], [0], [0], [1], [0, 0, 1, 1], [], []>} : vector<64x128xbf16>, vector<128x128xbf16>, vector<64x128xf32> -> vector<64x128xf32>
    %63 = arith.addf %56, %62 : vector<64x128xf32>
    %64 = vector.shape_cast %63 : vector<64x128xf32> to vector<8x8x128xf32>
    %65 = arith.truncf %64 : vector<8x8x128xf32> to vector<8x8x128xbf16>
    %c0_63 = arith.constant 0 : index
    %c0_64 = arith.constant 0 : index
    %c0_65 = arith.constant 0 : index
    %c0_66 = arith.constant 0 : index
    %66 = vector.load %arg7[%c0_63, %c0_64, %c0_65, %c0_66] : memref<1x8x8x128xbf16, #tpu.memory_space<vmem>>, vector<1x8x8x128xbf16>
    %67 = vector.shape_cast %66 : vector<1x8x8x128xbf16> to vector<8x8x128xbf16>
    %68 = vector.shape_cast %65 : vector<8x8x128xbf16> to vector<1x8x8x128xbf16>
    tpu.vector_store %arg7[%c0_63, %c0_64, %c0_65, %c0_66], %68 {strides = array<i32>} : memref<1x8x8x128xbf16, #tpu.memory_space<vmem>>, vector<1x8x8x128xbf16>,
    %cst_67 = arith.constant 0.000000e+00 : f32
    %69 = vector.broadcast %cst_67 : f32 to vector<1x128xf32>
    %cst_68 = arith.constant dense<0.000000e+00> : vector<128xf32>
    %70 = vector.multi_reduction <add>, %63, %cst_68 [0] : vector<64x128xf32> to vector<128xf32>
    %71 = vector.shape_cast %70 : vector<128xf32> to vector<1x128xf32>
    %72 = arith.mulf %63, %63 : vector<64x128xf32>
    %cst_69 = arith.constant dense<0.000000e+00> : vector<128xf32>
    %73 = vector.multi_reduction <add>, %72, %cst_69 [0] : vector<64x128xf32> to vector<128xf32>
    %74 = vector.shape_cast %73 : vector<128xf32> to vector<1x128xf32>
    %c0_70 = arith.constant 0 : index
    %c0_71 = arith.constant 0 : index
    %75 = vector.load %arg6[%c0_70, %c0_71] : memref<128x128xbf16, #tpu.memory_space<vmem>>, vector<128x128xbf16>
    %cst_72 = arith.constant dense<0.000000e+00> : vector<64x128xf32>
    %76 = tpu.matmul %31, %75, %cst_72 {dimension_numbers = #tpu.dot_dimension_numbers<[1], [0], [0], [1], [0, 0, 1, 1], [], []>} : vector<64x128xbf16>, vector<128x128xbf16>, vector<64x128xf32> -> vector<64x128xf32>
    %77 = vector.shape_cast %76 : vector<64x128xf32> to vector<8x8x128xf32>
    %78 = arith.truncf %77 : vector<8x8x128xf32> to vector<8x8x128xbf16>
    %c0_73 = arith.constant 0 : index
    %c0_74 = arith.constant 0 : index
    %c0_75 = arith.constant 0 : index
    %c0_76 = arith.constant 0 : index
    %79 = vector.load %arg8[%c0_73, %c0_74, %c0_75, %c0_76] : memref<1x8x8x128xbf16, #tpu.memory_space<vmem>>, vector<1x8x8x128xbf16>
    %80 = vector.shape_cast %79 : vector<1x8x8x128xbf16> to vector<8x8x128xbf16>
    %81 = vector.shape_cast %78 : vector<8x8x128xbf16> to vector<1x8x8x128xbf16>
    tpu.vector_store %arg8[%c0_73, %c0_74, %c0_75, %c0_76], %81 {strides = array<i32>} : memref<1x8x8x128xbf16, #tpu.memory_space<vmem>>, vector<1x8x8x128xbf16>,
    %cst_77 = arith.constant dense<0.000000e+00> : vector<128xf32>
    %82 = vector.multi_reduction <add>, %76, %cst_77 [0] : vector<64x128xf32> to vector<128xf32>
    %83 = vector.shape_cast %82 : vector<128xf32> to vector<1x128xf32>
    %84 = arith.mulf %76, %76 : vector<64x128xf32>
    %cst_78 = arith.constant dense<0.000000e+00> : vector<128xf32>
    %85 = vector.multi_reduction <add>, %84, %cst_78 [0] : vector<64x128xf32> to vector<128xf32>
    %86 = vector.shape_cast %85 : vector<128xf32> to vector<1x128xf32>
    %87 = tpu.concatenate %71, %74, %83, %86, %69, %69, %69, %69 in 0 : vector<1x128xf32>, vector<1x128xf32>, vector<1x128xf32>, vector<1x128xf32>, vector<1x128xf32>, vector<1x128xf32>, vector<1x128xf32>, vector<1x128xf32> -> vector<8x128xf32>
    %c0_79 = arith.constant 0 : index
    %c0_80 = arith.constant 0 : index
    %c0_81 = arith.constant 0 : index
    %88 = vector.load %arg9[%c0_79, %c0_80, %c0_81] : memref<1x8x128xf32, #tpu.memory_space<vmem>>, vector<1x8x128xf32>
    %89 = vector.shape_cast %88 : vector<1x8x128xf32> to vector<8x128xf32>
    %90 = vector.shape_cast %87 : vector<8x128xf32> to vector<1x8x128xf32>
    tpu.vector_store %arg9[%c0_79, %c0_80, %c0_81], %90 {strides = array<i32>} : memref<1x8x128xf32, #tpu.memory_space<vmem>>, vector<1x8x128xf32>,
    return
  }
  func.func @transform_0(%arg0: i32) -> (i32, i32, i32, i32) {
    %c0_i32 = arith.constant 0 : i32
    %c0_i32_0 = arith.constant 0 : i32
    %c0_i32_1 = arith.constant 0 : i32
    %c0_i32_2 = arith.constant 0 : i32
    return %arg0, %c0_i32, %c0_i32_0, %c0_i32_1 : i32, i32, i32, i32
  }
  func.func @transform_1(%arg0: i32) -> (i32, i32, i32, i32) {
    %c0_i32 = arith.constant 0 : i32
    %c0_i32_0 = arith.constant 0 : i32
    %c0_i32_1 = arith.constant 0 : i32
    %c0_i32_2 = arith.constant 0 : i32
    return %arg0, %c0_i32, %c0_i32_0, %c0_i32_1 : i32, i32, i32, i32
  }
  func.func @transform_2(%arg0: i32) -> (i32, i32, i32, i32) {
    %c0_i32 = arith.constant 0 : i32
    %c0_i32_0 = arith.constant 0 : i32
    %c0_i32_1 = arith.constant 0 : i32
    %c0_i32_2 = arith.constant 0 : i32
    return %arg0, %c0_i32, %c0_i32_0, %c0_i32_1 : i32, i32, i32, i32
  }
  func.func @transform_3(%arg0: i32) -> (i32, i32, i32, i32) {
    %c0_i32 = arith.constant 0 : i32
    %c0_i32_0 = arith.constant 0 : i32
    %c0_i32_1 = arith.constant 0 : i32
    %c0_i32_2 = arith.constant 0 : i32
    return %arg0, %c0_i32, %c0_i32_0, %c0_i32_1 : i32, i32, i32, i32
  }
  func.func @transform_4(%arg0: i32) -> (i32, i32, i32) {
    %c0_i32 = arith.constant 0 : i32
    %c0_i32_0 = arith.constant 0 : i32
    %c0_i32_1 = arith.constant 0 : i32
    %c0_i32_2 = arith.constant 0 : i32
    return %c0_i32, %c0_i32_0, %c0_i32_1 : i32, i32, i32
  }
  func.func @transform_5(%arg0: i32) -> (i32, i32) {
    %c0_i32 = arith.constant 0 : i32
    %c0_i32_0 = arith.constant 0 : i32
    %c0_i32_1 = arith.constant 0 : i32
    return %c0_i32, %c0_i32_0 : i32, i32
  }
  func.func @transform_6(%arg0: i32) -> (i32, i32, i32, i32) {
    %c0_i32 = arith.constant 0 : i32
    %c0_i32_0 = arith.constant 0 : i32
    %c0_i32_1 = arith.constant 0 : i32
    %c0_i32_2 = arith.constant 0 : i32
    return %arg0, %c0_i32, %c0_i32_0, %c0_i32_1 : i32, i32, i32, i32
  }
  func.func @transform_7(%arg0: i32) -> (i32, i32, i32, i32) {
    %c0_i32 = arith.constant 0 : i32
    %c0_i32_0 = arith.constant 0 : i32
    %c0_i32_1 = arith.constant 0 : i32
    %c0_i32_2 = arith.constant 0 : i32
    return %arg0, %c0_i32, %c0_i32_0, %c0_i32_1 : i32, i32, i32, i32
  }
  func.func @transform_8(%arg0: i32) -> (i32, i32, i32) {
    %c0_i32 = arith.constant 0 : i32
    %c0_i32_0 = arith.constant 0 : i32
    %c0_i32_1 = arith.constant 0 : i32
    return %arg0, %c0_i32, %c0_i32_0 : i32, i32, i32
  }
}

module attributes {stable_mosaic.version = 11 : i64} {
  func.func @kernel(%arg0: i32, %arg1: memref<1x8x8x128xbf16, #tpu.memory_space<vmem>>, %arg2: memref<1x128xf32, #tpu.memory_space<vmem>>, %arg3: memref<1x128xf32, #tpu.memory_space<vmem>>, %arg4: memref<1x8x8x128xbf16, #tpu.memory_space<vmem>>, %arg5: memref<1x128xf32, #tpu.memory_space<vmem>>, %arg6: memref<1x128xf32, #tpu.memory_space<vmem>>, %arg7: memref<1x8x8x128xf32, #tpu.memory_space<vmem>>) attributes {dimension_semantics = [#tpu.dimension_semantics<parallel>], iteration_bounds = array<i64: 2>, scalar_prefetch = 0 : i64, scratch_operands = 0 : i64, tpu.core_type = #tpu.core_type<tc>, window_params = [{transform_indices = @transform_0, window_bounds = array<i64: 1, 8, 8, 128>}, {pipeline_mode = #tpu.pipeline_mode<synchronous>, transform_indices = @transform_1, window_bounds = array<i64: 1, 128>}, {pipeline_mode = #tpu.pipeline_mode<synchronous>, transform_indices = @transform_2, window_bounds = array<i64: 1, 128>}, {transform_indices = @transform_3, window_bounds = array<i64: 1, 8, 8, 128>}, {pipeline_mode = #tpu.pipeline_mode<synchronous>, transform_indices = @transform_4, window_bounds = array<i64: 1, 128>}, {pipeline_mode = #tpu.pipeline_mode<synchronous>, transform_indices = @transform_5, window_bounds = array<i64: 1, 128>}, {transform_indices = @transform_6, window_bounds = array<i64: 1, 8, 8, 128>}]} {
    %c0 = arith.constant 0 : index
    %c0_0 = arith.constant 0 : index
    %c0_1 = arith.constant 0 : index
    %c0_2 = arith.constant 0 : index
    %0 = vector.load %arg1[%c0, %c0_0, %c0_1, %c0_2] : memref<1x8x8x128xbf16, #tpu.memory_space<vmem>>, vector<1x8x8x128xbf16>
    %1 = vector.shape_cast %0 : vector<1x8x8x128xbf16> to vector<8x8x128xbf16>
    %2 = arith.extf %1 : vector<8x8x128xbf16> to vector<8x8x128xf32>
    %c0_3 = arith.constant 0 : index
    %c0_4 = arith.constant 0 : index
    %3 = vector.load %arg2[%c0_3, %c0_4] : memref<1x128xf32, #tpu.memory_space<vmem>>, vector<1x128xf32>
    %4 = vector.shape_cast %3 : vector<1x128xf32> to vector<1x1x128xf32>
    %5 = vector.broadcast %4 : vector<1x1x128xf32> to vector<8x8x128xf32>
    %6 = arith.mulf %2, %5 : vector<8x8x128xf32>
    %c0_5 = arith.constant 0 : index
    %c0_6 = arith.constant 0 : index
    %7 = vector.load %arg3[%c0_5, %c0_6] : memref<1x128xf32, #tpu.memory_space<vmem>>, vector<1x128xf32>
    %8 = vector.shape_cast %7 : vector<1x128xf32> to vector<1x1x128xf32>
    %9 = vector.broadcast %8 : vector<1x1x128xf32> to vector<8x8x128xf32>
    %10 = arith.addf %6, %9 : vector<8x8x128xf32>
    %c0_7 = arith.constant 0 : index
    %c0_8 = arith.constant 0 : index
    %c0_9 = arith.constant 0 : index
    %c0_10 = arith.constant 0 : index
    %11 = vector.load %arg4[%c0_7, %c0_8, %c0_9, %c0_10] : memref<1x8x8x128xbf16, #tpu.memory_space<vmem>>, vector<1x8x8x128xbf16>
    %12 = vector.shape_cast %11 : vector<1x8x8x128xbf16> to vector<8x8x128xbf16>
    %13 = arith.extf %12 : vector<8x8x128xbf16> to vector<8x8x128xf32>
    %c0_11 = arith.constant 0 : index
    %c0_12 = arith.constant 0 : index
    %14 = vector.load %arg5[%c0_11, %c0_12] : memref<1x128xf32, #tpu.memory_space<vmem>>, vector<1x128xf32>
    %15 = vector.shape_cast %14 : vector<1x128xf32> to vector<1x1x128xf32>
    %16 = vector.broadcast %15 : vector<1x1x128xf32> to vector<8x8x128xf32>
    %17 = arith.mulf %13, %16 : vector<8x8x128xf32>
    %c0_13 = arith.constant 0 : index
    %c0_14 = arith.constant 0 : index
    %18 = vector.load %arg6[%c0_13, %c0_14] : memref<1x128xf32, #tpu.memory_space<vmem>>, vector<1x128xf32>
    %19 = vector.shape_cast %18 : vector<1x128xf32> to vector<1x1x128xf32>
    %20 = vector.broadcast %19 : vector<1x1x128xf32> to vector<8x8x128xf32>
    %21 = arith.addf %17, %20 : vector<8x8x128xf32>
    %22 = arith.addf %10, %21 : vector<8x8x128xf32>
    %cst = arith.constant 0.000000e+00 : f32
    %23 = vector.broadcast %cst : f32 to vector<8x8x128xf32>
    %24 = arith.cmpf ogt, %22, %23 : vector<8x8x128xf32>
    %cst_15 = arith.constant 0.00999999977 : f32
    %25 = vector.broadcast %cst_15 : f32 to vector<8x8x128xf32>
    %26 = arith.mulf %25, %22 : vector<8x8x128xf32>
    %27 = arith.select %24, %22, %26 : vector<8x8x128xi1>, vector<8x8x128xf32>
    %c0_16 = arith.constant 0 : index
    %c0_17 = arith.constant 0 : index
    %c0_18 = arith.constant 0 : index
    %c0_19 = arith.constant 0 : index
    %28 = vector.load %arg7[%c0_16, %c0_17, %c0_18, %c0_19] : memref<1x8x8x128xf32, #tpu.memory_space<vmem>>, vector<1x8x8x128xf32>
    %29 = vector.shape_cast %28 : vector<1x8x8x128xf32> to vector<8x8x128xf32>
    %30 = vector.shape_cast %27 : vector<8x8x128xf32> to vector<1x8x8x128xf32>
    tpu.vector_store %arg7[%c0_16, %c0_17, %c0_18, %c0_19], %30 {strides = array<i32>} : memref<1x8x8x128xf32, #tpu.memory_space<vmem>>, vector<1x8x8x128xf32>,
    return
  }
  func.func @transform_0(%arg0: i32) -> (i32, i32, i32, i32) {
    %c0_i32 = arith.constant 0 : i32
    %c0_i32_0 = arith.constant 0 : i32
    %c0_i32_1 = arith.constant 0 : i32
    %c0_i32_2 = arith.constant 0 : i32
    return %arg0, %c0_i32, %c0_i32_0, %c0_i32_1 : i32, i32, i32, i32
  }
  func.func @transform_1(%arg0: i32) -> (i32, i32) {
    %c0_i32 = arith.constant 0 : i32
    %c0_i32_0 = arith.constant 0 : i32
    %c0_i32_1 = arith.constant 0 : i32
    return %c0_i32, %c0_i32_0 : i32, i32
  }
  func.func @transform_2(%arg0: i32) -> (i32, i32) {
    %c0_i32 = arith.constant 0 : i32
    %c0_i32_0 = arith.constant 0 : i32
    %c0_i32_1 = arith.constant 0 : i32
    return %c0_i32, %c0_i32_0 : i32, i32
  }
  func.func @transform_3(%arg0: i32) -> (i32, i32, i32, i32) {
    %c0_i32 = arith.constant 0 : i32
    %c0_i32_0 = arith.constant 0 : i32
    %c0_i32_1 = arith.constant 0 : i32
    %c0_i32_2 = arith.constant 0 : i32
    return %arg0, %c0_i32, %c0_i32_0, %c0_i32_1 : i32, i32, i32, i32
  }
  func.func @transform_4(%arg0: i32) -> (i32, i32) {
    %c0_i32 = arith.constant 0 : i32
    %c0_i32_0 = arith.constant 0 : i32
    %c0_i32_1 = arith.constant 0 : i32
    return %c0_i32, %c0_i32_0 : i32, i32
  }
  func.func @transform_5(%arg0: i32) -> (i32, i32) {
    %c0_i32 = arith.constant 0 : i32
    %c0_i32_0 = arith.constant 0 : i32
    %c0_i32_1 = arith.constant 0 : i32
    return %c0_i32, %c0_i32_0 : i32, i32
  }
  func.func @transform_6(%arg0: i32) -> (i32, i32, i32, i32) {
    %c0_i32 = arith.constant 0 : i32
    %c0_i32_0 = arith.constant 0 : i32
    %c0_i32_1 = arith.constant 0 : i32
    %c0_i32_2 = arith.constant 0 : i32
    return %arg0, %c0_i32, %c0_i32_0, %c0_i32_1 : i32, i32, i32, i32
  }
}

module attributes {stable_mosaic.version = 11 : i64} {
  func.func @kernel(%arg0: i32, %arg1: memref<1x8x8x128xbf16, #tpu.memory_space<vmem>>, %arg2: memref<1x128xf32, #tpu.memory_space<vmem>>, %arg3: memref<1x128xf32, #tpu.memory_space<vmem>>, %arg4: memref<9x128x128xbf16, #tpu.memory_space<vmem>>, %arg5: memref<1x8x8x128xbf16, #tpu.memory_space<vmem>>, %arg6: memref<1x8x128xf32, #tpu.memory_space<vmem>>, %arg7: memref<10x10x128xbf16, #tpu.memory_space<vmem>>) attributes {dimension_semantics = [#tpu.dimension_semantics<parallel>], iteration_bounds = array<i64: 2>, scalar_prefetch = 0 : i64, scratch_operands = 1 : i64, tpu.core_type = #tpu.core_type<tc>, window_params = [{transform_indices = @transform_0, window_bounds = array<i64: 1, 8, 8, 128>}, {pipeline_mode = #tpu.pipeline_mode<synchronous>, transform_indices = @transform_1, window_bounds = array<i64: 1, 128>}, {pipeline_mode = #tpu.pipeline_mode<synchronous>, transform_indices = @transform_2, window_bounds = array<i64: 1, 128>}, {pipeline_mode = #tpu.pipeline_mode<synchronous>, transform_indices = @transform_3, window_bounds = array<i64: 9, 128, 128>}, {transform_indices = @transform_4, window_bounds = array<i64: 1, 8, 8, 128>}, {transform_indices = @transform_5, window_bounds = array<i64: 1, 8, 128>}]} {
    %c0 = arith.constant 0 : index
    %c0_0 = arith.constant 0 : index
    %c0_1 = arith.constant 0 : index
    %c0_2 = arith.constant 0 : index
    %0 = vector.load %arg1[%c0, %c0_0, %c0_1, %c0_2] : memref<1x8x8x128xbf16, #tpu.memory_space<vmem>>, vector<1x8x8x128xbf16>
    %1 = vector.shape_cast %0 : vector<1x8x8x128xbf16> to vector<8x8x128xbf16>
    %2 = arith.extf %1 : vector<8x8x128xbf16> to vector<8x8x128xf32>
    %c0_3 = arith.constant 0 : index
    %c0_4 = arith.constant 0 : index
    %3 = vector.load %arg2[%c0_3, %c0_4] : memref<1x128xf32, #tpu.memory_space<vmem>>, vector<1x128xf32>
    %4 = vector.shape_cast %3 : vector<1x128xf32> to vector<1x1x128xf32>
    %5 = vector.broadcast %4 : vector<1x1x128xf32> to vector<8x8x128xf32>
    %6 = arith.mulf %2, %5 : vector<8x8x128xf32>
    %c0_5 = arith.constant 0 : index
    %c0_6 = arith.constant 0 : index
    %7 = vector.load %arg3[%c0_5, %c0_6] : memref<1x128xf32, #tpu.memory_space<vmem>>, vector<1x128xf32>
    %8 = vector.shape_cast %7 : vector<1x128xf32> to vector<1x1x128xf32>
    %9 = vector.broadcast %8 : vector<1x1x128xf32> to vector<8x8x128xf32>
    %10 = arith.addf %6, %9 : vector<8x8x128xf32>
    %cst = arith.constant 0.000000e+00 : f32
    %11 = vector.broadcast %cst : f32 to vector<8x8x128xf32>
    %12 = arith.cmpf ogt, %10, %11 : vector<8x8x128xf32>
    %cst_7 = arith.constant 0.00999999977 : f32
    %13 = vector.broadcast %cst_7 : f32 to vector<8x8x128xf32>
    %14 = arith.mulf %13, %10 : vector<8x8x128xf32>
    %15 = arith.select %12, %10, %14 : vector<8x8x128xi1>, vector<8x8x128xf32>
    %cst_8 = arith.constant 0.000000e+00 : bf16
    %16 = vector.broadcast %cst_8 : bf16 to vector<10x10x128xbf16>
    %c0_9 = arith.constant 0 : index
    %c0_10 = arith.constant 0 : index
    %c0_11 = arith.constant 0 : index
    %17 = vector.load %arg7[%c0_9, %c0_10, %c0_11] : memref<10x10x128xbf16, #tpu.memory_space<vmem>>, vector<10x10x128xbf16>
    tpu.vector_store %arg7[%c0_9, %c0_10, %c0_11], %16 {strides = array<i32>} : memref<10x10x128xbf16, #tpu.memory_space<vmem>>, vector<10x10x128xbf16>,
    %18 = arith.truncf %15 : vector<8x8x128xf32> to vector<8x8x128xbf16>
    %c1 = arith.constant 1 : index
    %c1_12 = arith.constant 1 : index
    %c0_13 = arith.constant 0 : index
    %19 = vector.load %arg7[%c1, %c1_12, %c0_13] : memref<10x10x128xbf16, #tpu.memory_space<vmem>>, vector<8x8x128xbf16>
    tpu.vector_store %arg7[%c1, %c1_12, %c0_13], %18 {strides = array<i32>} : memref<10x10x128xbf16, #tpu.memory_space<vmem>>, vector<8x8x128xbf16>,
    %cst_14 = arith.constant 0.000000e+00 : f32
    %20 = vector.broadcast %cst_14 : f32 to vector<64x128xf32>
    %c0_15 = arith.constant 0 : index
    %c0_16 = arith.constant 0 : index
    %c0_17 = arith.constant 0 : index
    %21 = vector.load %arg7[%c0_15, %c0_16, %c0_17] : memref<10x10x128xbf16, #tpu.memory_space<vmem>>, vector<8x8x128xbf16>
    %22 = vector.shape_cast %21 : vector<8x8x128xbf16> to vector<64x128xbf16>
    %c0_18 = arith.constant 0 : index
    %c0_19 = arith.constant 0 : index
    %c0_20 = arith.constant 0 : index
    %23 = vector.load %arg4[%c0_18, %c0_19, %c0_20] : memref<9x128x128xbf16, #tpu.memory_space<vmem>>, vector<1x128x128xbf16>
    %24 = vector.shape_cast %23 : vector<1x128x128xbf16> to vector<128x128xbf16>
    %cst_21 = arith.constant dense<0.000000e+00> : vector<64x128xf32>
    %25 = tpu.matmul %22, %24, %cst_21 {dimension_numbers = #tpu.dot_dimension_numbers<[1], [0], [0], [1], [0, 0, 1, 1], [], []>} : vector<64x128xbf16>, vector<128x128xbf16>, vector<64x128xf32> -> vector<64x128xf32>
    %26 = arith.addf %20, %25 : vector<64x128xf32>
    %c0_22 = arith.constant 0 : index
    %c1_23 = arith.constant 1 : index
    %c0_24 = arith.constant 0 : index
    %27 = vector.load %arg7[%c0_22, %c1_23, %c0_24] : memref<10x10x128xbf16, #tpu.memory_space<vmem>>, vector<8x8x128xbf16>
    %28 = vector.shape_cast %27 : vector<8x8x128xbf16> to vector<64x128xbf16>
    %c1_25 = arith.constant 1 : index
    %c0_26 = arith.constant 0 : index
    %c0_27 = arith.constant 0 : index
    %29 = vector.load %arg4[%c1_25, %c0_26, %c0_27] : memref<9x128x128xbf16, #tpu.memory_space<vmem>>, vector<1x128x128xbf16>
    %30 = vector.shape_cast %29 : vector<1x128x128xbf16> to vector<128x128xbf16>
    %cst_28 = arith.constant dense<0.000000e+00> : vector<64x128xf32>
    %31 = tpu.matmul %28, %30, %cst_28 {dimension_numbers = #tpu.dot_dimension_numbers<[1], [0], [0], [1], [0, 0, 1, 1], [], []>} : vector<64x128xbf16>, vector<128x128xbf16>, vector<64x128xf32> -> vector<64x128xf32>
    %32 = arith.addf %26, %31 : vector<64x128xf32>
    %c0_29 = arith.constant 0 : index
    %c2 = arith.constant 2 : index
    %c0_30 = arith.constant 0 : index
    %33 = vector.load %arg7[%c0_29, %c2, %c0_30] : memref<10x10x128xbf16, #tpu.memory_space<vmem>>, vector<8x8x128xbf16>
    %34 = vector.shape_cast %33 : vector<8x8x128xbf16> to vector<64x128xbf16>
    %c2_31 = arith.constant 2 : index
    %c0_32 = arith.constant 0 : index
    %c0_33 = arith.constant 0 : index
    %35 = vector.load %arg4[%c2_31, %c0_32, %c0_33] : memref<9x128x128xbf16, #tpu.memory_space<vmem>>, vector<1x128x128xbf16>
    %36 = vector.shape_cast %35 : vector<1x128x128xbf16> to vector<128x128xbf16>
    %cst_34 = arith.constant dense<0.000000e+00> : vector<64x128xf32>
    %37 = tpu.matmul %34, %36, %cst_34 {dimension_numbers = #tpu.dot_dimension_numbers<[1], [0], [0], [1], [0, 0, 1, 1], [], []>} : vector<64x128xbf16>, vector<128x128xbf16>, vector<64x128xf32> -> vector<64x128xf32>
    %38 = arith.addf %32, %37 : vector<64x128xf32>
    %c1_35 = arith.constant 1 : index
    %c0_36 = arith.constant 0 : index
    %c0_37 = arith.constant 0 : index
    %39 = vector.load %arg7[%c1_35, %c0_36, %c0_37] : memref<10x10x128xbf16, #tpu.memory_space<vmem>>, vector<8x8x128xbf16>
    %40 = vector.shape_cast %39 : vector<8x8x128xbf16> to vector<64x128xbf16>
    %c3 = arith.constant 3 : index
    %c0_38 = arith.constant 0 : index
    %c0_39 = arith.constant 0 : index
    %41 = vector.load %arg4[%c3, %c0_38, %c0_39] : memref<9x128x128xbf16, #tpu.memory_space<vmem>>, vector<1x128x128xbf16>
    %42 = vector.shape_cast %41 : vector<1x128x128xbf16> to vector<128x128xbf16>
    %cst_40 = arith.constant dense<0.000000e+00> : vector<64x128xf32>
    %43 = tpu.matmul %40, %42, %cst_40 {dimension_numbers = #tpu.dot_dimension_numbers<[1], [0], [0], [1], [0, 0, 1, 1], [], []>} : vector<64x128xbf16>, vector<128x128xbf16>, vector<64x128xf32> -> vector<64x128xf32>
    %44 = arith.addf %38, %43 : vector<64x128xf32>
    %c1_41 = arith.constant 1 : index
    %c1_42 = arith.constant 1 : index
    %c0_43 = arith.constant 0 : index
    %45 = vector.load %arg7[%c1_41, %c1_42, %c0_43] : memref<10x10x128xbf16, #tpu.memory_space<vmem>>, vector<8x8x128xbf16>
    %46 = vector.shape_cast %45 : vector<8x8x128xbf16> to vector<64x128xbf16>
    %c4 = arith.constant 4 : index
    %c0_44 = arith.constant 0 : index
    %c0_45 = arith.constant 0 : index
    %47 = vector.load %arg4[%c4, %c0_44, %c0_45] : memref<9x128x128xbf16, #tpu.memory_space<vmem>>, vector<1x128x128xbf16>
    %48 = vector.shape_cast %47 : vector<1x128x128xbf16> to vector<128x128xbf16>
    %cst_46 = arith.constant dense<0.000000e+00> : vector<64x128xf32>
    %49 = tpu.matmul %46, %48, %cst_46 {dimension_numbers = #tpu.dot_dimension_numbers<[1], [0], [0], [1], [0, 0, 1, 1], [], []>} : vector<64x128xbf16>, vector<128x128xbf16>, vector<64x128xf32> -> vector<64x128xf32>
    %50 = arith.addf %44, %49 : vector<64x128xf32>
    %c1_47 = arith.constant 1 : index
    %c2_48 = arith.constant 2 : index
    %c0_49 = arith.constant 0 : index
    %51 = vector.load %arg7[%c1_47, %c2_48, %c0_49] : memref<10x10x128xbf16, #tpu.memory_space<vmem>>, vector<8x8x128xbf16>
    %52 = vector.shape_cast %51 : vector<8x8x128xbf16> to vector<64x128xbf16>
    %c5 = arith.constant 5 : index
    %c0_50 = arith.constant 0 : index
    %c0_51 = arith.constant 0 : index
    %53 = vector.load %arg4[%c5, %c0_50, %c0_51] : memref<9x128x128xbf16, #tpu.memory_space<vmem>>, vector<1x128x128xbf16>
    %54 = vector.shape_cast %53 : vector<1x128x128xbf16> to vector<128x128xbf16>
    %cst_52 = arith.constant dense<0.000000e+00> : vector<64x128xf32>
    %55 = tpu.matmul %52, %54, %cst_52 {dimension_numbers = #tpu.dot_dimension_numbers<[1], [0], [0], [1], [0, 0, 1, 1], [], []>} : vector<64x128xbf16>, vector<128x128xbf16>, vector<64x128xf32> -> vector<64x128xf32>
    %56 = arith.addf %50, %55 : vector<64x128xf32>
    %c2_53 = arith.constant 2 : index
    %c0_54 = arith.constant 0 : index
    %c0_55 = arith.constant 0 : index
    %57 = vector.load %arg7[%c2_53, %c0_54, %c0_55] : memref<10x10x128xbf16, #tpu.memory_space<vmem>>, vector<8x8x128xbf16>
    %58 = vector.shape_cast %57 : vector<8x8x128xbf16> to vector<64x128xbf16>
    %c6 = arith.constant 6 : index
    %c0_56 = arith.constant 0 : index
    %c0_57 = arith.constant 0 : index
    %59 = vector.load %arg4[%c6, %c0_56, %c0_57] : memref<9x128x128xbf16, #tpu.memory_space<vmem>>, vector<1x128x128xbf16>
    %60 = vector.shape_cast %59 : vector<1x128x128xbf16> to vector<128x128xbf16>
    %cst_58 = arith.constant dense<0.000000e+00> : vector<64x128xf32>
    %61 = tpu.matmul %58, %60, %cst_58 {dimension_numbers = #tpu.dot_dimension_numbers<[1], [0], [0], [1], [0, 0, 1, 1], [], []>} : vector<64x128xbf16>, vector<128x128xbf16>, vector<64x128xf32> -> vector<64x128xf32>
    %62 = arith.addf %56, %61 : vector<64x128xf32>
    %c2_59 = arith.constant 2 : index
    %c1_60 = arith.constant 1 : index
    %c0_61 = arith.constant 0 : index
    %63 = vector.load %arg7[%c2_59, %c1_60, %c0_61] : memref<10x10x128xbf16, #tpu.memory_space<vmem>>, vector<8x8x128xbf16>
    %64 = vector.shape_cast %63 : vector<8x8x128xbf16> to vector<64x128xbf16>
    %c7 = arith.constant 7 : index
    %c0_62 = arith.constant 0 : index
    %c0_63 = arith.constant 0 : index
    %65 = vector.load %arg4[%c7, %c0_62, %c0_63] : memref<9x128x128xbf16, #tpu.memory_space<vmem>>, vector<1x128x128xbf16>
    %66 = vector.shape_cast %65 : vector<1x128x128xbf16> to vector<128x128xbf16>
    %cst_64 = arith.constant dense<0.000000e+00> : vector<64x128xf32>
    %67 = tpu.matmul %64, %66, %cst_64 {dimension_numbers = #tpu.dot_dimension_numbers<[1], [0], [0], [1], [0, 0, 1, 1], [], []>} : vector<64x128xbf16>, vector<128x128xbf16>, vector<64x128xf32> -> vector<64x128xf32>
    %68 = arith.addf %62, %67 : vector<64x128xf32>
    %c2_65 = arith.constant 2 : index
    %c2_66 = arith.constant 2 : index
    %c0_67 = arith.constant 0 : index
    %69 = vector.load %arg7[%c2_65, %c2_66, %c0_67] : memref<10x10x128xbf16, #tpu.memory_space<vmem>>, vector<8x8x128xbf16>
    %70 = vector.shape_cast %69 : vector<8x8x128xbf16> to vector<64x128xbf16>
    %c8 = arith.constant 8 : index
    %c0_68 = arith.constant 0 : index
    %c0_69 = arith.constant 0 : index
    %71 = vector.load %arg4[%c8, %c0_68, %c0_69] : memref<9x128x128xbf16, #tpu.memory_space<vmem>>, vector<1x128x128xbf16>
    %72 = vector.shape_cast %71 : vector<1x128x128xbf16> to vector<128x128xbf16>
    %cst_70 = arith.constant dense<0.000000e+00> : vector<64x128xf32>
    %73 = tpu.matmul %70, %72, %cst_70 {dimension_numbers = #tpu.dot_dimension_numbers<[1], [0], [0], [1], [0, 0, 1, 1], [], []>} : vector<64x128xbf16>, vector<128x128xbf16>, vector<64x128xf32> -> vector<64x128xf32>
    %74 = arith.addf %68, %73 : vector<64x128xf32>
    %75 = vector.shape_cast %74 : vector<64x128xf32> to vector<8x8x128xf32>
    %76 = arith.truncf %75 : vector<8x8x128xf32> to vector<8x8x128xbf16>
    %c0_71 = arith.constant 0 : index
    %c0_72 = arith.constant 0 : index
    %c0_73 = arith.constant 0 : index
    %c0_74 = arith.constant 0 : index
    %77 = vector.load %arg5[%c0_71, %c0_72, %c0_73, %c0_74] : memref<1x8x8x128xbf16, #tpu.memory_space<vmem>>, vector<1x8x8x128xbf16>
    %78 = vector.shape_cast %77 : vector<1x8x8x128xbf16> to vector<8x8x128xbf16>
    %79 = vector.shape_cast %76 : vector<8x8x128xbf16> to vector<1x8x8x128xbf16>
    tpu.vector_store %arg5[%c0_71, %c0_72, %c0_73, %c0_74], %79 {strides = array<i32>} : memref<1x8x8x128xbf16, #tpu.memory_space<vmem>>, vector<1x8x8x128xbf16>,
    %cst_75 = arith.constant 0.000000e+00 : f32
    %80 = vector.broadcast %cst_75 : f32 to vector<1x128xf32>
    %cst_76 = arith.constant dense<0.000000e+00> : vector<128xf32>
    %81 = vector.multi_reduction <add>, %74, %cst_76 [0] : vector<64x128xf32> to vector<128xf32>
    %82 = vector.shape_cast %81 : vector<128xf32> to vector<1x128xf32>
    %83 = arith.mulf %74, %74 : vector<64x128xf32>
    %cst_77 = arith.constant dense<0.000000e+00> : vector<128xf32>
    %84 = vector.multi_reduction <add>, %83, %cst_77 [0] : vector<64x128xf32> to vector<128xf32>
    %85 = vector.shape_cast %84 : vector<128xf32> to vector<1x128xf32>
    %86 = tpu.concatenate %82, %85, %80, %80, %80, %80, %80, %80 in 0 : vector<1x128xf32>, vector<1x128xf32>, vector<1x128xf32>, vector<1x128xf32>, vector<1x128xf32>, vector<1x128xf32>, vector<1x128xf32>, vector<1x128xf32> -> vector<8x128xf32>
    %c0_78 = arith.constant 0 : index
    %c0_79 = arith.constant 0 : index
    %c0_80 = arith.constant 0 : index
    %87 = vector.load %arg6[%c0_78, %c0_79, %c0_80] : memref<1x8x128xf32, #tpu.memory_space<vmem>>, vector<1x8x128xf32>
    %88 = vector.shape_cast %87 : vector<1x8x128xf32> to vector<8x128xf32>
    %89 = vector.shape_cast %86 : vector<8x128xf32> to vector<1x8x128xf32>
    tpu.vector_store %arg6[%c0_78, %c0_79, %c0_80], %89 {strides = array<i32>} : memref<1x8x128xf32, #tpu.memory_space<vmem>>, vector<1x8x128xf32>,
    return
  }
  func.func @transform_0(%arg0: i32) -> (i32, i32, i32, i32) {
    %c0_i32 = arith.constant 0 : i32
    %c0_i32_0 = arith.constant 0 : i32
    %c0_i32_1 = arith.constant 0 : i32
    %c0_i32_2 = arith.constant 0 : i32
    return %arg0, %c0_i32, %c0_i32_0, %c0_i32_1 : i32, i32, i32, i32
  }
  func.func @transform_1(%arg0: i32) -> (i32, i32) {
    %c0_i32 = arith.constant 0 : i32
    %c0_i32_0 = arith.constant 0 : i32
    %c0_i32_1 = arith.constant 0 : i32
    return %c0_i32, %c0_i32_0 : i32, i32
  }
  func.func @transform_2(%arg0: i32) -> (i32, i32) {
    %c0_i32 = arith.constant 0 : i32
    %c0_i32_0 = arith.constant 0 : i32
    %c0_i32_1 = arith.constant 0 : i32
    return %c0_i32, %c0_i32_0 : i32, i32
  }
  func.func @transform_3(%arg0: i32) -> (i32, i32, i32) {
    %c0_i32 = arith.constant 0 : i32
    %c0_i32_0 = arith.constant 0 : i32
    %c0_i32_1 = arith.constant 0 : i32
    %c0_i32_2 = arith.constant 0 : i32
    return %c0_i32, %c0_i32_0, %c0_i32_1 : i32, i32, i32
  }
  func.func @transform_4(%arg0: i32) -> (i32, i32, i32, i32) {
    %c0_i32 = arith.constant 0 : i32
    %c0_i32_0 = arith.constant 0 : i32
    %c0_i32_1 = arith.constant 0 : i32
    %c0_i32_2 = arith.constant 0 : i32
    return %arg0, %c0_i32, %c0_i32_0, %c0_i32_1 : i32, i32, i32, i32
  }
  func.func @transform_5(%arg0: i32) -> (i32, i32, i32) {
    %c0_i32 = arith.constant 0 : i32
    %c0_i32_0 = arith.constant 0 : i32
    %c0_i32_1 = arith.constant 0 : i32
    return %arg0, %c0_i32, %c0_i32_0 : i32, i32, i32
  }
}

</mosaic_0001>

<llo_original>
// kernel: basic_block_forward.5
$region0: #{basic_block_forward.5}
  #allocation0 [shape = 'u32[]', space=smem, size = 0x4, offset = 0x4, fixed_abs, tag = 'smem constant byte address 0x4 - core index']
  #allocation1 [shape = 'u32[72,128]{1,0:T(1,128)}', space=vmem, size = 0x9000, scoped, tag = 'internal scratch']
  %s0 = inlined_call_operand.vmem [shape: bf16[2,8,8,128], index: 0, kind: input, shape index: {}]
  %s1 = inlined_call_operand.vmem [shape: f32[1,128], index: 1, kind: input, shape index: {}]
  %s2 = inlined_call_operand.vmem [shape: f32[1,128], index: 2, kind: input, shape index: {}]
  %s3 = inlined_call_operand.vmem [shape: bf16[2,8,8,128], index: 3, kind: input, shape index: {}]
  %s4 = inlined_call_operand.vmem [shape: f32[1,128], index: 4, kind: input, shape index: {}]
  %s5 = inlined_call_operand.vmem [shape: f32[1,128], index: 5, kind: input, shape index: {}]
  %s6 = inlined_call_operand.vmem [shape: f32[2,8,8,128], index: 6, kind: output, shape index: {}]
  %s7 = sld [smem:[#allocation0]]
  $region57: #{basic_block_forward.5} parent=0
    _
  %s9 = ssub.s32 1, %s7
  %s10 = scalar_select 0, %s9, %s7
  loop: start=0, step=1, limit=4
  $region2: #{basic_block_forward.5} parent=0 // loop_pre_header
    _
  $region3: #{basic_block_forward.5} parent=0 // loop_header
    %s12 = sphi 0, %s16
    %p13 = scmp.ge.s32.totalorder %s12, 4
    %s22 = sphi 0, %s24
    %s25 = sphi 0, %s22
    %s26 = sphi 0, %s25
    %s42 = sphi 0, %s26
    %s46 = sphi 0, %s46
    %s48 = sphi 0, %s46
    %s49 = sphi 0, %s48
    %s63 = sphi 0, %s49
    %s67 = sphi 0, %s67
    %s69 = sphi 0, %s67
    %s70 = sphi 0, %s69
    %s84 = sphi 0, %s70
    %s90 = sphi 0, %s92
    %s93 = sphi 0, %s90
    %s94 = sphi 0, %s93
    %s110 = sphi 0, %s94
    %s114 = sphi 0, %s114
    %s116 = sphi 0, %s114
    %s117 = sphi 0, %s116
    %s131 = sphi 0, %s117
    %s135 = sphi 0, %s135
    %s137 = sphi 0, %s135
    %s138 = sphi 0, %s137
    %s152 = sphi 0, %s138
    %s158 = sphi 0, %s160
    %s161 = sphi 0, %s158
    %s162 = sphi 0, %s161
    %s178 = sphi 0, %s162
  $region4: #{basic_block_forward.5} parent=0 // loop_header_branch
    %15 = sbr.rel (%p13) target = $region8
  $region5: #{basic_block_forward.5} parent=0 // loop_body
    %s17 = ssub.s32 %s12, 1
    %s18 = ssub.s32 %s12, 2
    %s19 = sadd.s32 %s12, 1
    %s20 = ssub.s32 %s12, %s19
    %p21 = scmp.eq.s32.totalorder %s20, 0
    %s23 = sadd.s32 %s22, 1
    %s24 = scalar_select %p21, %s22, %s23
    %p27 = pneg %p21
    %p28 = scmp.eq.s32.totalorder %s12, 1
    %p29 = por %p27, %p28
    %p30 = scmp.ne.s32.totalorder %s22, %s25
    %p31 = scmp.eq.s32.totalorder %s12, 0
    %p32 = por %p30, %p31
    %p33 = scmp.ne.s32.totalorder %s22, %s25
    %p34 = scmp.eq.s32.totalorder %s17, 1
    %p35 = por %p33, %p34
    %p36 = scmp.ne.s32.totalorder %s25, %s26
    %p37 = scmp.eq.s32.totalorder %s17, 0
    %p38 = por %p36, %p37
    %p39 = scmp.ne.s32.totalorder %s25, %s26
    %p40 = scmp.eq.s32.totalorder %s18, 1
    %p41 = por %p39, %p40
    %p43 = scmp.ne.s32.totalorder %s26, %s42
    %p44 = scmp.eq.s32.totalorder %s18, 0
    %p45 = por %p43, %p44
    %s47 = sadd.s32 %s46, 1
    %p50 = scmp.eq.s32.totalorder %s12, 1
    %p51 = scmp.ne.s32.totalorder %s46, %s48
    %p52 = scmp.eq.s32.totalorder %s12, 0
    %p53 = por %p51, %p52
    %p54 = scmp.ne.s32.totalorder %s46, %s48
    %p55 = scmp.eq.s32.totalorder %s17, 1
    %p56 = por %p54, %p55
    %p57 = scmp.ne.s32.totalorder %s48, %s49
    %p58 = scmp.eq.s32.totalorder %s17, 0
    %p59 = por %p57, %p58
    %p60 = scmp.ne.s32.totalorder %s48, %s49
    %p61 = scmp.eq.s32.totalorder %s18, 1
    %p62 = por %p60, %p61
    %p64 = scmp.ne.s32.totalorder %s49, %s63
    %p65 = scmp.eq.s32.totalorder %s18, 0
    %p66 = por %p64, %p65
    %s68 = sadd.s32 %s67, 1
    %p71 = scmp.eq.s32.totalorder %s12, 1
    %p72 = scmp.ne.s32.totalorder %s67, %s69
    %p73 = scmp.eq.s32.totalorder %s12, 0
    %p74 = por %p72, %p73
    %p75 = scmp.ne.s32.totalorder %s67, %s69
    %p76 = scmp.eq.s32.totalorder %s17, 1
    %p77 = por %p75, %p76
    %p78 = scmp.ne.s32.totalorder %s69, %s70
    %p79 = scmp.eq.s32.totalorder %s17, 0
    %p80 = por %p78, %p79
    %p81 = scmp.ne.s32.totalorder %s69, %s70
    %p82 = scmp.eq.s32.totalorder %s18, 1
    %p83 = por %p81, %p82
    %p85 = scmp.ne.s32.totalorder %s70, %s84
    %p86 = scmp.eq.s32.totalorder %s18, 0
    %p87 = por %p85, %p86
    %s88 = ssub.s32 %s12, %s19
    %p89 = scmp.eq.s32.totalorder %s88, 0
    %s91 = sadd.s32 %s90, 1
    %s92 = scalar_select %p89, %s90, %s91
    %p95 = pneg %p89
    %p96 = scmp.eq.s32.totalorder %s12, 1
    %p97 = por %p95, %p96
    %p98 = scmp.ne.s32.totalorder %s90, %s93
    %p99 = scmp.eq.s32.totalorder %s12, 0
    %p100 = por %p98, %p99
    %p101 = scmp.ne.s32.totalorder %s90, %s93
    %p102 = scmp.eq.s32.totalorder %s17, 1
    %p103 = por %p101, %p102
    %p104 = scmp.ne.s32.totalorder %s93, %s94
    %p105 = scmp.eq.s32.totalorder %s17, 0
    %p106 = por %p104, %p105
    %p107 = scmp.ne.s32.totalorder %s93, %s94
    %p108 = scmp.eq.s32.totalorder %s18, 1
    %p109 = por %p107, %p108
    %p111 = scmp.ne.s32.totalorder %s94, %s110
    %p112 = scmp.eq.s32.totalorder %s18, 0
    %p113 = por %p111, %p112
    %s115 = sadd.s32 %s114, 1
    %p118 = scmp.eq.s32.totalorder %s12, 1
    %p119 = scmp.ne.s32.totalorder %s114, %s116
    %p120 = scmp.eq.s32.totalorder %s12, 0
    %p121 = por %p119, %p120
    %p122 = scmp.ne.s32.totalorder %s114, %s116
    %p123 = scmp.eq.s32.totalorder %s17, 1
    %p124 = por %p122, %p123
    %p125 = scmp.ne.s32.totalorder %s116, %s117
    %p126 = scmp.eq.s32.totalorder %s17, 0
    %p127 = por %p125, %p126
    %p128 = scmp.ne.s32.totalorder %s116, %s117
    %p129 = scmp.eq.s32.totalorder %s18, 1
    %p130 = por %p128, %p129
    %p132 = scmp.ne.s32.totalorder %s117, %s131
    %p133 = scmp.eq.s32.totalorder %s18, 0
    %p134 = por %p132, %p133
    %s136 = sadd.s32 %s135, 1
    %p139 = scmp.eq.s32.totalorder %s12, 1
    %p140 = scmp.ne.s32.totalorder %s135, %s137
    %p141 = scmp.eq.s32.totalorder %s12, 0
    %p142 = por %p140, %p141
    %p143 = scmp.ne.s32.totalorder %s135, %s137
    %p144 = scmp.eq.s32.totalorder %s17, 1
    %p145 = por %p143, %p144
    %p146 = scmp.ne.s32.totalorder %s137, %s138
    %p147 = scmp.eq.s32.totalorder %s17, 0
    %p148 = por %p146, %p147
    %p149 = scmp.ne.s32.totalorder %s137, %s138
    %p150 = scmp.eq.s32.totalorder %s18, 1
    %p151 = por %p149, %p150
    %p153 = scmp.ne.s32.totalorder %s138, %s152
    %p154 = scmp.eq.s32.totalorder %s18, 0
    %p155 = por %p153, %p154
    %s156 = ssub.s32 %s12, %s19
    %p157 = scmp.eq.s32.totalorder %s156, 0
    %s159 = sadd.s32 %s158, 1
    %s160 = scalar_select %p157, %s158, %s159
    %p163 = pneg %p157
    %p164 = scmp.eq.s32.totalorder %s12, 1
    %p165 = por %p163, %p164
    %p166 = scmp.ne.s32.totalorder %s158, %s161
    %p167 = scmp.eq.s32.totalorder %s12, 0
    %p168 = por %p166, %p167
    %p169 = scmp.ne.s32.totalorder %s158, %s161
    %p170 = scmp.eq.s32.totalorder %s17, 1
    %p171 = por %p169, %p170
    %p172 = scmp.ne.s32.totalorder %s161, %s162
    %p173 = scmp.eq.s32.totalorder %s17, 0
    %p174 = por %p172, %p173
    %p175 = scmp.ne.s32.totalorder %s161, %s162
    %p176 = scmp.eq.s32.totalorder %s18, 1
    %p177 = por %p175, %p176
    %p179 = scmp.ne.s32.totalorder %s162, %s178
    %p180 = scmp.eq.s32.totalorder %s18, 0
    %p181 = por %p179, %p180
    %p182 = scmp.le.s32.totalorder 1, %s12
    %p183 = scmp.lt.s32.totalorder %s12, 3
    %p184 = pnand %p182, %p183
    %p185 = pneg %p184
    // Predicated region
    $region9: #{basic_block_forward.5} parent=5 // pred_check
      _
    $region10: #{basic_block_forward.5} parent=5 // pred_check_branch
      %187 = sbr.rel (%p184) target = $region12
    $region11: #{basic_block_forward.5} parent=5 // pred_region
      %s188 = ssub.s32 %s12, 1
      // Predicated region
      $region13: #{basic_block_forward.5} parent=11 // pred_check
        %p189 = pneg %p59
      $region14: #{basic_block_forward.5} parent=11 // pred_check_branch
        %191 = sbr.rel (%p189) target = $region16
      $region15: #{basic_block_forward.5} parent=11 // pred_region
        _
      $region16: #{basic_block_forward.5} parent=11 // pred_fallthru
        _
      // Predicated region
      $region17: #{basic_block_forward.5} parent=11 // pred_check
        %p192 = pneg %p80
      $region18: #{basic_block_forward.5} parent=11 // pred_check_branch
        %194 = sbr.rel (%p192) target = $region20
      $region19: #{basic_block_forward.5} parent=11 // pred_region
        _
      $region20: #{basic_block_forward.5} parent=11 // pred_fallthru
        _
      // Predicated region
      $region21: #{basic_block_forward.5} parent=11 // pred_check
        %p195 = pneg %p127
      $region22: #{basic_block_forward.5} parent=11 // pred_check_branch
        %197 = sbr.rel (%p195) target = $region24
      $region23: #{basic_block_forward.5} parent=11 // pred_region
        _
      $region24: #{basic_block_forward.5} parent=11 // pred_fallthru
        _
      // Predicated region
      $region25: #{basic_block_forward.5} parent=11 // pred_check
        %p198 = pneg %p148
      $region26: #{basic_block_forward.5} parent=11 // pred_check_branch
        %200 = sbr.rel (%p198) target = $region28
      $region27: #{basic_block_forward.5} parent=11 // pred_region
        _
      $region28: #{basic_block_forward.5} parent=11 // pred_fallthru
        _
    $region12: #{basic_block_forward.5} parent=5 // pred_fallthru
      _
    %p201 = scmp.lt.s32.totalorder %s12, 2
    // Predicated region
    $region29: #{basic_block_forward.5} parent=5 // pred_check
      %p202 = pneg %p201
    $region30: #{basic_block_forward.5} parent=5 // pred_check_branch
      %204 = sbr.rel (%p202) target = $region32
    $region31: #{basic_block_forward.5} parent=5 // pred_region
      // Predicated region
      $region33: #{basic_block_forward.5} parent=31 // pred_check
        %p205 = pneg %p32
      $region34: #{basic_block_forward.5} parent=31 // pred_check_branch
        %207 = sbr.rel (%p205) target = $region36
      $region35: #{basic_block_forward.5} parent=31 // pred_region
        %p208 = scmp.lt.s32.totalorder %s12, 1
        %s209 = scalar_select %p208, %s12, 1
        %s210 = smul.addr %s209, 8
        %s211 = smul.addr %s210, 4
        %s212 = scalar_lea.vmem %s0, %s211
      $region36: #{basic_block_forward.5} parent=31 // pred_fallthru
        _
      // Predicated region
      $region37: #{basic_block_forward.5} parent=31 // pred_check
        %p213 = pneg %p100
      $region38: #{basic_block_forward.5} parent=31 // pred_check_branch
        %215 = sbr.rel (%p213) target = $region40
      $region39: #{basic_block_forward.5} parent=31 // pred_region
        %p216 = scmp.lt.s32.totalorder %s12, 1
        %s217 = scalar_select %p216, %s12, 1
        %s218 = smul.addr %s217, 8
        %s219 = smul.addr %s218, 4
        %s220 = scalar_lea.vmem %s3, %s219
      $region40: #{basic_block_forward.5} parent=31 // pred_fallthru
        _
    $region32: #{basic_block_forward.5} parent=5 // pred_fallthru
      _
    %p221 = scmp.le.s32.totalorder 1, %s12
    %p222 = scmp.lt.s32.totalorder %s12, 3
    %p223 = pnand %p221, %p222
    %p224 = pneg %p223
    // Predicated region
    $region41: #{basic_block_forward.5} parent=5 // pred_check
      _
    $region42: #{basic_block_forward.5} parent=5 // pred_check_branch
      %226 = sbr.rel (%p223) target = $region44
    $region43: #{basic_block_forward.5} parent=5 // pred_region
      %s227 = ssub.s32 %s12, 1
      %p228 = scmp.lt.s32.totalorder %s17, 1
      %s229 = scalar_select %p228, %s17, 1
      %s230 = smul.addr %s229, 8
      %s231 = smul.addr %s230, 4
      %s232 = scalar_lea.vmem %s0, %s231
      %p233 = pneg %p38
      %p234 = pneg %p35
      %p235 = pneg %p59
      %p236 = pneg %p56
      %p237 = pneg %p80
      %p238 = pneg %p77
      %p239 = scmp.lt.s32.totalorder %s17, 1
      %s240 = scalar_select %p239, %s17, 1
      %s241 = smul.addr %s240, 8
      %s242 = smul.addr %s241, 4
      %s243 = scalar_lea.vmem %s3, %s242
      %p244 = pneg %p106
      %p245 = pneg %p103
      %p246 = pneg %p127
      %p247 = pneg %p124
      %p248 = pneg %p148
      %p249 = pneg %p145
      %p250 = pneg %p174
      %p251 = pneg %p171
      %p252 = scmp.lt.s32.totalorder %s17, 1
      %s253 = scalar_select %p252, %s17, 1
      %s254 = smul.addr %s253, 8
      %s255 = smul.addr %s254, 8
      %s256 = scalar_lea.vmem %s6, %s255
      %p257 = scmp.lt.s32.totalorder %s17, 1
      %s258 = scalar_select %p257, %s17, 1
      %s259 = smul.addr %s258, 8
      %s260 = smul.addr %s259, 4
      %s261 = scalar_lea.vmem %s0, %s260
      %p262 = scmp.lt.s32.totalorder %s17, 1
      %s263 = scalar_select %p262, %s17, 1
      %s264 = smul.addr %s263, 8
      %s265 = smul.addr %s264, 4
      %s266 = scalar_lea.vmem %s3, %s265
      %p267 = scmp.lt.s32.totalorder %s17, 1
      %s268 = scalar_select %p267, %s17, 1
      %s269 = smul.addr %s268, 8
      %s270 = smul.addr %s269, 8
      %s271 = scalar_lea.vmem %s6, %s270
      %v272 = vld [vmem:[%s261] sm:$0xf]
      %v273 = vld [vmem:[%s261 + $0x4] sm:$0xf]
      %v274 = vld [vmem:[%s261 + $0x8] sm:$0xf]
      %v275 = vld [vmem:[%s261 + $0xc] sm:$0xf]
      %v276 = vld [vmem:[%s261 + $0x10] sm:$0xf]
      %v277 = vld [vmem:[%s261 + $0x14] sm:$0xf]
      %v278 = vld [vmem:[%s261 + $0x18] sm:$0xf]
      %v279 = vld [vmem:[%s261 + $0x1c] sm:$0xf]
      %v280 = vunpack.c.l.bf16 %v272
      %v281 = vunpack.c.l.bf16 %v273
      %v282 = vunpack.c.l.bf16 %v274
      %v283 = vunpack.c.l.bf16 %v275
      %v284 = vunpack.c.l.bf16 %v276
      %v285 = vunpack.c.l.bf16 %v277
      %v286 = vunpack.c.l.bf16 %v278
      %v287 = vunpack.c.l.bf16 %v279
      %v288 = vld [vmem:[%s1] sm:$0x1]
      %v290 = vperm.slane %v288, 0
      %v292 = vmul.f32 %v280, %v290
      %v293 = vmul.f32 %v281, %v290
      %v294 = vmul.f32 %v282, %v290
      %v295 = vmul.f32 %v283, %v290
      %v296 = vmul.f32 %v284, %v290
      %v297 = vmul.f32 %v285, %v290
      %v298 = vmul.f32 %v286, %v290
      %v299 = vmul.f32 %v287, %v290
      %v300 = vld [vmem:[%s2] sm:$0x1]
      %v302 = vperm.slane %v300, 0
      %v304 = vadd.f32 %v292, %v302
      %v305 = vadd.f32 %v293, %v302
      %v306 = vadd.f32 %v294, %v302
      %v307 = vadd.f32 %v295, %v302
      %v308 = vadd.f32 %v296, %v302
      %v309 = vadd.f32 %v297, %v302
      %v310 = vadd.f32 %v298, %v302
      %v311 = vadd.f32 %v299, %v302
      %v312 = vld [vmem:[%s266] sm:$0xf]
      %v313 = vld [vmem:[%s266 + $0x4] sm:$0xf]
      %v314 = vld [vmem:[%s266 + $0x8] sm:$0xf]
      %v315 = vld [vmem:[%s266 + $0xc] sm:$0xf]
      %v316 = vld [vmem:[%s266 + $0x10] sm:$0xf]
      %v317 = vld [vmem:[%s266 + $0x14] sm:$0xf]
      %v318 = vld [vmem:[%s266 + $0x18] sm:$0xf]
      %v319 = vld [vmem:[%s266 + $0x1c] sm:$0xf]
      %v320 = vunpack.c.l.bf16 %v312
      %v321 = vunpack.c.l.bf16 %v313
      %v322 = vunpack.c.l.bf16 %v314
      %v323 = vunpack.c.l.bf16 %v315
      %v324 = vunpack.c.l.bf16 %v316
      %v325 = vunpack.c.l.bf16 %v317
      %v326 = vunpack.c.l.bf16 %v318
      %v327 = vunpack.c.l.bf16 %v319
      %v328 = vld [vmem:[%s4] sm:$0x1]
      %v330 = vperm.slane %v328, 0
      %v332 = vmul.f32 %v320, %v330
      %v333 = vmul.f32 %v321, %v330
      %v334 = vmul.f32 %v322, %v330
      %v335 = vmul.f32 %v323, %v330
      %v336 = vmul.f32 %v324, %v330
      %v337 = vmul.f32 %v325, %v330
      %v338 = vmul.f32 %v326, %v330
      %v339 = vmul.f32 %v327, %v330
      %v340 = vld [vmem:[%s5] sm:$0x1]
      %v342 = vperm.slane %v340, 0
      %v344 = vadd.f32 %v332, %v342
      %v345 = vadd.f32 %v333, %v342
      %v346 = vadd.f32 %v334, %v342
      %v347 = vadd.f32 %v335, %v342
      %v348 = vadd.f32 %v336, %v342
      %v349 = vadd.f32 %v337, %v342
      %v350 = vadd.f32 %v338, %v342
      %v351 = vadd.f32 %v339, %v342
      %v352 = vadd.f32 %v304, %v344
      %v353 = vadd.f32 %v305, %v345
      %v354 = vadd.f32 %v306, %v346
      %v355 = vadd.f32 %v307, %v347
      %v356 = vadd.f32 %v308, %v348
      %v357 = vadd.f32 %v309, %v349
      %v358 = vadd.f32 %v310, %v350
      %v359 = vadd.f32 %v311, %v351
      %vm360 = vcmp.gt.f32.partialorder %v352, 0.0
      %vm361 = vcmp.gt.f32.partialorder %v353, 0.0
      %vm362 = vcmp.gt.f32.partialorder %v354, 0.0
      %vm363 = vcmp.gt.f32.partialorder %v355, 0.0
      %vm364 = vcmp.gt.f32.partialorder %v356, 0.0
      %vm365 = vcmp.gt.f32.partialorder %v357, 0.0
      %vm366 = vcmp.gt.f32.partialorder %v358, 0.0
      %vm367 = vcmp.gt.f32.partialorder %v359, 0.0
      %v368 = vmul.f32 %v352, 0.01
      %v369 = vmul.f32 %v353, 0.01
      %v370 = vmul.f32 %v354, 0.01
      %v371 = vmul.f32 %v355, 0.01
      %v372 = vmul.f32 %v356, 0.01
      %v373 = vmul.f32 %v357, 0.01
      %v374 = vmul.f32 %v358, 0.01
      %v375 = vmul.f32 %v359, 0.01
      %v376 = vsel %vm360, %v352, %v368
      %v377 = vsel %vm361, %v353, %v369
      %v378 = vsel %vm362, %v354, %v370
      %v379 = vsel %vm363, %v355, %v371
      %v380 = vsel %vm364, %v356, %v372
      %v381 = vsel %vm365, %v357, %v373
      %v382 = vsel %vm366, %v358, %v374
      %v383 = vsel %vm367, %v359, %v375
      %384 = vst [vmem:[%s271] sm:$0xff] %v376
      %385 = vst [vmem:[%s271 + $0x8] sm:$0xff] %v377
      %386 = vst [vmem:[%s271 + $0x10] sm:$0xff] %v378
      %387 = vst [vmem:[%s271 + $0x18] sm:$0xff] %v379
      %388 = vst [vmem:[%s271 + $0x20] sm:$0xff] %v380
      %389 = vst [vmem:[%s271 + $0x28] sm:$0xff] %v381
      %390 = vst [vmem:[%s271 + $0x30] sm:$0xff] %v382
      %391 = vst [vmem:[%s271 + $0x38] sm:$0xff] %v383
      %p392 = scmp.lt.s32.totalorder %s17, 1
      %s393 = scalar_select %p392, %s17, 1
      %s394 = smul.addr %s393, 8
      %s395 = smul.addr %s394, 8
      %s396 = scalar_lea.vmem %s6, %s395
      // Predicated region
      $region45: #{basic_block_forward.5} parent=43 // pred_check
        %p397 = pneg %p171
      $region46: #{basic_block_forward.5} parent=43 // pred_check_branch
        %399 = sbr.rel (%p397) target = $region48
      $region47: #{basic_block_forward.5} parent=43 // pred_region
        _
      $region48: #{basic_block_forward.5} parent=43 // pred_fallthru
        _
    $region44: #{basic_block_forward.5} parent=5 // pred_fallthru
      _
    %p400 = scmp.le.s32.totalorder 2, %s12
    // Predicated region
    $region49: #{basic_block_forward.5} parent=5 // pred_check
      %p401 = pneg %p400
    $region50: #{basic_block_forward.5} parent=5 // pred_check_branch
      %403 = sbr.rel (%p401) target = $region52
    $region51: #{basic_block_forward.5} parent=5 // pred_region
      %s404 = ssub.s32 %s12, 2
      // Predicated region
      $region53: #{basic_block_forward.5} parent=51 // pred_check
        %p405 = pneg %p177
      $region54: #{basic_block_forward.5} parent=51 // pred_check_branch
        %407 = sbr.rel (%p405) target = $region56
      $region55: #{basic_block_forward.5} parent=51 // pred_region
        %p408 = scmp.lt.s32.totalorder %s18, 1
        %s409 = scalar_select %p408, %s18, 1
        %s410 = smul.addr %s409, 8
        %s411 = smul.addr %s410, 8
        %s412 = scalar_lea.vmem %s6, %s411
      $region56: #{basic_block_forward.5} parent=51 // pred_fallthru
        _
    $region52: #{basic_block_forward.5} parent=5 // pred_fallthru
      _
  $region6: #{basic_block_forward.5} parent=0 // loop_footer
    %s16 = sadd.s32 1, %s12
  $region7: #{basic_block_forward.5} parent=0 // loop_footer_branch
    %11 = sbr.rel target = $region3
  $region8: #{basic_block_forward.5} parent=0 // loop_exit
    _

// kernel: basic_block_forward.3
$region0: #{basic_block_forward.3}
  #allocation0 [shape = 'u32[]', space=smem, size = 0x4, offset = 0x4, fixed_abs, tag = 'smem constant byte address 0x4 - core index']
  #allocation1 [shape = 'u32[72,128]{1,0:T(1,128)}', space=vmem, size = 0x9000, scoped, tag = 'internal scratch']
  %s0 = inlined_call_operand.vmem [shape: bf16[2,9,9,128], index: 0, kind: input, shape index: {}]
  %s1 = inlined_call_operand.vmem [shape: bf16[2,9,9,128], index: 1, kind: input, shape index: {}]
  %s2 = inlined_call_operand.vmem [shape: bf16[2,9,9,128], index: 2, kind: input, shape index: {}]
  %s3 = inlined_call_operand.vmem [shape: bf16[2,9,9,128], index: 3, kind: input, shape index: {}]
  %s4 = inlined_call_operand.vmem [shape: bf16[9,128,128], index: 4, kind: input, shape index: {}]
  %s5 = inlined_call_operand.vmem [shape: bf16[128,128], index: 5, kind: input, shape index: {}]
  %s6 = inlined_call_operand.vmem [shape: bf16[2,8,8,128], index: 6, kind: output, shape index: {0}]
  %s7 = inlined_call_operand.vmem [shape: bf16[2,8,8,128], index: 7, kind: output, shape index: {1}]
  %s8 = inlined_call_operand.vmem [shape: f32[2,8,128], index: 8, kind: output, shape index: {2}]
  %9 = xla_tuple %s6, %s7, %s8
  %s10 = sld [smem:[#allocation0]]
  $region73: #{basic_block_forward.3} parent=0
    _
  %s12 = ssub.s32 1, %s10
  %s13 = scalar_select 0, %s12, %s10
  loop: start=0, step=1, limit=4
  $region2: #{basic_block_forward.3} parent=0 // loop_pre_header
    _
  $region3: #{basic_block_forward.3} parent=0 // loop_header
    %s15 = sphi 0, %s19
    %p16 = scmp.ge.s32.totalorder %s15, 4
    %s25 = sphi 0, %s27
    %s28 = sphi 0, %s25
    %s29 = sphi 0, %s28
    %s45 = sphi 0, %s29
    %s51 = sphi 0, %s53
    %s54 = sphi 0, %s51
    %s55 = sphi 0, %s54
    %s71 = sphi 0, %s55
    %s77 = sphi 0, %s79
    %s80 = sphi 0, %s77
    %s81 = sphi 0, %s80
    %s97 = sphi 0, %s81
    %s103 = sphi 0, %s105
    %s106 = sphi 0, %s103
    %s107 = sphi 0, %s106
    %s123 = sphi 0, %s107
    %s127 = sphi 0, %s127
    %s129 = sphi 0, %s127
    %s130 = sphi 0, %s129
    %s144 = sphi 0, %s130
    %s148 = sphi 0, %s148
    %s150 = sphi 0, %s148
    %s151 = sphi 0, %s150
    %s165 = sphi 0, %s151
    %s171 = sphi 0, %s173
    %s174 = sphi 0, %s171
    %s175 = sphi 0, %s174
    %s191 = sphi 0, %s175
    %s197 = sphi 0, %s199
    %s200 = sphi 0, %s197
    %s201 = sphi 0, %s200
    %s217 = sphi 0, %s201
    %s223 = sphi 0, %s225
    %s226 = sphi 0, %s223
    %s227 = sphi 0, %s226
    %s243 = sphi 0, %s227
  $region4: #{basic_block_forward.3} parent=0 // loop_header_branch
    %18 = sbr.rel (%p16) target = $region8
  $region5: #{basic_block_forward.3} parent=0 // loop_body
    %s20 = ssub.s32 %s15, 1
    %s21 = ssub.s32 %s15, 2
    %s22 = sadd.s32 %s15, 1
    %s23 = ssub.s32 %s15, %s22
    %p24 = scmp.eq.s32.totalorder %s23, 0
    %s26 = sadd.s32 %s25, 1
    %s27 = scalar_select %p24, %s25, %s26
    %p30 = pneg %p24
    %p31 = scmp.eq.s32.totalorder %s15, 1
    %p32 = por %p30, %p31
    %p33 = scmp.ne.s32.totalorder %s25, %s28
    %p34 = scmp.eq.s32.totalorder %s15, 0
    %p35 = por %p33, %p34
    %p36 = scmp.ne.s32.totalorder %s25, %s28
    %p37 = scmp.eq.s32.totalorder %s20, 1
    %p38 = por %p36, %p37
    %p39 = scmp.ne.s32.totalorder %s28, %s29
    %p40 = scmp.eq.s32.totalorder %s20, 0
    %p41 = por %p39, %p40
    %p42 = scmp.ne.s32.totalorder %s28, %s29
    %p43 = scmp.eq.s32.totalorder %s21, 1
    %p44 = por %p42, %p43
    %p46 = scmp.ne.s32.totalorder %s29, %s45
    %p47 = scmp.eq.s32.totalorder %s21, 0
    %p48 = por %p46, %p47
    %s49 = ssub.s32 %s15, %s22
    %p50 = scmp.eq.s32.totalorder %s49, 0
    %s52 = sadd.s32 %s51, 1
    %s53 = scalar_select %p50, %s51, %s52
    %p56 = pneg %p50
    %p57 = scmp.eq.s32.totalorder %s15, 1
    %p58 = por %p56, %p57
    %p59 = scmp.ne.s32.totalorder %s51, %s54
    %p60 = scmp.eq.s32.totalorder %s15, 0
    %p61 = por %p59, %p60
    %p62 = scmp.ne.s32.totalorder %s51, %s54
    %p63 = scmp.eq.s32.totalorder %s20, 1
    %p64 = por %p62, %p63
    %p65 = scmp.ne.s32.totalorder %s54, %s55
    %p66 = scmp.eq.s32.totalorder %s20, 0
    %p67 = por %p65, %p66
    %p68 = scmp.ne.s32.totalorder %s54, %s55
    %p69 = scmp.eq.s32.totalorder %s21, 1
    %p70 = por %p68, %p69
    %p72 = scmp.ne.s32.totalorder %s55, %s71
    %p73 = scmp.eq.s32.totalorder %s21, 0
    %p74 = por %p72, %p73
    %s75 = ssub.s32 %s15, %s22
    %p76 = scmp.eq.s32.totalorder %s75, 0
    %s78 = sadd.s32 %s77, 1
    %s79 = scalar_select %p76, %s77, %s78
    %p82 = pneg %p76
    %p83 = scmp.eq.s32.totalorder %s15, 1
    %p84 = por %p82, %p83
    %p85 = scmp.ne.s32.totalorder %s77, %s80
    %p86 = scmp.eq.s32.totalorder %s15, 0
    %p87 = por %p85, %p86
    %p88 = scmp.ne.s32.totalorder %s77, %s80
    %p89 = scmp.eq.s32.totalorder %s20, 1
    %p90 = por %p88, %p89
    %p91 = scmp.ne.s32.totalorder %s80, %s81
    %p92 = scmp.eq.s32.totalorder %s20, 0
    %p93 = por %p91, %p92
    %p94 = scmp.ne.s32.totalorder %s80, %s81
    %p95 = scmp.eq.s32.totalorder %s21, 1
    %p96 = por %p94, %p95
    %p98 = scmp.ne.s32.totalorder %s81, %s97
    %p99 = scmp.eq.s32.totalorder %s21, 0
    %p100 = por %p98, %p99
    %s101 = ssub.s32 %s15, %s22
    %p102 = scmp.eq.s32.totalorder %s101, 0
    %s104 = sadd.s32 %s103, 1
    %s105 = scalar_select %p102, %s103, %s104
    %p108 = pneg %p102
    %p109 = scmp.eq.s32.totalorder %s15, 1
    %p110 = por %p108, %p109
    %p111 = scmp.ne.s32.totalorder %s103, %s106
    %p112 = scmp.eq.s32.totalorder %s15, 0
    %p113 = por %p111, %p112
    %p114 = scmp.ne.s32.totalorder %s103, %s106
    %p115 = scmp.eq.s32.totalorder %s20, 1
    %p116 = por %p114, %p115
    %p117 = scmp.ne.s32.totalorder %s106, %s107
    %p118 = scmp.eq.s32.totalorder %s20, 0
    %p119 = por %p117, %p118
    %p120 = scmp.ne.s32.totalorder %s106, %s107
    %p121 = scmp.eq.s32.totalorder %s21, 1
    %p122 = por %p120, %p121
    %p124 = scmp.ne.s32.totalorder %s107, %s123
    %p125 = scmp.eq.s32.totalorder %s21, 0
    %p126 = por %p124, %p125
    %s128 = sadd.s32 %s127, 1
    %p131 = scmp.eq.s32.totalorder %s15, 1
    %p132 = scmp.ne.s32.totalorder %s127, %s129
    %p133 = scmp.eq.s32.totalorder %s15, 0
    %p134 = por %p132, %p133
    %p135 = scmp.ne.s32.totalorder %s127, %s129
    %p136 = scmp.eq.s32.totalorder %s20, 1
    %p137 = por %p135, %p136
    %p138 = scmp.ne.s32.totalorder %s129, %s130
    %p139 = scmp.eq.s32.totalorder %s20, 0
    %p140 = por %p138, %p139
    %p141 = scmp.ne.s32.totalorder %s129, %s130
    %p142 = scmp.eq.s32.totalorder %s21, 1
    %p143 = por %p141, %p142
    %p145 = scmp.ne.s32.totalorder %s130, %s144
    %p146 = scmp.eq.s32.totalorder %s21, 0
    %p147 = por %p145, %p146
    %s149 = sadd.s32 %s148, 1
    %p152 = scmp.eq.s32.totalorder %s15, 1
    %p153 = scmp.ne.s32.totalorder %s148, %s150
    %p154 = scmp.eq.s32.totalorder %s15, 0
    %p155 = por %p153, %p154
    %p156 = scmp.ne.s32.totalorder %s148, %s150
    %p157 = scmp.eq.s32.totalorder %s20, 1
    %p158 = por %p156, %p157
    %p159 = scmp.ne.s32.totalorder %s150, %s151
    %p160 = scmp.eq.s32.totalorder %s20, 0
    %p161 = por %p159, %p160
    %p162 = scmp.ne.s32.totalorder %s150, %s151
    %p163 = scmp.eq.s32.totalorder %s21, 1
    %p164 = por %p162, %p163
    %p166 = scmp.ne.s32.totalorder %s151, %s165
    %p167 = scmp.eq.s32.totalorder %s21, 0
    %p168 = por %p166, %p167
    %s169 = ssub.s32 %s15, %s22
    %p170 = scmp.eq.s32.totalorder %s169, 0
    %s172 = sadd.s32 %s171, 1
    %s173 = scalar_select %p170, %s171, %s172
    %p176 = pneg %p170
    %p177 = scmp.eq.s32.totalorder %s15, 1
    %p178 = por %p176, %p177
    %p179 = scmp.ne.s32.totalorder %s171, %s174
    %p180 = scmp.eq.s32.totalorder %s15, 0
    %p181 = por %p179, %p180
    %p182 = scmp.ne.s32.totalorder %s171, %s174
    %p183 = scmp.eq.s32.totalorder %s20, 1
    %p184 = por %p182, %p183
    %p185 = scmp.ne.s32.totalorder %s174, %s175
    %p186 = scmp.eq.s32.totalorder %s20, 0
    %p187 = por %p185, %p186
    %p188 = scmp.ne.s32.totalorder %s174, %s175
    %p189 = scmp.eq.s32.totalorder %s21, 1
    %p190 = por %p188, %p189
    %p192 = scmp.ne.s32.totalorder %s175, %s191
    %p193 = scmp.eq.s32.totalorder %s21, 0
    %p194 = por %p192, %p193
    %s195 = ssub.s32 %s15, %s22
    %p196 = scmp.eq.s32.totalorder %s195, 0
    %s198 = sadd.s32 %s197, 1
    %s199 = scalar_select %p196, %s197, %s198
    %p202 = pneg %p196
    %p203 = scmp.eq.s32.totalorder %s15, 1
    %p204 = por %p202, %p203
    %p205 = scmp.ne.s32.totalorder %s197, %s200
    %p206 = scmp.eq.s32.totalorder %s15, 0
    %p207 = por %p205, %p206
    %p208 = scmp.ne.s32.totalorder %s197, %s200
    %p209 = scmp.eq.s32.totalorder %s20, 1
    %p210 = por %p208, %p209
    %p211 = scmp.ne.s32.totalorder %s200, %s201
    %p212 = scmp.eq.s32.totalorder %s20, 0
    %p213 = por %p211, %p212
    %p214 = scmp.ne.s32.totalorder %s200, %s201
    %p215 = scmp.eq.s32.totalorder %s21, 1
    %p216 = por %p214, %p215
    %p218 = scmp.ne.s32.totalorder %s201, %s217
    %p219 = scmp.eq.s32.totalorder %s21, 0
    %p220 = por %p218, %p219
    %s221 = ssub.s32 %s15, %s22
    %p222 = scmp.eq.s32.totalorder %s221, 0
    %s224 = sadd.s32 %s223, 1
    %s225 = scalar_select %p222, %s223, %s224
    %p228 = pneg %p222
    %p229 = scmp.eq.s32.totalorder %s15, 1
    %p230 = por %p228, %p229
    %p231 = scmp.ne.s32.totalorder %s223, %s226
    %p232 = scmp.eq.s32.totalorder %s15, 0
    %p233 = por %p231, %p232
    %p234 = scmp.ne.s32.totalorder %s223, %s226
    %p235 = scmp.eq.s32.totalorder %s20, 1
    %p236 = por %p234, %p235
    %p237 = scmp.ne.s32.totalorder %s226, %s227
    %p238 = scmp.eq.s32.totalorder %s20, 0
    %p239 = por %p237, %p238
    %p240 = scmp.ne.s32.totalorder %s226, %s227
    %p241 = scmp.eq.s32.totalorder %s21, 1
    %p242 = por %p240, %p241
    %p244 = scmp.ne.s32.totalorder %s227, %s243
    %p245 = scmp.eq.s32.totalorder %s21, 0
    %p246 = por %p244, %p245
    %p247 = scmp.le.s32.totalorder 1, %s15
    %p248 = scmp.lt.s32.totalorder %s15, 3
    %p249 = pnand %p247, %p248
    %p250 = pneg %p249
    // Predicated region
    $region9: #{basic_block_forward.3} parent=5 // pred_check
      _
    $region10: #{basic_block_forward.3} parent=5 // pred_check_branch
      %252 = sbr.rel (%p249) target = $region12
    $region11: #{basic_block_forward.3} parent=5 // pred_region
      %s253 = ssub.s32 %s15, 1
      // Predicated region
      $region13: #{basic_block_forward.3} parent=11 // pred_check
        %p254 = pneg %p140
      $region14: #{basic_block_forward.3} parent=11 // pred_check_branch
        %256 = sbr.rel (%p254) target = $region16
      $region15: #{basic_block_forward.3} parent=11 // pred_region
        _
      $region16: #{basic_block_forward.3} parent=11 // pred_fallthru
        _
      // Predicated region
      $region17: #{basic_block_forward.3} parent=11 // pred_check
        %p257 = pneg %p161
      $region18: #{basic_block_forward.3} parent=11 // pred_check_branch
        %259 = sbr.rel (%p257) target = $region20
      $region19: #{basic_block_forward.3} parent=11 // pred_region
        _
      $region20: #{basic_block_forward.3} parent=11 // pred_fallthru
        _
    $region12: #{basic_block_forward.3} parent=5 // pred_fallthru
      _
    %p260 = scmp.lt.s32.totalorder %s15, 2
    // Predicated region
    $region21: #{basic_block_forward.3} parent=5 // pred_check
      %p261 = pneg %p260
    $region22: #{basic_block_forward.3} parent=5 // pred_check_branch
      %263 = sbr.rel (%p261) target = $region24
    $region23: #{basic_block_forward.3} parent=5 // pred_region
      // Predicated region
      $region25: #{basic_block_forward.3} parent=23 // pred_check
        %p264 = pneg %p35
      $region26: #{basic_block_forward.3} parent=23 // pred_check_branch
        %266 = sbr.rel (%p264) target = $region28
      $region27: #{basic_block_forward.3} parent=23 // pred_region
        %p267 = scmp.lt.s32.totalorder %s15, 1
        %s268 = scalar_select %p267, %s15, 1
        %s269 = smul.addr %s268, 18
        %s270 = smul.addr %s269, 4
        %s271 = scalar_lea.vmem %s0, %s270
      $region28: #{basic_block_forward.3} parent=23 // pred_fallthru
        _
      // Predicated region
      $region29: #{basic_block_forward.3} parent=23 // pred_check
        %p272 = pneg %p61
      $region30: #{basic_block_forward.3} parent=23 // pred_check_branch
        %274 = sbr.rel (%p272) target = $region32
      $region31: #{basic_block_forward.3} parent=23 // pred_region
        %p275 = scmp.lt.s32.totalorder %s15, 1
        %s276 = scalar_select %p275, %s15, 1
        %s277 = smul.addr %s276, 18
        %s278 = smul.addr %s277, 4
        %s279 = scalar_lea.vmem %s1, %s278
      $region32: #{basic_block_forward.3} parent=23 // pred_fallthru
        _
      // Predicated region
      $region33: #{basic_block_forward.3} parent=23 // pred_check
        %p280 = pneg %p87
      $region34: #{basic_block_forward.3} parent=23 // pred_check_branch
        %282 = sbr.rel (%p280) target = $region36
      $region35: #{basic_block_forward.3} parent=23 // pred_region
        %p283 = scmp.lt.s32.totalorder %s15, 1
        %s284 = scalar_select %p283, %s15, 1
        %s285 = smul.addr %s284, 18
        %s286 = smul.addr %s285, 4
        %s287 = scalar_lea.vmem %s2, %s286
      $region36: #{basic_block_forward.3} parent=23 // pred_fallthru
        _
      // Predicated region
      $region37: #{basic_block_forward.3} parent=23 // pred_check
        %p288 = pneg %p113
      $region38: #{basic_block_forward.3} parent=23 // pred_check_branch
        %290 = sbr.rel (%p288) target = $region40
      $region39: #{basic_block_forward.3} parent=23 // pred_region
        %p291 = scmp.lt.s32.totalorder %s15, 1
        %s292 = scalar_select %p291, %s15, 1
        %s293 = smul.addr %s292, 18
        %s294 = smul.addr %s293, 4
        %s295 = scalar_lea.vmem %s3, %s294
      $region40: #{basic_block_forward.3} parent=23 // pred_fallthru
        _
    $region24: #{basic_block_forward.3} parent=5 // pred_fallthru
      _
    %p296 = scmp.le.s32.totalorder 1, %s15
    %p297 = scmp.lt.s32.totalorder %s15, 3
    %p298 = pnand %p296, %p297
    %p299 = pneg %p298
    // Predicated region
    $region41: #{basic_block_forward.3} parent=5 // pred_check
      _
    $region42: #{basic_block_forward.3} parent=5 // pred_check_branch
      %301 = sbr.rel (%p298) target = $region44
    $region43: #{basic_block_forward.3} parent=5 // pred_region
      %s302 = ssub.s32 %s15, 1
      %p303 = scmp.lt.s32.totalorder %s20, 1
      %s304 = scalar_select %p303, %s20, 1
      %s305 = smul.addr %s304, 18
      %s306 = smul.addr %s305, 4
      %s307 = scalar_lea.vmem %s0, %s306
      %p308 = pneg %p41
      %p309 = pneg %p38
      %p310 = scmp.lt.s32.totalorder %s20, 1
      %s311 = scalar_select %p310, %s20, 1
      %s312 = smul.addr %s311, 18
      %s313 = smul.addr %s312, 4
      %s314 = scalar_lea.vmem %s1, %s313
      %p315 = pneg %p67
      %p316 = pneg %p64
      %p317 = scmp.lt.s32.totalorder %s20, 1
      %s318 = scalar_select %p317, %s20, 1
      %s319 = smul.addr %s318, 18
      %s320 = smul.addr %s319, 4
      %s321 = scalar_lea.vmem %s2, %s320
      %p322 = pneg %p93
      %p323 = pneg %p90
      %p324 = scmp.lt.s32.totalorder %s20, 1
      %s325 = scalar_select %p324, %s20, 1
      %s326 = smul.addr %s325, 18
      %s327 = smul.addr %s326, 4
      %s328 = scalar_lea.vmem %s3, %s327
      %p329 = pneg %p119
      %p330 = pneg %p116
      %p331 = pneg %p140
      %p332 = pneg %p137
      %p333 = pneg %p161
      %p334 = pneg %p158
      %p335 = pneg %p187
      %p336 = pneg %p184
      %p337 = scmp.lt.s32.totalorder %s20, 1
      %s338 = scalar_select %p337, %s20, 1
      %s339 = smul.addr %s338, 8
      %s340 = smul.addr %s339, 4
      %s341 = scalar_lea.vmem %s6, %s340
      %p342 = pneg %p213
      %p343 = pneg %p210
      %p344 = scmp.lt.s32.totalorder %s20, 1
      %s345 = scalar_select %p344, %s20, 1
      %s346 = smul.addr %s345, 8
      %s347 = smul.addr %s346, 4
      %s348 = scalar_lea.vmem %s7, %s347
      %p349 = pneg %p239
      %p350 = pneg %p236
      %p351 = scmp.lt.s32.totalorder %s20, 1
      %s352 = scalar_select %p351, %s20, 1
      %s353 = smul.addr %s352, 8
      %s354 = scalar_lea.vmem %s8, %s353
      %p355 = scmp.lt.s32.totalorder %s20, 1
      %s356 = scalar_select %p355, %s20, 1
      %s357 = smul.addr %s356, 18
      %s358 = smul.addr %s357, 4
      %s359 = scalar_lea.vmem %s0, %s358
      %p360 = scmp.lt.s32.totalorder %s20, 1
      %s361 = scalar_select %p360, %s20, 1
      %s362 = smul.addr %s361, 18
      %s363 = smul.addr %s362, 4
      %s364 = scalar_lea.vmem %s1, %s363
      %p365 = scmp.lt.s32.totalorder %s20, 1
      %s366 = scalar_select %p365, %s20, 1
      %s367 = smul.addr %s366, 18
      %s368 = smul.addr %s367, 4
      %s369 = scalar_lea.vmem %s2, %s368
      %p370 = scmp.lt.s32.totalorder %s20, 1
      %s371 = scalar_select %p370, %s20, 1
      %s372 = smul.addr %s371, 18
      %s373 = smul.addr %s372, 4
      %s374 = scalar_lea.vmem %s3, %s373
      %p375 = scmp.lt.s32.totalorder %s20, 1
      %s376 = scalar_select %p375, %s20, 1
      %s377 = smul.addr %s376, 8
      %s378 = smul.addr %s377, 4
      %s379 = scalar_lea.vmem %s6, %s378
      %p380 = scmp.lt.s32.totalorder %s20, 1
      %s381 = scalar_select %p380, %s20, 1
      %s382 = smul.addr %s381, 8
      %s383 = smul.addr %s382, 4
      %s384 = scalar_lea.vmem %s7, %s383
      %p385 = scmp.lt.s32.totalorder %s20, 1
      %s386 = scalar_select %p385, %s20, 1
      %s387 = smul.addr %s386, 8
      %s388 = scalar_lea.vmem %s8, %s387
      %v389 = vld [vmem:[%s359] sm:$0xf]
      %v390 = vld [vmem:[%s359 + $0x8] sm:$0xf]
      %v391 = vld [vmem:[%s359 + $0x10] sm:$0xf]
      %v392 = vld [vmem:[%s359 + $0x18] sm:$0xf]
      %v393 = vld [vmem:[%s359 + $0x20] sm:$0xf]
      %v394 = vld [vmem:[%s359 + $0x28] sm:$0xf]
      %v395 = vld [vmem:[%s359 + $0x30] sm:$0xf]
      %v396 = vld [vmem:[%s359 + $0x38] sm:$0xf]
      %v397 = vld [vmem:[%s4] sm:$0xf]
      %v398 = vld [vmem:[%s4 + $0x4] sm:$0xf]
      %v399 = vld [vmem:[%s4 + $0x8] sm:$0xf]
      %v400 = vld [vmem:[%s4 + $0xc] sm:$0xf]
      %v401 = vld [vmem:[%s4 + $0x10] sm:$0xf]
      %v402 = vld [vmem:[%s4 + $0x14] sm:$0xf]
      %v403 = vld [vmem:[%s4 + $0x18] sm:$0xf]
      %v404 = vld [vmem:[%s4 + $0x1c] sm:$0xf]
      %v405 = vld [vmem:[%s4 + $0x20] sm:$0xf]
      %v406 = vld [vmem:[%s4 + $0x24] sm:$0xf]
      %v407 = vld [vmem:[%s4 + $0x28] sm:$0xf]
      %v408 = vld [vmem:[%s4 + $0x2c] sm:$0xf]
      %v409 = vld [vmem:[%s4 + $0x30] sm:$0xf]
      %v410 = vld [vmem:[%s4 + $0x34] sm:$0xf]
      %v411 = vld [vmem:[%s4 + $0x38] sm:$0xf]
      %v412 = vld [vmem:[%s4 + $0x3c] sm:$0xf]
      %v413 = vld [vmem:[%s364] sm:$0xf]
      %v414 = vld [vmem:[%s364 + $0x8] sm:$0xf]
      %v415 = vld [vmem:[%s364 + $0x10] sm:$0xf]
      %v416 = vld [vmem:[%s364 + $0x18] sm:$0xf]
      %v417 = vld [vmem:[%s364 + $0x20] sm:$0xf]
      %v418 = vld [vmem:[%s364 + $0x28] sm:$0xf]
      %v419 = vld [vmem:[%s364 + $0x30] sm:$0xf]
      %v420 = vld [vmem:[%s364 + $0x38] sm:$0xf]
      %s421 = scalar_lea.vmem %s4, 64
      %v422 = vld [vmem:[%s421] sm:$0xf]
      %v423 = vld [vmem:[%s421 + $0x4] sm:$0xf]
      %v424 = vld [vmem:[%s421 + $0x8] sm:$0xf]
      %v425 = vld [vmem:[%s421 + $0xc] sm:$0xf]
      %v426 = vld [vmem:[%s421 + $0x10] sm:$0xf]
      %v427 = vld [vmem:[%s421 + $0x14] sm:$0xf]
      %v428 = vld [vmem:[%s421 + $0x18] sm:$0xf]
      %v429 = vld [vmem:[%s421 + $0x1c] sm:$0xf]
      %v430 = vld [vmem:[%s421 + $0x20] sm:$0xf]
      %v431 = vld [vmem:[%s421 + $0x24] sm:$0xf]
      %v432 = vld [vmem:[%s421 + $0x28] sm:$0xf]
      %v433 = vld [vmem:[%s421 + $0x2c] sm:$0xf]
      %v434 = vld [vmem:[%s421 + $0x30] sm:$0xf]
      %v435 = vld [vmem:[%s421 + $0x34] sm:$0xf]
      %v436 = vld [vmem:[%s421 + $0x38] sm:$0xf]
      %v437 = vld [vmem:[%s421 + $0x3c] sm:$0xf]
      %v446 = vunpack.c.l.b16 %v413
      %v447 = vunpack.c.l.b16 %v414
      %v448 = vunpack.c.l.b16 %v415
      %v449 = vunpack.c.l.b16 %v416
      %v450 = vunpack.c.l.b16 %v417
      %v451 = vunpack.c.l.b16 %v418
      %v452 = vunpack.c.l.b16 %v419
      %v453 = vunpack.c.l.b16 %v420
      %v454 = vpack.c.b16 %v447, %v446
      %v455 = vpack.c.b16 %v449, %v448
      %v456 = vpack.c.b16 %v451, %v450
      %v457 = vpack.c.b16 %v453, %v452
      %v478 = vunpack.c.l.b16 %v422
      %v479 = vunpack.c.l.b16 %v423
      %v480 = vunpack.c.l.b16 %v424
      %v481 = vunpack.c.l.b16 %v425
      %v482 = vunpack.c.l.b16 %v426
      %v483 = vunpack.c.l.b16 %v427
      %v484 = vunpack.c.l.b16 %v428
      %v485 = vunpack.c.l.b16 %v429
      %v486 = vunpack.c.l.b16 %v430
      %v487 = vunpack.c.l.b16 %v431
      %v488 = vunpack.c.l.b16 %v432
      %v489 = vunpack.c.l.b16 %v433
      %v490 = vunpack.c.l.b16 %v434
      %v491 = vunpack.c.l.b16 %v435
      %v492 = vunpack.c.l.b16 %v436
      %v493 = vunpack.c.l.b16 %v437
      %v494 = vpack.c.b16 %v479, %v478
      %v495 = vpack.c.b16 %v481, %v480
      %v496 = vpack.c.b16 %v483, %v482
      %v497 = vpack.c.b16 %v485, %v484
      %v498 = vpack.c.b16 %v487, %v486
      %v499 = vpack.c.b16 %v489, %v488
      %v500 = vpack.c.b16 %v491, %v490
      %v501 = vpack.c.b16 %v493, %v492
      %510 = vmatpush.bf16.msra.mxu0 %v501
      %511 = vmatpush.bf16.msra.mxu0 %v500
      %512 = vmatpush.bf16.msra.mxu0 %v499
      %513 = vmatpush.bf16.msra.mxu0 %v498
      %514 = vmatpush.bf16.msra.mxu0 %v497
      %515 = vmatpush.bf16.msra.mxu0 %v496
      %516 = vmatpush.bf16.msra.mxu0 %v495
      %517 = vmatpush.bf16.msra.mxu0 %v494
      %518 = vmatmul.bf16.gmra.mxu0 %v454
      %v519 = vpop.f32.mrf.mxu0
      %v520 = vadd.f32 0.0, %v519
      %v521 = vpop.f32.mrf.mxu0
      %v522 = vadd.f32 0.0, %v521
      %523 = vmatmul.bf16.gmra.mxu0 %v455
      %v524 = vpop.f32.mrf.mxu0
      %v525 = vadd.f32 0.0, %v524
      %v526 = vpop.f32.mrf.mxu0
      %v527 = vadd.f32 0.0, %v526
      %528 = vmatmul.bf16.gmra.mxu0 %v456
      %v529 = vpop.f32.mrf.mxu0
      %v530 = vadd.f32 0.0, %v529
      %v531 = vpop.f32.mrf.mxu0
      %v532 = vadd.f32 0.0, %v531
      %533 = vmatmul.bf16.gmra.mxu0 %v457
      %v534 = vpop.f32.mrf.mxu0
      %v535 = vadd.f32 0.0, %v534
      %v536 = vpop.f32.mrf.mxu0
      %v537 = vadd.f32 0.0, %v536
      %538 = vdwg.mxu0
      %v547 = vunpack.c.l.b16 %v389
      %v548 = vunpack.c.l.b16 %v390
      %v549 = vunpack.c.l.b16 %v391
      %v550 = vunpack.c.l.b16 %v392
      %v551 = vunpack.c.l.b16 %v393
      %v552 = vunpack.c.l.b16 %v394
      %v553 = vunpack.c.l.b16 %v395
      %v554 = vunpack.c.l.b16 %v396
      %v555 = vpack.c.b16 %v548, %v547
      %v556 = vpack.c.b16 %v550, %v549
      %v557 = vpack.c.b16 %v552, %v551
      %v558 = vpack.c.b16 %v554, %v553
      %v579 = vunpack.c.l.b16 %v397
      %v580 = vunpack.c.l.b16 %v398
      %v581 = vunpack.c.l.b16 %v399
      %v582 = vunpack.c.l.b16 %v400
      %v583 = vunpack.c.l.b16 %v401
      %v584 = vunpack.c.l.b16 %v402
      %v585 = vunpack.c.l.b16 %v403
      %v586 = vunpack.c.l.b16 %v404
      %v587 = vunpack.c.l.b16 %v405
      %v588 = vunpack.c.l.b16 %v406
      %v589 = vunpack.c.l.b16 %v407
      %v590 = vunpack.c.l.b16 %v408
      %v591 = vunpack.c.l.b16 %v409
      %v592 = vunpack.c.l.b16 %v410
      %v593 = vunpack.c.l.b16 %v411
      %v594 = vunpack.c.l.b16 %v412
      %v595 = vpack.c.b16 %v580, %v579
      %v596 = vpack.c.b16 %v582, %v581
      %v597 = vpack.c.b16 %v584, %v583
      %v598 = vpack.c.b16 %v586, %v585
      %v599 = vpack.c.b16 %v588, %v587
      %v600 = vpack.c.b16 %v590, %v589
      %v601 = vpack.c.b16 %v592, %v591
      %v602 = vpack.c.b16 %v594, %v593
      %611 = vmatpush.bf16.msra.mxu0 %v602
      %612 = vmatpush.bf16.msra.mxu0 %v601
      %613 = vmatpush.bf16.msra.mxu0 %v600
      %614 = vmatpush.bf16.msra.mxu0 %v599
      %615 = vmatpush.bf16.msra.mxu0 %v598
      %616 = vmatpush.bf16.msra.mxu0 %v597
      %617 = vmatpush.bf16.msra.mxu0 %v596
      %618 = vmatpush.bf16.msra.mxu0 %v595
      %619 = vmatmul.bf16.gmra.mxu0 %v555
      %v620 = vpop.f32.mrf.mxu0
      %v621 = vadd.f32 %v520, %v620
      %v622 = vpop.f32.mrf.mxu0
      %v623 = vadd.f32 %v522, %v622
      %624 = vmatmul.bf16.gmra.mxu0 %v556
      %v625 = vpop.f32.mrf.mxu0
      %v626 = vadd.f32 %v525, %v625
      %v627 = vpop.f32.mrf.mxu0
      %v628 = vadd.f32 %v527, %v627
      %629 = vmatmul.bf16.gmra.mxu0 %v557
      %v630 = vpop.f32.mrf.mxu0
      %v631 = vadd.f32 %v530, %v630
      %v632 = vpop.f32.mrf.mxu0
      %v633 = vadd.f32 %v532, %v632
      %634 = vmatmul.bf16.gmra.mxu0 %v558
      %v635 = vpop.f32.mrf.mxu0
      %v636 = vadd.f32 %v535, %v635
      %v637 = vpop.f32.mrf.mxu0
      %v638 = vadd.f32 %v537, %v637
      %639 = vdwg.mxu0
      %v640 = vld [vmem:[%s359] sm:$0xf]
      %v641 = vld [vmem:[%s359 + $0x4] sm:$0x1]
      %v642 = vld [vmem:[%s359 + $0x8] sm:$0xf]
      %v643 = vld [vmem:[%s359 + $0xc] sm:$0x1]
      %v644 = vld [vmem:[%s359 + $0x10] sm:$0xf]
      %v645 = vld [vmem:[%s359 + $0x14] sm:$0x1]
      %v646 = vld [vmem:[%s359 + $0x18] sm:$0xf]
      %v647 = vld [vmem:[%s359 + $0x1c] sm:$0x1]
      %v648 = vld [vmem:[%s359 + $0x20] sm:$0xf]
      %v649 = vld [vmem:[%s359 + $0x24] sm:$0x1]
      %v650 = vld [vmem:[%s359 + $0x28] sm:$0xf]
      %v651 = vld [vmem:[%s359 + $0x2c] sm:$0x1]
      %v652 = vld [vmem:[%s359 + $0x30] sm:$0xf]
      %v653 = vld [vmem:[%s359 + $0x34] sm:$0x1]
      %v654 = vld [vmem:[%s359 + $0x38] sm:$0xf]
      %v655 = vld [vmem:[%s359 + $0x3c] sm:$0x1]
      %vm656 = vsmask.f32 3328
      %vm657 = vsmask.f32 7440
      %vm658 = vmor %vm656, %vm657
      %v660 = vshrl.u32 %v640, 16
      %v662 = vrot.slane %v660, 4
      %v663 = vshll.u32 %v640, 16
      %v665 = vrot.slane %v663, 5
      %v666 = vor.u32 %v662, %v665
      %v667 = vrot.slane %v666, 4
      %v669 = vshll.u32 %v641, 16
      %v671 = vrot.slane %v669, 5
      %v672 = vsel %vm658, %v667, %v671
      %v674 = vshrl.u32 %v642, 16
      %v676 = vrot.slane %v674, 4
      %v677 = vshll.u32 %v642, 16
      %v679 = vrot.slane %v677, 5
      %v680 = vor.u32 %v676, %v679
      %v681 = vrot.slane %v680, 4
      %v683 = vshll.u32 %v643, 16
      %v685 = vrot.slane %v683, 5
      %v686 = vsel %vm658, %v681, %v685
      %v688 = vshrl.u32 %v644, 16
      %v690 = vrot.slane %v688, 4
      %v691 = vshll.u32 %v644, 16
      %v693 = vrot.slane %v691, 5
      %v694 = vor.u32 %v690, %v693
      %v695 = vrot.slane %v694, 4
      %v697 = vshll.u32 %v645, 16
      %v699 = vrot.slane %v697, 5
      %v700 = vsel %vm658, %v695, %v699
      %v702 = vshrl.u32 %v646, 16
      %v704 = vrot.slane %v702, 4
      %v705 = vshll.u32 %v646, 16
      %v707 = vrot.slane %v705, 5
      %v708 = vor.u32 %v704, %v707
      %v709 = vrot.slane %v708, 4
      %v711 = vshll.u32 %v647, 16
      %v713 = vrot.slane %v711, 5
      %v714 = vsel %vm658, %v709, %v713
      %v716 = vshrl.u32 %v648, 16
      %v718 = vrot.slane %v716, 4
      %v719 = vshll.u32 %v648, 16
      %v721 = vrot.slane %v719, 5
      %v722 = vor.u32 %v718, %v721
      %v723 = vrot.slane %v722, 4
      %v725 = vshll.u32 %v649, 16
      %v727 = vrot.slane %v725, 5
      %v728 = vsel %vm658, %v723, %v727
      %v730 = vshrl.u32 %v650, 16
      %v732 = vrot.slane %v730, 4
      %v733 = vshll.u32 %v650, 16
      %v735 = vrot.slane %v733, 5
      %v736 = vor.u32 %v732, %v735
      %v737 = vrot.slane %v736, 4
      %v739 = vshll.u32 %v651, 16
      %v741 = vrot.slane %v739, 5
      %v742 = vsel %vm658, %v737, %v741
      %v744 = vshrl.u32 %v652, 16
      %v746 = vrot.slane %v744, 4
      %v747 = vshll.u32 %v652, 16
      %v749 = vrot.slane %v747, 5
      %v750 = vor.u32 %v746, %v749
      %v751 = vrot.slane %v750, 4
      %v753 = vshll.u32 %v653, 16
      %v755 = vrot.slane %v753, 5
      %v756 = vsel %vm658, %v751, %v755
      %v758 = vshrl.u32 %v654, 16
      %v760 = vrot.slane %v758, 4
      %v761 = vshll.u32 %v654, 16
      %v763 = vrot.slane %v761, 5
      %v764 = vor.u32 %v760, %v763
      %v765 = vrot.slane %v764, 4
      %v767 = vshll.u32 %v655, 16
      %v769 = vrot.slane %v767, 5
      %v770 = vsel %vm658, %v765, %v769
      %s771 = scalar_lea.vmem %s4, 128
      %v772 = vld [vmem:[%s771] sm:$0xf]
      %v773 = vld [vmem:[%s771 + $0x4] sm:$0xf]
      %v774 = vld [vmem:[%s771 + $0x8] sm:$0xf]
      %v775 = vld [vmem:[%s771 + $0xc] sm:$0xf]
      %v776 = vld [vmem:[%s771 + $0x10] sm:$0xf]
      %v777 = vld [vmem:[%s771 + $0x14] sm:$0xf]
      %v778 = vld [vmem:[%s771 + $0x18] sm:$0xf]
      %v779 = vld [vmem:[%s771 + $0x1c] sm:$0xf]
      %v780 = vld [vmem:[%s771 + $0x20] sm:$0xf]
      %v781 = vld [vmem:[%s771 + $0x24] sm:$0xf]
      %v782 = vld [vmem:[%s771 + $0x28] sm:$0xf]
      %v783 = vld [vmem:[%s771 + $0x2c] sm:$0xf]
      %v784 = vld [vmem:[%s771 + $0x30] sm:$0xf]
      %v785 = vld [vmem:[%s771 + $0x34] sm:$0xf]
      %v786 = vld [vmem:[%s771 + $0x38] sm:$0xf]
      %v787 = vld [vmem:[%s771 + $0x3c] sm:$0xf]
      %v788 = vunpack.c.l.b16 %v672
      %v789 = vunpack.c.l.b16 %v686
      %v790 = vunpack.c.l.b16 %v700
      %v791 = vunpack.c.l.b16 %v714
      %v792 = vunpack.c.l.b16 %v728
      %v793 = vunpack.c.l.b16 %v742
      %v794 = vunpack.c.l.b16 %v756
      %v795 = vunpack.c.l.b16 %v770
      %v796 = vpack.c.b16 %v789, %v788
      %v797 = vpack.c.b16 %v791, %v790
      %v798 = vpack.c.b16 %v793, %v792
      %v799 = vpack.c.b16 %v795, %v794
      %v820 = vunpack.c.l.b16 %v772
      %v821 = vunpack.c.l.b16 %v773
      %v822 = vunpack.c.l.b16 %v774
      %v823 = vunpack.c.l.b16 %v775
      %v824 = vunpack.c.l.b16 %v776
      %v825 = vunpack.c.l.b16 %v777
      %v826 = vunpack.c.l.b16 %v778
      %v827 = vunpack.c.l.b16 %v779
      %v828 = vunpack.c.l.b16 %v780
      %v829 = vunpack.c.l.b16 %v781
      %v830 = vunpack.c.l.b16 %v782
      %v831 = vunpack.c.l.b16 %v783
      %v832 = vunpack.c.l.b16 %v784
      %v833 = vunpack.c.l.b16 %v785
      %v834 = vunpack.c.l.b16 %v786
      %v835 = vunpack.c.l.b16 %v787
      %v836 = vpack.c.b16 %v821, %v820
      %v837 = vpack.c.b16 %v823, %v822
      %v838 = vpack.c.b16 %v825, %v824
      %v839 = vpack.c.b16 %v827, %v826
      %v840 = vpack.c.b16 %v829, %v828
      %v841 = vpack.c.b16 %v831, %v830
      %v842 = vpack.c.b16 %v833, %v832
      %v843 = vpack.c.b16 %v835, %v834
      %852 = vmatpush.bf16.msra.mxu0 %v843
      %853 = vmatpush.bf16.msra.mxu0 %v842
      %854 = vmatpush.bf16.msra.mxu0 %v841
      %855 = vmatpush.bf16.msra.mxu0 %v840
      %856 = vmatpush.bf16.msra.mxu0 %v839
      %857 = vmatpush.bf16.msra.mxu0 %v838
      %858 = vmatpush.bf16.msra.mxu0 %v837
      %859 = vmatpush.bf16.msra.mxu0 %v836
      %860 = vmatmul.bf16.gmra.mxu0 %v796
      %v861 = vpop.f32.mrf.mxu0
      %v862 = vadd.f32 0.0, %v861
      %v863 = vpop.f32.mrf.mxu0
      %v864 = vadd.f32 0.0, %v863
      %865 = vmatmul.bf16.gmra.mxu0 %v797
      %v866 = vpop.f32.mrf.mxu0
      %v867 = vadd.f32 0.0, %v866
      %v868 = vpop.f32.mrf.mxu0
      %v869 = vadd.f32 0.0, %v868
      %870 = vmatmul.bf16.gmra.mxu0 %v798
      %v871 = vpop.f32.mrf.mxu0
      %v872 = vadd.f32 0.0, %v871
      %v873 = vpop.f32.mrf.mxu0
      %v874 = vadd.f32 0.0, %v873
      %875 = vmatmul.bf16.gmra.mxu0 %v799
      %v876 = vpop.f32.mrf.mxu0
      %v877 = vadd.f32 0.0, %v876
      %v878 = vpop.f32.mrf.mxu0
      %v879 = vadd.f32 0.0, %v878
      %880 = vdwg.mxu0
      %v881 = vadd.f32 %v621, %v862
      %v882 = vadd.f32 %v623, %v864
      %v883 = vadd.f32 %v626, %v867
      %v884 = vadd.f32 %v628, %v869
      %v885 = vadd.f32 %v631, %v872
      %v886 = vadd.f32 %v633, %v874
      %v887 = vadd.f32 %v636, %v877
      %v888 = vadd.f32 %v638, %v879
      %v889 = vld [vmem:[%s369] sm:$0xf]
      %v890 = vld [vmem:[%s369 + $0x8] sm:$0xf]
      %v891 = vld [vmem:[%s369 + $0x10] sm:$0xf]
      %v892 = vld [vmem:[%s369 + $0x18] sm:$0xf]
      %v893 = vld [vmem:[%s369 + $0x20] sm:$0xf]
      %v894 = vld [vmem:[%s369 + $0x28] sm:$0xf]
      %v895 = vld [vmem:[%s369 + $0x30] sm:$0xf]
      %v896 = vld [vmem:[%s369 + $0x38] sm:$0xf]
      %s897 = scalar_lea.vmem %s4, 192
      %v898 = vld [vmem:[%s897] sm:$0xf]
      %v899 = vld [vmem:[%s897 + $0x4] sm:$0xf]
      %v900 = vld [vmem:[%s897 + $0x8] sm:$0xf]
      %v901 = vld [vmem:[%s897 + $0xc] sm:$0xf]
      %v902 = vld [vmem:[%s897 + $0x10] sm:$0xf]
      %v903 = vld [vmem:[%s897 + $0x14] sm:$0xf]
      %v904 = vld [vmem:[%s897 + $0x18] sm:$0xf]
      %v905 = vld [vmem:[%s897 + $0x1c] sm:$0xf]
      %v906 = vld [vmem:[%s897 + $0x20] sm:$0xf]
      %v907 = vld [vmem:[%s897 + $0x24] sm:$0xf]
      %v908 = vld [vmem:[%s897 + $0x28] sm:$0xf]
      %v909 = vld [vmem:[%s897 + $0x2c] sm:$0xf]
      %v910 = vld [vmem:[%s897 + $0x30] sm:$0xf]
      %v911 = vld [vmem:[%s897 + $0x34] sm:$0xf]
      %v912 = vld [vmem:[%s897 + $0x38] sm:$0xf]
      %v913 = vld [vmem:[%s897 + $0x3c] sm:$0xf]
      %v922 = vunpack.c.l.b16 %v889
      %v923 = vunpack.c.l.b16 %v890
      %v924 = vunpack.c.l.b16 %v891
      %v925 = vunpack.c.l.b16 %v892
      %v926 = vunpack.c.l.b16 %v893
      %v927 = vunpack.c.l.b16 %v894
      %v928 = vunpack.c.l.b16 %v895
      %v929 = vunpack.c.l.b16 %v896
      %v930 = vpack.c.b16 %v923, %v922
      %v931 = vpack.c.b16 %v925, %v924
      %v932 = vpack.c.b16 %v927, %v926
      %v933 = vpack.c.b16 %v929, %v928
      %v954 = vunpack.c.l.b16 %v898
      %v955 = vunpack.c.l.b16 %v899
      %v956 = vunpack.c.l.b16 %v900
      %v957 = vunpack.c.l.b16 %v901
      %v958 = vunpack.c.l.b16 %v902
      %v959 = vunpack.c.l.b16 %v903
      %v960 = vunpack.c.l.b16 %v904
      %v961 = vunpack.c.l.b16 %v905
      %v962 = vunpack.c.l.b16 %v906
      %v963 = vunpack.c.l.b16 %v907
      %v964 = vunpack.c.l.b16 %v908
      %v965 = vunpack.c.l.b16 %v909
      %v966 = vunpack.c.l.b16 %v910
      %v967 = vunpack.c.l.b16 %v911
      %v968 = vunpack.c.l.b16 %v912
      %v969 = vunpack.c.l.b16 %v913
      %v970 = vpack.c.b16 %v955, %v954
      %v971 = vpack.c.b16 %v957, %v956
      %v972 = vpack.c.b16 %v959, %v958
      %v973 = vpack.c.b16 %v961, %v960
      %v974 = vpack.c.b16 %v963, %v962
      %v975 = vpack.c.b16 %v965, %v964
      %v976 = vpack.c.b16 %v967, %v966
      %v977 = vpack.c.b16 %v969, %v968
      %986 = vmatpush.bf16.msra.mxu0 %v977
      %987 = vmatpush.bf16.msra.mxu0 %v976
      %988 = vmatpush.bf16.msra.mxu0 %v975
      %989 = vmatpush.bf16.msra.mxu0 %v974
      %990 = vmatpush.bf16.msra.mxu0 %v973
      %991 = vmatpush.bf16.msra.mxu0 %v972
      %992 = vmatpush.bf16.msra.mxu0 %v971
      %993 = vmatpush.bf16.msra.mxu0 %v970
      %994 = vmatmul.bf16.gmra.mxu0 %v930
      %v995 = vpop.f32.mrf.mxu0
      %v996 = vadd.f32 0.0, %v995
      %v997 = vpop.f32.mrf.mxu0
      %v998 = vadd.f32 0.0, %v997
      %999 = vmatmul.bf16.gmra.mxu0 %v931
      %v1000 = vpop.f32.mrf.mxu0
      %v1001 = vadd.f32 0.0, %v1000
      %v1002 = vpop.f32.mrf.mxu0
      %v1003 = vadd.f32 0.0, %v1002
      %1004 = vmatmul.bf16.gmra.mxu0 %v932
      %v1005 = vpop.f32.mrf.mxu0
      %v1006 = vadd.f32 0.0, %v1005
      %v1007 = vpop.f32.mrf.mxu0
      %v1008 = vadd.f32 0.0, %v1007
      %1009 = vmatmul.bf16.gmra.mxu0 %v933
      %v1010 = vpop.f32.mrf.mxu0
      %v1011 = vadd.f32 0.0, %v1010
      %v1012 = vpop.f32.mrf.mxu0
      %v1013 = vadd.f32 0.0, %v1012
      %1014 = vdwg.mxu0
      %v1015 = vadd.f32 %v881, %v996
      %v1016 = vadd.f32 %v882, %v998
      %v1017 = vadd.f32 %v883, %v1001
      %v1018 = vadd.f32 %v884, %v1003
      %v1019 = vadd.f32 %v885, %v1006
      %v1020 = vadd.f32 %v886, %v1008
      %v1021 = vadd.f32 %v887, %v1011
      %v1022 = vadd.f32 %v888, %v1013
      %v1023 = vld [vmem:[%s374] sm:$0xf]
      %v1024 = vld [vmem:[%s374 + $0x8] sm:$0xf]
      %v1025 = vld [vmem:[%s374 + $0x10] sm:$0xf]
      %v1026 = vld [vmem:[%s374 + $0x18] sm:$0xf]
      %v1027 = vld [vmem:[%s374 + $0x20] sm:$0xf]
      %v1028 = vld [vmem:[%s374 + $0x28] sm:$0xf]
      %v1029 = vld [vmem:[%s374 + $0x30] sm:$0xf]
      %v1030 = vld [vmem:[%s374 + $0x38] sm:$0xf]
      %s1031 = scalar_lea.vmem %s4, 256
      %v1032 = vld [vmem:[%s1031] sm:$0xf]
      %v1033 = vld [vmem:[%s1031 + $0x4] sm:$0xf]
      %v1034 = vld [vmem:[%s1031 + $0x8] sm:$0xf]
      %v1035 = vld [vmem:[%s1031 + $0xc] sm:$0xf]
      %v1036 = vld [vmem:[%s1031 + $0x10] sm:$0xf]
      %v1037 = vld [vmem:[%s1031 + $0x14] sm:$0xf]
      %v1038 = vld [vmem:[%s1031 + $0x18] sm:$0xf]
      %v1039 = vld [vmem:[%s1031 + $0x1c] sm:$0xf]
      %v1040 = vld [vmem:[%s1031 + $0x20] sm:$0xf]
      %v1041 = vld [vmem:[%s1031 + $0x24] sm:$0xf]
      %v1042 = vld [vmem:[%s1031 + $0x28] sm:$0xf]
      %v1043 = vld [vmem:[%s1031 + $0x2c] sm:$0xf]
      %v1044 = vld [vmem:[%s1031 + $0x30] sm:$0xf]
      %v1045 = vld [vmem:[%s1031 + $0x34] sm:$0xf]
      %v1046 = vld [vmem:[%s1031 + $0x38] sm:$0xf]
      %v1047 = vld [vmem:[%s1031 + $0x3c] sm:$0xf]
      %v1056 = vunpack.c.l.b16 %v1023
      %v1057 = vunpack.c.l.b16 %v1024
      %v1058 = vunpack.c.l.b16 %v1025
      %v1059 = vunpack.c.l.b16 %v1026
      %v1060 = vunpack.c.l.b16 %v1027
      %v1061 = vunpack.c.l.b16 %v1028
      %v1062 = vunpack.c.l.b16 %v1029
      %v1063 = vunpack.c.l.b16 %v1030
      %v1064 = vpack.c.b16 %v1057, %v1056
      %v1065 = vpack.c.b16 %v1059, %v1058
      %v1066 = vpack.c.b16 %v1061, %v1060
      %v1067 = vpack.c.b16 %v1063, %v1062
      %v1088 = vunpack.c.l.b16 %v1032
      %v1089 = vunpack.c.l.b16 %v1033
      %v1090 = vunpack.c.l.b16 %v1034
      %v1091 = vunpack.c.l.b16 %v1035
      %v1092 = vunpack.c.l.b16 %v1036
      %v1093 = vunpack.c.l.b16 %v1037
      %v1094 = vunpack.c.l.b16 %v1038
      %v1095 = vunpack.c.l.b16 %v1039
      %v1096 = vunpack.c.l.b16 %v1040
      %v1097 = vunpack.c.l.b16 %v1041
      %v1098 = vunpack.c.l.b16 %v1042
      %v1099 = vunpack.c.l.b16 %v1043
      %v1100 = vunpack.c.l.b16 %v1044
      %v1101 = vunpack.c.l.b16 %v1045
      %v1102 = vunpack.c.l.b16 %v1046
      %v1103 = vunpack.c.l.b16 %v1047
      %v1104 = vpack.c.b16 %v1089, %v1088
      %v1105 = vpack.c.b16 %v1091, %v1090
      %v1106 = vpack.c.b16 %v1093, %v1092
      %v1107 = vpack.c.b16 %v1095, %v1094
      %v1108 = vpack.c.b16 %v1097, %v1096
      %v1109 = vpack.c.b16 %v1099, %v1098
      %v1110 = vpack.c.b16 %v1101, %v1100
      %v1111 = vpack.c.b16 %v1103, %v1102
      %1120 = vmatpush.bf16.msra.mxu0 %v1111
      %1121 = vmatpush.bf16.msra.mxu0 %v1110
      %1122 = vmatpush.bf16.msra.mxu0 %v1109
      %1123 = vmatpush.bf16.msra.mxu0 %v1108
      %1124 = vmatpush.bf16.msra.mxu0 %v1107
      %1125 = vmatpush.bf16.msra.mxu0 %v1106
      %1126 = vmatpush.bf16.msra.mxu0 %v1105
      %1127 = vmatpush.bf16.msra.mxu0 %v1104
      %1128 = vmatmul.bf16.gmra.mxu0 %v1064
      %v1129 = vpop.f32.mrf.mxu0
      %v1130 = vadd.f32 0.0, %v1129
      %v1131 = vpop.f32.mrf.mxu0
      %v1132 = vadd.f32 0.0, %v1131
      %1133 = vmatmul.bf16.gmra.mxu0 %v1065
      %v1134 = vpop.f32.mrf.mxu0
      %v1135 = vadd.f32 0.0, %v1134
      %v1136 = vpop.f32.mrf.mxu0
      %v1137 = vadd.f32 0.0, %v1136
      %1138 = vmatmul.bf16.gmra.mxu0 %v1066
      %v1139 = vpop.f32.mrf.mxu0
      %v1140 = vadd.f32 0.0, %v1139
      %v1141 = vpop.f32.mrf.mxu0
      %v1142 = vadd.f32 0.0, %v1141
      %1143 = vmatmul.bf16.gmra.mxu0 %v1067
      %v1144 = vpop.f32.mrf.mxu0
      %v1145 = vadd.f32 0.0, %v1144
      %v1146 = vpop.f32.mrf.mxu0
      %v1147 = vadd.f32 0.0, %v1146
      %1148 = vdwg.mxu0
      %v1149 = vadd.f32 %v1015, %v1130
      %v1150 = vadd.f32 %v1016, %v1132
      %v1151 = vadd.f32 %v1017, %v1135
      %v1152 = vadd.f32 %v1018, %v1137
      %v1153 = vadd.f32 %v1019, %v1140
      %v1154 = vadd.f32 %v1020, %v1142
      %v1155 = vadd.f32 %v1021, %v1145
      %v1156 = vadd.f32 %v1022, %v1147
      %v1157 = vld [vmem:[%s369] sm:$0xf]
      %v1158 = vld [vmem:[%s369 + $0x4] sm:$0x1]
      %v1159 = vld [vmem:[%s369 + $0x8] sm:$0xf]
      %v1160 = vld [vmem:[%s369 + $0xc] sm:$0x1]
      %v1161 = vld [vmem:[%s369 + $0x10] sm:$0xf]
      %v1162 = vld [vmem:[%s369 + $0x14] sm:$0x1]
      %v1163 = vld [vmem:[%s369 + $0x18] sm:$0xf]
      %v1164 = vld [vmem:[%s369 + $0x1c] sm:$0x1]
      %v1165 = vld [vmem:[%s369 + $0x20] sm:$0xf]
      %v1166 = vld [vmem:[%s369 + $0x24] sm:$0x1]
      %v1167 = vld [vmem:[%s369 + $0x28] sm:$0xf]
      %v1168 = vld [vmem:[%s369 + $0x2c] sm:$0x1]
      %v1169 = vld [vmem:[%s369 + $0x30] sm:$0xf]
      %v1170 = vld [vmem:[%s369 + $0x34] sm:$0x1]
      %v1171 = vld [vmem:[%s369 + $0x38] sm:$0xf]
      %v1172 = vld [vmem:[%s369 + $0x3c] sm:$0x1]
      %v1174 = vshrl.u32 %v1157, 16
      %v1176 = vrot.slane %v1174, 4
      %v1177 = vshll.u32 %v1157, 16
      %v1179 = vrot.slane %v1177, 5
      %v1180 = vor.u32 %v1176, %v1179
      %v1181 = vrot.slane %v1180, 4
      %v1183 = vshll.u32 %v1158, 16
      %v1185 = vrot.slane %v1183, 5
      %v1186 = vsel %vm658, %v1181, %v1185
      %v1188 = vshrl.u32 %v1159, 16
      %v1190 = vrot.slane %v1188, 4
      %v1191 = vshll.u32 %v1159, 16
      %v1193 = vrot.slane %v1191, 5
      %v1194 = vor.u32 %v1190, %v1193
      %v1195 = vrot.slane %v1194, 4
      %v1197 = vshll.u32 %v1160, 16
      %v1199 = vrot.slane %v1197, 5
      %v1200 = vsel %vm658, %v1195, %v1199
      %v1202 = vshrl.u32 %v1161, 16
      %v1204 = vrot.slane %v1202, 4
      %v1205 = vshll.u32 %v1161, 16
      %v1207 = vrot.slane %v1205, 5
      %v1208 = vor.u32 %v1204, %v1207
      %v1209 = vrot.slane %v1208, 4
      %v1211 = vshll.u32 %v1162, 16
      %v1213 = vrot.slane %v1211, 5
      %v1214 = vsel %vm658, %v1209, %v1213
      %v1216 = vshrl.u32 %v1163, 16
      %v1218 = vrot.slane %v1216, 4
      %v1219 = vshll.u32 %v1163, 16
      %v1221 = vrot.slane %v1219, 5
      %v1222 = vor.u32 %v1218, %v1221
      %v1223 = vrot.slane %v1222, 4
      %v1225 = vshll.u32 %v1164, 16
      %v1227 = vrot.slane %v1225, 5
      %v1228 = vsel %vm658, %v1223, %v1227
      %v1230 = vshrl.u32 %v1165, 16
      %v1232 = vrot.slane %v1230, 4
      %v1233 = vshll.u32 %v1165, 16
      %v1235 = vrot.slane %v1233, 5
      %v1236 = vor.u32 %v1232, %v1235
      %v1237 = vrot.slane %v1236, 4
      %v1239 = vshll.u32 %v1166, 16
      %v1241 = vrot.slane %v1239, 5
      %v1242 = vsel %vm658, %v1237, %v1241
      %v1244 = vshrl.u32 %v1167, 16
      %v1246 = vrot.slane %v1244, 4
      %v1247 = vshll.u32 %v1167, 16
      %v1249 = vrot.slane %v1247, 5
      %v1250 = vor.u32 %v1246, %v1249
      %v1251 = vrot.slane %v1250, 4
      %v1253 = vshll.u32 %v1168, 16
      %v1255 = vrot.slane %v1253, 5
      %v1256 = vsel %vm658, %v1251, %v1255
      %v1258 = vshrl.u32 %v1169, 16
      %v1260 = vrot.slane %v1258, 4
      %v1261 = vshll.u32 %v1169, 16
      %v1263 = vrot.slane %v1261, 5
      %v1264 = vor.u32 %v1260, %v1263
      %v1265 = vrot.slane %v1264, 4
      %v1267 = vshll.u32 %v1170, 16
      %v1269 = vrot.slane %v1267, 5
      %v1270 = vsel %vm658, %v1265, %v1269
      %v1272 = vshrl.u32 %v1171, 16
      %v1274 = vrot.slane %v1272, 4
      %v1275 = vshll.u32 %v1171, 16
      %v1277 = vrot.slane %v1275, 5
      %v1278 = vor.u32 %v1274, %v1277
      %v1279 = vrot.slane %v1278, 4
      %v1281 = vshll.u32 %v1172, 16
      %v1283 = vrot.slane %v1281, 5
      %v1284 = vsel %vm658, %v1279, %v1283
      %s1285 = scalar_lea.vmem %s4, 320
      %v1286 = vld [vmem:[%s1285] sm:$0xf]
      %v1287 = vld [vmem:[%s1285 + $0x4] sm:$0xf]
      %v1288 = vld [vmem:[%s1285 + $0x8] sm:$0xf]
      %v1289 = vld [vmem:[%s1285 + $0xc] sm:$0xf]
      %v1290 = vld [vmem:[%s1285 + $0x10] sm:$0xf]
      %v1291 = vld [vmem:[%s1285 + $0x14] sm:$0xf]
      %v1292 = vld [vmem:[%s1285 + $0x18] sm:$0xf]
      %v1293 = vld [vmem:[%s1285 + $0x1c] sm:$0xf]
      %v1294 = vld [vmem:[%s1285 + $0x20] sm:$0xf]
      %v1295 = vld [vmem:[%s1285 + $0x24] sm:$0xf]
      %v1296 = vld [vmem:[%s1285 + $0x28] sm:$0xf]
      %v1297 = vld [vmem:[%s1285 + $0x2c] sm:$0xf]
      %v1298 = vld [vmem:[%s1285 + $0x30] sm:$0xf]
      %v1299 = vld [vmem:[%s1285 + $0x34] sm:$0xf]
      %v1300 = vld [vmem:[%s1285 + $0x38] sm:$0xf]
      %v1301 = vld [vmem:[%s1285 + $0x3c] sm:$0xf]
      %v1302 = vunpack.c.l.b16 %v1186
      %v1303 = vunpack.c.l.b16 %v1200
      %v1304 = vunpack.c.l.b16 %v1214
      %v1305 = vunpack.c.l.b16 %v1228
      %v1306 = vunpack.c.l.b16 %v1242
      %v1307 = vunpack.c.l.b16 %v1256
      %v1308 = vunpack.c.l.b16 %v1270
      %v1309 = vunpack.c.l.b16 %v1284
      %v1310 = vpack.c.b16 %v1303, %v1302
      %v1311 = vpack.c.b16 %v1305, %v1304
      %v1312 = vpack.c.b16 %v1307, %v1306
      %v1313 = vpack.c.b16 %v1309, %v1308
      %v1334 = vunpack.c.l.b16 %v1286
      %v1335 = vunpack.c.l.b16 %v1287
      %v1336 = vunpack.c.l.b16 %v1288
      %v1337 = vunpack.c.l.b16 %v1289
      %v1338 = vunpack.c.l.b16 %v1290
      %v1339 = vunpack.c.l.b16 %v1291
      %v1340 = vunpack.c.l.b16 %v1292
      %v1341 = vunpack.c.l.b16 %v1293
      %v1342 = vunpack.c.l.b16 %v1294
      %v1343 = vunpack.c.l.b16 %v1295
      %v1344 = vunpack.c.l.b16 %v1296
      %v1345 = vunpack.c.l.b16 %v1297
      %v1346 = vunpack.c.l.b16 %v1298
      %v1347 = vunpack.c.l.b16 %v1299
      %v1348 = vunpack.c.l.b16 %v1300
      %v1349 = vunpack.c.l.b16 %v1301
      %v1350 = vpack.c.b16 %v1335, %v1334
      %v1351 = vpack.c.b16 %v1337, %v1336
      %v1352 = vpack.c.b16 %v1339, %v1338
      %v1353 = vpack.c.b16 %v1341, %v1340
      %v1354 = vpack.c.b16 %v1343, %v1342
      %v1355 = vpack.c.b16 %v1345, %v1344
      %v1356 = vpack.c.b16 %v1347, %v1346
      %v1357 = vpack.c.b16 %v1349, %v1348
      %1366 = vmatpush.bf16.msra.mxu0 %v1357
      %1367 = vmatpush.bf16.msra.mxu0 %v1356
      %1368 = vmatpush.bf16.msra.mxu0 %v1355
      %1369 = vmatpush.bf16.msra.mxu0 %v1354
      %1370 = vmatpush.bf16.msra.mxu0 %v1353
      %1371 = vmatpush.bf16.msra.mxu0 %v1352
      %1372 = vmatpush.bf16.msra.mxu0 %v1351
      %1373 = vmatpush.bf16.msra.mxu0 %v1350
      %1374 = vmatmul.bf16.gmra.mxu0 %v1310
      %v1375 = vpop.f32.mrf.mxu0
      %v1376 = vadd.f32 0.0, %v1375
      %v1377 = vpop.f32.mrf.mxu0
      %v1378 = vadd.f32 0.0, %v1377
      %1379 = vmatmul.bf16.gmra.mxu0 %v1311
      %v1380 = vpop.f32.mrf.mxu0
      %v1381 = vadd.f32 0.0, %v1380
      %v1382 = vpop.f32.mrf.mxu0
      %v1383 = vadd.f32 0.0, %v1382
      %1384 = vmatmul.bf16.gmra.mxu0 %v1312
      %v1385 = vpop.f32.mrf.mxu0
      %v1386 = vadd.f32 0.0, %v1385
      %v1387 = vpop.f32.mrf.mxu0
      %v1388 = vadd.f32 0.0, %v1387
      %1389 = vmatmul.bf16.gmra.mxu0 %v1313
      %v1390 = vpop.f32.mrf.mxu0
      %v1391 = vadd.f32 0.0, %v1390
      %v1392 = vpop.f32.mrf.mxu0
      %v1393 = vadd.f32 0.0, %v1392
      %1394 = vdwg.mxu0
      %v1395 = vadd.f32 %v1149, %v1376
      %v1396 = vadd.f32 %v1150, %v1378
      %v1397 = vadd.f32 %v1151, %v1381
      %v1398 = vadd.f32 %v1152, %v1383
      %v1399 = vadd.f32 %v1153, %v1386
      %v1400 = vadd.f32 %v1154, %v1388
      %v1401 = vadd.f32 %v1155, %v1391
      %v1402 = vadd.f32 %v1156, %v1393
      %s1403 = scalar_lea.vmem %s359, 8
      %v1404 = vld [vmem:[%s1403] sm:$0xf]
      %v1405 = vld [vmem:[%s1403 + $0x8] sm:$0xf]
      %v1406 = vld [vmem:[%s1403 + $0x10] sm:$0xf]
      %v1407 = vld [vmem:[%s1403 + $0x18] sm:$0xf]
      %v1408 = vld [vmem:[%s1403 + $0x20] sm:$0xf]
      %v1409 = vld [vmem:[%s1403 + $0x28] sm:$0xf]
      %v1410 = vld [vmem:[%s1403 + $0x30] sm:$0xf]
      %v1411 = vld [vmem:[%s1403 + $0x38] sm:$0xf]
      %s1412 = scalar_lea.vmem %s4, 384
      %v1413 = vld [vmem:[%s1412] sm:$0xf]
      %v1414 = vld [vmem:[%s1412 + $0x4] sm:$0xf]
      %v1415 = vld [vmem:[%s1412 + $0x8] sm:$0xf]
      %v1416 = vld [vmem:[%s1412 + $0xc] sm:$0xf]
      %v1417 = vld [vmem:[%s1412 + $0x10] sm:$0xf]
      %v1418 = vld [vmem:[%s1412 + $0x14] sm:$0xf]
      %v1419 = vld [vmem:[%s1412 + $0x18] sm:$0xf]
      %v1420 = vld [vmem:[%s1412 + $0x1c] sm:$0xf]
      %v1421 = vld [vmem:[%s1412 + $0x20] sm:$0xf]
      %v1422 = vld [vmem:[%s1412 + $0x24] sm:$0xf]
      %v1423 = vld [vmem:[%s1412 + $0x28] sm:$0xf]
      %v1424 = vld [vmem:[%s1412 + $0x2c] sm:$0xf]
      %v1425 = vld [vmem:[%s1412 + $0x30] sm:$0xf]
      %v1426 = vld [vmem:[%s1412 + $0x34] sm:$0xf]
      %v1427 = vld [vmem:[%s1412 + $0x38] sm:$0xf]
      %v1428 = vld [vmem:[%s1412 + $0x3c] sm:$0xf]
      %v1437 = vunpack.c.l.b16 %v1404
      %v1438 = vunpack.c.l.b16 %v1405
      %v1439 = vunpack.c.l.b16 %v1406
      %v1440 = vunpack.c.l.b16 %v1407
      %v1441 = vunpack.c.l.b16 %v1408
      %v1442 = vunpack.c.l.b16 %v1409
      %v1443 = vunpack.c.l.b16 %v1410
      %v1444 = vunpack.c.l.b16 %v1411
      %v1445 = vpack.c.b16 %v1438, %v1437
      %v1446 = vpack.c.b16 %v1440, %v1439
      %v1447 = vpack.c.b16 %v1442, %v1441
      %v1448 = vpack.c.b16 %v1444, %v1443
      %v1469 = vunpack.c.l.b16 %v1413
      %v1470 = vunpack.c.l.b16 %v1414
      %v1471 = vunpack.c.l.b16 %v1415
      %v1472 = vunpack.c.l.b16 %v1416
      %v1473 = vunpack.c.l.b16 %v1417
      %v1474 = vunpack.c.l.b16 %v1418
      %v1475 = vunpack.c.l.b16 %v1419
      %v1476 = vunpack.c.l.b16 %v1420
      %v1477 = vunpack.c.l.b16 %v1421
      %v1478 = vunpack.c.l.b16 %v1422
      %v1479 = vunpack.c.l.b16 %v1423
      %v1480 = vunpack.c.l.b16 %v1424
      %v1481 = vunpack.c.l.b16 %v1425
      %v1482 = vunpack.c.l.b16 %v1426
      %v1483 = vunpack.c.l.b16 %v1427
      %v1484 = vunpack.c.l.b16 %v1428
      %v1485 = vpack.c.b16 %v1470, %v1469
      %v1486 = vpack.c.b16 %v1472, %v1471
      %v1487 = vpack.c.b16 %v1474, %v1473
      %v1488 = vpack.c.b16 %v1476, %v1475
      %v1489 = vpack.c.b16 %v1478, %v1477
      %v1490 = vpack.c.b16 %v1480, %v1479
      %v1491 = vpack.c.b16 %v1482, %v1481
      %v1492 = vpack.c.b16 %v1484, %v1483
      %1501 = vmatpush.bf16.msra.mxu0 %v1492
      %1502 = vmatpush.bf16.msra.mxu0 %v1491
      %1503 = vmatpush.bf16.msra.mxu0 %v1490
      %1504 = vmatpush.bf16.msra.mxu0 %v1489
      %1505 = vmatpush.bf16.msra.mxu0 %v1488
      %1506 = vmatpush.bf16.msra.mxu0 %v1487
      %1507 = vmatpush.bf16.msra.mxu0 %v1486
      %1508 = vmatpush.bf16.msra.mxu0 %v1485
      %1509 = vmatmul.bf16.gmra.mxu0 %v1445
      %v1510 = vpop.f32.mrf.mxu0
      %v1511 = vadd.f32 0.0, %v1510
      %v1512 = vpop.f32.mrf.mxu0
      %v1513 = vadd.f32 0.0, %v1512
      %1514 = vmatmul.bf16.gmra.mxu0 %v1446
      %v1515 = vpop.f32.mrf.mxu0
      %v1516 = vadd.f32 0.0, %v1515
      %v1517 = vpop.f32.mrf.mxu0
      %v1518 = vadd.f32 0.0, %v1517
      %1519 = vmatmul.bf16.gmra.mxu0 %v1447
      %v1520 = vpop.f32.mrf.mxu0
      %v1521 = vadd.f32 0.0, %v1520
      %v1522 = vpop.f32.mrf.mxu0
      %v1523 = vadd.f32 0.0, %v1522
      %1524 = vmatmul.bf16.gmra.mxu0 %v1448
      %v1525 = vpop.f32.mrf.mxu0
      %v1526 = vadd.f32 0.0, %v1525
      %v1527 = vpop.f32.mrf.mxu0
      %v1528 = vadd.f32 0.0, %v1527
      %1529 = vdwg.mxu0
      %v1530 = vadd.f32 %v1395, %v1511
      %v1531 = vadd.f32 %v1396, %v1513
      %v1532 = vadd.f32 %v1397, %v1516
      %v1533 = vadd.f32 %v1398, %v1518
      %v1534 = vadd.f32 %v1399, %v1521
      %v1535 = vadd.f32 %v1400, %v1523
      %v1536 = vadd.f32 %v1401, %v1526
      %v1537 = vadd.f32 %v1402, %v1528
      %s1538 = scalar_lea.vmem %s364, 8
      %v1539 = vld [vmem:[%s1538] sm:$0xf]
      %v1540 = vld [vmem:[%s1538 + $0x8] sm:$0xf]
      %v1541 = vld [vmem:[%s1538 + $0x10] sm:$0xf]
      %v1542 = vld [vmem:[%s1538 + $0x18] sm:$0xf]
      %v1543 = vld [vmem:[%s1538 + $0x20] sm:$0xf]
      %v1544 = vld [vmem:[%s1538 + $0x28] sm:$0xf]
      %v1545 = vld [vmem:[%s1538 + $0x30] sm:$0xf]
      %v1546 = vld [vmem:[%s1538 + $0x38] sm:$0xf]
      %s1547 = scalar_lea.vmem %s4, 448
      %v1548 = vld [vmem:[%s1547] sm:$0xf]
      %v1549 = vld [vmem:[%s1547 + $0x4] sm:$0xf]
      %v1550 = vld [vmem:[%s1547 + $0x8] sm:$0xf]
      %v1551 = vld [vmem:[%s1547 + $0xc] sm:$0xf]
      %v1552 = vld [vmem:[%s1547 + $0x10] sm:$0xf]
      %v1553 = vld [vmem:[%s1547 + $0x14] sm:$0xf]
      %v1554 = vld [vmem:[%s1547 + $0x18] sm:$0xf]
      %v1555 = vld [vmem:[%s1547 + $0x1c] sm:$0xf]
      %v1556 = vld [vmem:[%s1547 + $0x20] sm:$0xf]
      %v1557 = vld [vmem:[%s1547 + $0x24] sm:$0xf]
      %v1558 = vld [vmem:[%s1547 + $0x28] sm:$0xf]
      %v1559 = vld [vmem:[%s1547 + $0x2c] sm:$0xf]
      %v1560 = vld [vmem:[%s1547 + $0x30] sm:$0xf]
      %v1561 = vld [vmem:[%s1547 + $0x34] sm:$0xf]
      %v1562 = vld [vmem:[%s1547 + $0x38] sm:$0xf]
      %v1563 = vld [vmem:[%s1547 + $0x3c] sm:$0xf]
      %v1572 = vunpack.c.l.b16 %v1539
      %v1573 = vunpack.c.l.b16 %v1540
      %v1574 = vunpack.c.l.b16 %v1541
      %v1575 = vunpack.c.l.b16 %v1542
      %v1576 = vunpack.c.l.b16 %v1543
      %v1577 = vunpack.c.l.b16 %v1544
      %v1578 = vunpack.c.l.b16 %v1545
      %v1579 = vunpack.c.l.b16 %v1546
      %v1580 = vpack.c.b16 %v1573, %v1572
      %v1581 = vpack.c.b16 %v1575, %v1574
      %v1582 = vpack.c.b16 %v1577, %v1576
      %v1583 = vpack.c.b16 %v1579, %v1578
      %v1604 = vunpack.c.l.b16 %v1548
      %v1605 = vunpack.c.l.b16 %v1549
      %v1606 = vunpack.c.l.b16 %v1550
      %v1607 = vunpack.c.l.b16 %v1551
      %v1608 = vunpack.c.l.b16 %v1552
      %v1609 = vunpack.c.l.b16 %v1553
      %v1610 = vunpack.c.l.b16 %v1554
      %v1611 = vunpack.c.l.b16 %v1555
      %v1612 = vunpack.c.l.b16 %v1556
      %v1613 = vunpack.c.l.b16 %v1557
      %v1614 = vunpack.c.l.b16 %v1558
      %v1615 = vunpack.c.l.b16 %v1559
      %v1616 = vunpack.c.l.b16 %v1560
      %v1617 = vunpack.c.l.b16 %v1561
      %v1618 = vunpack.c.l.b16 %v1562
      %v1619 = vunpack.c.l.b16 %v1563
      %v1620 = vpack.c.b16 %v1605, %v1604
      %v1621 = vpack.c.b16 %v1607, %v1606
      %v1622 = vpack.c.b16 %v1609, %v1608
      %v1623 = vpack.c.b16 %v1611, %v1610
      %v1624 = vpack.c.b16 %v1613, %v1612
      %v1625 = vpack.c.b16 %v1615, %v1614
      %v1626 = vpack.c.b16 %v1617, %v1616
      %v1627 = vpack.c.b16 %v1619, %v1618
      %1636 = vmatpush.bf16.msra.mxu0 %v1627
      %1637 = vmatpush.bf16.msra.mxu0 %v1626
      %1638 = vmatpush.bf16.msra.mxu0 %v1625
      %1639 = vmatpush.bf16.msra.mxu0 %v1624
      %1640 = vmatpush.bf16.msra.mxu0 %v1623
      %1641 = vmatpush.bf16.msra.mxu0 %v1622
      %1642 = vmatpush.bf16.msra.mxu0 %v1621
      %1643 = vmatpush.bf16.msra.mxu0 %v1620
      %1644 = vmatmul.bf16.gmra.mxu0 %v1580
      %v1645 = vpop.f32.mrf.mxu0
      %v1646 = vadd.f32 0.0, %v1645
      %v1647 = vpop.f32.mrf.mxu0
      %v1648 = vadd.f32 0.0, %v1647
      %1649 = vmatmul.bf16.gmra.mxu0 %v1581
      %v1650 = vpop.f32.mrf.mxu0
      %v1651 = vadd.f32 0.0, %v1650
      %v1652 = vpop.f32.mrf.mxu0
      %v1653 = vadd.f32 0.0, %v1652
      %1654 = vmatmul.bf16.gmra.mxu0 %v1582
      %v1655 = vpop.f32.mrf.mxu0
      %v1656 = vadd.f32 0.0, %v1655
      %v1657 = vpop.f32.mrf.mxu0
      %v1658 = vadd.f32 0.0, %v1657
      %1659 = vmatmul.bf16.gmra.mxu0 %v1583
      %v1660 = vpop.f32.mrf.mxu0
      %v1661 = vadd.f32 0.0, %v1660
      %v1662 = vpop.f32.mrf.mxu0
      %v1663 = vadd.f32 0.0, %v1662
      %1664 = vdwg.mxu0
      %v1665 = vadd.f32 %v1530, %v1646
      %v1666 = vadd.f32 %v1531, %v1648
      %v1667 = vadd.f32 %v1532, %v1651
      %v1668 = vadd.f32 %v1533, %v1653
      %v1669 = vadd.f32 %v1534, %v1656
      %v1670 = vadd.f32 %v1535, %v1658
      %v1671 = vadd.f32 %v1536, %v1661
      %v1672 = vadd.f32 %v1537, %v1663
      %v1673 = vld [vmem:[%s1403] sm:$0xf]
      %v1674 = vld [vmem:[%s1403 + $0x4] sm:$0x1]
      %v1675 = vld [vmem:[%s1403 + $0x8] sm:$0xf]
      %v1676 = vld [vmem:[%s1403 + $0xc] sm:$0x1]
      %v1677 = vld [vmem:[%s1403 + $0x10] sm:$0xf]
      %v1678 = vld [vmem:[%s1403 + $0x14] sm:$0x1]
      %v1679 = vld [vmem:[%s1403 + $0x18] sm:$0xf]
      %v1680 = vld [vmem:[%s1403 + $0x1c] sm:$0x1]
      %v1681 = vld [vmem:[%s1403 + $0x20] sm:$0xf]
      %v1682 = vld [vmem:[%s1403 + $0x24] sm:$0x1]
      %v1683 = vld [vmem:[%s1403 + $0x28] sm:$0xf]
      %v1684 = vld [vmem:[%s1403 + $0x2c] sm:$0x1]
      %v1685 = vld [vmem:[%s1403 + $0x30] sm:$0xf]
      %v1686 = vld [vmem:[%s1403 + $0x34] sm:$0x1]
      %v1687 = vld [vmem:[%s1403 + $0x38] sm:$0xf]
      %v1688 = vld [vmem:[%s1403 + $0x3c] sm:$0x1]
      %v1690 = vshrl.u32 %v1673, 16
      %v1692 = vrot.slane %v1690, 4
      %v1693 = vshll.u32 %v1673, 16
      %v1695 = vrot.slane %v1693, 5
      %v1696 = vor.u32 %v1692, %v1695
      %v1697 = vrot.slane %v1696, 4
      %v1699 = vshll.u32 %v1674, 16
      %v1701 = vrot.slane %v1699, 5
      %v1702 = vsel %vm658, %v1697, %v1701
      %v1704 = vshrl.u32 %v1675, 16
      %v1706 = vrot.slane %v1704, 4
      %v1707 = vshll.u32 %v1675, 16
      %v1709 = vrot.slane %v1707, 5
      %v1710 = vor.u32 %v1706, %v1709
      %v1711 = vrot.slane %v1710, 4
      %v1713 = vshll.u32 %v1676, 16
      %v1715 = vrot.slane %v1713, 5
      %v1716 = vsel %vm658, %v1711, %v1715
      %v1718 = vshrl.u32 %v1677, 16
      %v1720 = vrot.slane %v1718, 4
      %v1721 = vshll.u32 %v1677, 16
      %v1723 = vrot.slane %v1721, 5
      %v1724 = vor.u32 %v1720, %v1723
      %v1725 = vrot.slane %v1724, 4
      %v1727 = vshll.u32 %v1678, 16
      %v1729 = vrot.slane %v1727, 5
      %v1730 = vsel %vm658, %v1725, %v1729
      %v1732 = vshrl.u32 %v1679, 16
      %v1734 = vrot.slane %v1732, 4
      %v1735 = vshll.u32 %v1679, 16
      %v1737 = vrot.slane %v1735, 5
      %v1738 = vor.u32 %v1734, %v1737
      %v1739 = vrot.slane %v1738, 4
      %v1741 = vshll.u32 %v1680, 16
      %v1743 = vrot.slane %v1741, 5
      %v1744 = vsel %vm658, %v1739, %v1743
      %v1746 = vshrl.u32 %v1681, 16
      %v1748 = vrot.slane %v1746, 4
      %v1749 = vshll.u32 %v1681, 16
      %v1751 = vrot.slane %v1749, 5
      %v1752 = vor.u32 %v1748, %v1751
      %v1753 = vrot.slane %v1752, 4
      %v1755 = vshll.u32 %v1682, 16
      %v1757 = vrot.slane %v1755, 5
      %v1758 = vsel %vm658, %v1753, %v1757
      %v1760 = vshrl.u32 %v1683, 16
      %v1762 = vrot.slane %v1760, 4
      %v1763 = vshll.u32 %v1683, 16
      %v1765 = vrot.slane %v1763, 5
      %v1766 = vor.u32 %v1762, %v1765
      %v1767 = vrot.slane %v1766, 4
      %v1769 = vshll.u32 %v1684, 16
      %v1771 = vrot.slane %v1769, 5
      %v1772 = vsel %vm658, %v1767, %v1771
      %v1774 = vshrl.u32 %v1685, 16
      %v1776 = vrot.slane %v1774, 4
      %v1777 = vshll.u32 %v1685, 16
      %v1779 = vrot.slane %v1777, 5
      %v1780 = vor.u32 %v1776, %v1779
      %v1781 = vrot.slane %v1780, 4
      %v1783 = vshll.u32 %v1686, 16
      %v1785 = vrot.slane %v1783, 5
      %v1786 = vsel %vm658, %v1781, %v1785
      %v1788 = vshrl.u32 %v1687, 16
      %v1790 = vrot.slane %v1788, 4
      %v1791 = vshll.u32 %v1687, 16
      %v1793 = vrot.slane %v1791, 5
      %v1794 = vor.u32 %v1790, %v1793
      %v1795 = vrot.slane %v1794, 4
      %v1797 = vshll.u32 %v1688, 16
      %v1799 = vrot.slane %v1797, 5
      %v1800 = vsel %vm658, %v1795, %v1799
      %s1801 = scalar_lea.vmem %s4, 512
      %v1802 = vld [vmem:[%s1801] sm:$0xf]
      %v1803 = vld [vmem:[%s1801 + $0x4] sm:$0xf]
      %v1804 = vld [vmem:[%s1801 + $0x8] sm:$0xf]
      %v1805 = vld [vmem:[%s1801 + $0xc] sm:$0xf]
      %v1806 = vld [vmem:[%s1801 + $0x10] sm:$0xf]
      %v1807 = vld [vmem:[%s1801 + $0x14] sm:$0xf]
      %v1808 = vld [vmem:[%s1801 + $0x18] sm:$0xf]
      %v1809 = vld [vmem:[%s1801 + $0x1c] sm:$0xf]
      %v1810 = vld [vmem:[%s1801 + $0x20] sm:$0xf]
      %v1811 = vld [vmem:[%s1801 + $0x24] sm:$0xf]
      %v1812 = vld [vmem:[%s1801 + $0x28] sm:$0xf]
      %v1813 = vld [vmem:[%s1801 + $0x2c] sm:$0xf]
      %v1814 = vld [vmem:[%s1801 + $0x30] sm:$0xf]
      %v1815 = vld [vmem:[%s1801 + $0x34] sm:$0xf]
      %v1816 = vld [vmem:[%s1801 + $0x38] sm:$0xf]
      %v1817 = vld [vmem:[%s1801 + $0x3c] sm:$0xf]
      %v1818 = vunpack.c.l.b16 %v1702
      %v1819 = vunpack.c.l.b16 %v1716
      %v1820 = vunpack.c.l.b16 %v1730
      %v1821 = vunpack.c.l.b16 %v1744
      %v1822 = vunpack.c.l.b16 %v1758
      %v1823 = vunpack.c.l.b16 %v1772
      %v1824 = vunpack.c.l.b16 %v1786
      %v1825 = vunpack.c.l.b16 %v1800
      %v1826 = vpack.c.b16 %v1819, %v1818
      %v1827 = vpack.c.b16 %v1821, %v1820
      %v1828 = vpack.c.b16 %v1823, %v1822
      %v1829 = vpack.c.b16 %v1825, %v1824
      %v1850 = vunpack.c.l.b16 %v1802
      %v1851 = vunpack.c.l.b16 %v1803
      %v1852 = vunpack.c.l.b16 %v1804
      %v1853 = vunpack.c.l.b16 %v1805
      %v1854 = vunpack.c.l.b16 %v1806
      %v1855 = vunpack.c.l.b16 %v1807
      %v1856 = vunpack.c.l.b16 %v1808
      %v1857 = vunpack.c.l.b16 %v1809
      %v1858 = vunpack.c.l.b16 %v1810
      %v1859 = vunpack.c.l.b16 %v1811
      %v1860 = vunpack.c.l.b16 %v1812
      %v1861 = vunpack.c.l.b16 %v1813
      %v1862 = vunpack.c.l.b16 %v1814
      %v1863 = vunpack.c.l.b16 %v1815
      %v1864 = vunpack.c.l.b16 %v1816
      %v1865 = vunpack.c.l.b16 %v1817
      %v1866 = vpack.c.b16 %v1851, %v1850
      %v1867 = vpack.c.b16 %v1853, %v1852
      %v1868 = vpack.c.b16 %v1855, %v1854
      %v1869 = vpack.c.b16 %v1857, %v1856
      %v1870 = vpack.c.b16 %v1859, %v1858
      %v1871 = vpack.c.b16 %v1861, %v1860
      %v1872 = vpack.c.b16 %v1863, %v1862
      %v1873 = vpack.c.b16 %v1865, %v1864
      %1882 = vmatpush.bf16.msra.mxu0 %v1873
      %1883 = vmatpush.bf16.msra.mxu0 %v1872
      %1884 = vmatpush.bf16.msra.mxu0 %v1871
      %1885 = vmatpush.bf16.msra.mxu0 %v1870
      %1886 = vmatpush.bf16.msra.mxu0 %v1869
      %1887 = vmatpush.bf16.msra.mxu0 %v1868
      %1888 = vmatpush.bf16.msra.mxu0 %v1867
      %1889 = vmatpush.bf16.msra.mxu0 %v1866
      %1890 = vmatmul.bf16.gmra.mxu0 %v1826
      %v1891 = vpop.f32.mrf.mxu0
      %v1892 = vadd.f32 0.0, %v1891
      %v1893 = vpop.f32.mrf.mxu0
      %v1894 = vadd.f32 0.0, %v1893
      %1895 = vmatmul.bf16.gmra.mxu0 %v1827
      %v1896 = vpop.f32.mrf.mxu0
      %v1897 = vadd.f32 0.0, %v1896
      %v1898 = vpop.f32.mrf.mxu0
      %v1899 = vadd.f32 0.0, %v1898
      %1900 = vmatmul.bf16.gmra.mxu0 %v1828
      %v1901 = vpop.f32.mrf.mxu0
      %v1902 = vadd.f32 0.0, %v1901
      %v1903 = vpop.f32.mrf.mxu0
      %v1904 = vadd.f32 0.0, %v1903
      %1905 = vmatmul.bf16.gmra.mxu0 %v1829
      %v1906 = vpop.f32.mrf.mxu0
      %v1907 = vadd.f32 0.0, %v1906
      %v1908 = vpop.f32.mrf.mxu0
      %v1909 = vadd.f32 0.0, %v1908
      %1910 = vdwg.mxu0
      %v1911 = vadd.f32 %v1665, %v1892
      %v1912 = vadd.f32 %v1666, %v1894
      %v1913 = vadd.f32 %v1667, %v1897
      %v1914 = vadd.f32 %v1668, %v1899
      %v1915 = vadd.f32 %v1669, %v1902
      %v1916 = vadd.f32 %v1670, %v1904
      %v1917 = vadd.f32 %v1671, %v1907
      %v1918 = vadd.f32 %v1672, %v1909
      %v1919 = vpack.c.bf16 %v1911, %v1911
      %v1920 = vpack.c.bf16 %v1912, %v1912
      %v1921 = vpack.c.bf16 %v1913, %v1913
      %v1922 = vpack.c.bf16 %v1914, %v1914
      %v1923 = vpack.c.bf16 %v1915, %v1915
      %v1924 = vpack.c.bf16 %v1916, %v1916
      %v1925 = vpack.c.bf16 %v1917, %v1917
      %v1926 = vpack.c.bf16 %v1918, %v1918
      %1927 = vst [vmem:[%s379] sm:$0xf] %v1919
      %1928 = vst [vmem:[%s379 + $0x4] sm:$0xf] %v1920
      %1929 = vst [vmem:[%s379 + $0x8] sm:$0xf] %v1921
      %1930 = vst [vmem:[%s379 + $0xc] sm:$0xf] %v1922
      %1931 = vst [vmem:[%s379 + $0x10] sm:$0xf] %v1923
      %1932 = vst [vmem:[%s379 + $0x14] sm:$0xf] %v1924
      %1933 = vst [vmem:[%s379 + $0x18] sm:$0xf] %v1925
      %1934 = vst [vmem:[%s379 + $0x1c] sm:$0xf] %v1926
      %v1935 = vadd.f32 %v1911, %v1912
      %v1936 = vadd.f32 %v1935, %v1913
      %v1937 = vadd.f32 %v1936, %v1914
      %v1938 = vadd.f32 %v1937, %v1915
      %v1939 = vadd.f32 %v1938, %v1916
      %v1940 = vadd.f32 %v1939, %v1917
      %v1941 = vadd.f32 %v1940, %v1918
      %v1942 = vrot.slane %v1941, 4
      %v1943 = vadd.f32 %v1941, %v1942
      %v1944 = vrot.slane %v1943, 2
      %v1945 = vadd.f32 %v1943, %v1944
      %v1946 = vrot.slane %v1945, 1
      %v1947 = vadd.f32 %v1945, %v1946
      %v1948 = vmul.f32 %v1911, %v1911
      %v1949 = vmul.f32 %v1912, %v1912
      %v1950 = vmul.f32 %v1913, %v1913
      %v1951 = vmul.f32 %v1914, %v1914
      %v1952 = vmul.f32 %v1915, %v1915
      %v1953 = vmul.f32 %v1916, %v1916
      %v1954 = vmul.f32 %v1917, %v1917
      %v1955 = vmul.f32 %v1918, %v1918
      %v1956 = vadd.f32 %v1948, %v1949
      %v1957 = vadd.f32 %v1956, %v1950
      %v1958 = vadd.f32 %v1957, %v1951
      %v1959 = vadd.f32 %v1958, %v1952
      %v1960 = vadd.f32 %v1959, %v1953
      %v1961 = vadd.f32 %v1960, %v1954
      %v1962 = vadd.f32 %v1961, %v1955
      %v1963 = vrot.slane %v1962, 4
      %v1964 = vadd.f32 %v1962, %v1963
      %v1965 = vrot.slane %v1964, 2
      %v1966 = vadd.f32 %v1964, %v1965
      %v1967 = vrot.slane %v1966, 1
      %v1968 = vadd.f32 %v1966, %v1967
      %v1969 = vld [vmem:[%s5] sm:$0xf]
      %v1970 = vld [vmem:[%s5 + $0x4] sm:$0xf]
      %v1971 = vld [vmem:[%s5 + $0x8] sm:$0xf]
      %v1972 = vld [vmem:[%s5 + $0xc] sm:$0xf]
      %v1973 = vld [vmem:[%s5 + $0x10] sm:$0xf]
      %v1974 = vld [vmem:[%s5 + $0x14] sm:$0xf]
      %v1975 = vld [vmem:[%s5 + $0x18] sm:$0xf]
      %v1976 = vld [vmem:[%s5 + $0x1c] sm:$0xf]
      %v1977 = vld [vmem:[%s5 + $0x20] sm:$0xf]
      %v1978 = vld [vmem:[%s5 + $0x24] sm:$0xf]
      %v1979 = vld [vmem:[%s5 + $0x28] sm:$0xf]
      %v1980 = vld [vmem:[%s5 + $0x2c] sm:$0xf]
      %v1981 = vld [vmem:[%s5 + $0x30] sm:$0xf]
      %v1982 = vld [vmem:[%s5 + $0x34] sm:$0xf]
      %v1983 = vld [vmem:[%s5 + $0x38] sm:$0xf]
      %v1984 = vld [vmem:[%s5 + $0x3c] sm:$0xf]
      %v2001 = vunpack.c.l.b16 %v1969
      %v2002 = vunpack.c.l.b16 %v1970
      %v2003 = vunpack.c.l.b16 %v1971
      %v2004 = vunpack.c.l.b16 %v1972
      %v2005 = vunpack.c.l.b16 %v1973
      %v2006 = vunpack.c.l.b16 %v1974
      %v2007 = vunpack.c.l.b16 %v1975
      %v2008 = vunpack.c.l.b16 %v1976
      %v2009 = vunpack.c.l.b16 %v1977
      %v2010 = vunpack.c.l.b16 %v1978
      %v2011 = vunpack.c.l.b16 %v1979
      %v2012 = vunpack.c.l.b16 %v1980
      %v2013 = vunpack.c.l.b16 %v1981
      %v2014 = vunpack.c.l.b16 %v1982
      %v2015 = vunpack.c.l.b16 %v1983
      %v2016 = vunpack.c.l.b16 %v1984
      %v2017 = vpack.c.b16 %v2002, %v2001
      %v2018 = vpack.c.b16 %v2004, %v2003
      %v2019 = vpack.c.b16 %v2006, %v2005
      %v2020 = vpack.c.b16 %v2008, %v2007
      %v2021 = vpack.c.b16 %v2010, %v2009
      %v2022 = vpack.c.b16 %v2012, %v2011
      %v2023 = vpack.c.b16 %v2014, %v2013
      %v2024 = vpack.c.b16 %v2016, %v2015
      %2033 = vmatpush.bf16.msra.mxu0 %v2024
      %2034 = vmatpush.bf16.msra.mxu0 %v2023
      %2035 = vmatpush.bf16.msra.mxu0 %v2022
      %2036 = vmatpush.bf16.msra.mxu0 %v2021
      %2037 = vmatpush.bf16.msra.mxu0 %v2020
      %2038 = vmatpush.bf16.msra.mxu0 %v2019
      %2039 = vmatpush.bf16.msra.mxu0 %v2018
      %2040 = vmatpush.bf16.msra.mxu0 %v2017
      %2041 = vmatmul.bf16.gmra.mxu0 %v1064
      %v2042 = vpop.f32.mrf.mxu0
      %v2043 = vadd.f32 0.0, %v2042
      %v2044 = vpop.f32.mrf.mxu0
      %v2045 = vadd.f32 0.0, %v2044
      %2046 = vmatmul.bf16.gmra.mxu0 %v1065
      %v2047 = vpop.f32.mrf.mxu0
      %v2048 = vadd.f32 0.0, %v2047
      %v2049 = vpop.f32.mrf.mxu0
      %v2050 = vadd.f32 0.0, %v2049
      %2051 = vmatmul.bf16.gmra.mxu0 %v1066
      %v2052 = vpop.f32.mrf.mxu0
      %v2053 = vadd.f32 0.0, %v2052
      %v2054 = vpop.f32.mrf.mxu0
      %v2055 = vadd.f32 0.0, %v2054
      %2056 = vmatmul.bf16.gmra.mxu0 %v1067
      %v2057 = vpop.f32.mrf.mxu0
      %v2058 = vadd.f32 0.0, %v2057
      %v2059 = vpop.f32.mrf.mxu0
      %v2060 = vadd.f32 0.0, %v2059
      %2061 = vdwg.mxu0
      %v2062 = vpack.c.bf16 %v2043, %v2043
      %v2063 = vpack.c.bf16 %v2045, %v2045
      %v2064 = vpack.c.bf16 %v2048, %v2048
      %v2065 = vpack.c.bf16 %v2050, %v2050
      %v2066 = vpack.c.bf16 %v2053, %v2053
      %v2067 = vpack.c.bf16 %v2055, %v2055
      %v2068 = vpack.c.bf16 %v2058, %v2058
      %v2069 = vpack.c.bf16 %v2060, %v2060
      %2070 = vst [vmem:[%s384] sm:$0xf] %v2062
      %2071 = vst [vmem:[%s384 + $0x4] sm:$0xf] %v2063
      %2072 = vst [vmem:[%s384 + $0x8] sm:$0xf] %v2064
      %2073 = vst [vmem:[%s384 + $0xc] sm:$0xf] %v2065
      %2074 = vst [vmem:[%s384 + $0x10] sm:$0xf] %v2066
      %2075 = vst [vmem:[%s384 + $0x14] sm:$0xf] %v2067
      %2076 = vst [vmem:[%s384 + $0x18] sm:$0xf] %v2068
      %2077 = vst [vmem:[%s384 + $0x1c] sm:$0xf] %v2069
      %v2078 = vadd.f32 %v2043, %v2045
      %v2079 = vadd.f32 %v2078, %v2048
      %v2080 = vadd.f32 %v2079, %v2050
      %v2081 = vadd.f32 %v2080, %v2053
      %v2082 = vadd.f32 %v2081, %v2055
      %v2083 = vadd.f32 %v2082, %v2058
      %v2084 = vadd.f32 %v2083, %v2060
      %v2085 = vrot.slane %v2084, 4
      %v2086 = vadd.f32 %v2084, %v2085
      %v2087 = vrot.slane %v2086, 2
      %v2088 = vadd.f32 %v2086, %v2087
      %v2089 = vrot.slane %v2088, 1
      %v2090 = vadd.f32 %v2088, %v2089
      %v2091 = vmul.f32 %v2043, %v2043
      %v2092 = vmul.f32 %v2045, %v2045
      %v2093 = vmul.f32 %v2048, %v2048
      %v2094 = vmul.f32 %v2050, %v2050
      %v2095 = vmul.f32 %v2053, %v2053
      %v2096 = vmul.f32 %v2055, %v2055
      %v2097 = vmul.f32 %v2058, %v2058
      %v2098 = vmul.f32 %v2060, %v2060
      %v2099 = vadd.f32 %v2091, %v2092
      %v2100 = vadd.f32 %v2099, %v2093
      %v2101 = vadd.f32 %v2100, %v2094
      %v2102 = vadd.f32 %v2101, %v2095
      %v2103 = vadd.f32 %v2102, %v2096
      %v2104 = vadd.f32 %v2103, %v2097
      %v2105 = vadd.f32 %v2104, %v2098
      %v2106 = vrot.slane %v2105, 4
      %v2107 = vadd.f32 %v2105, %v2106
      %v2108 = vrot.slane %v2107, 2
      %v2109 = vadd.f32 %v2107, %v2108
      %v2110 = vrot.slane %v2109, 1
      %v2111 = vadd.f32 %v2109, %v2110
      %vm2112 = vcmask 1040384
      %v2113 = vsel %vm2112, %v1947, %v1968
      %vm2114 = vcmask 1041408
      %v2115 = vsel %vm2114, %v2113, %v2090
      %vm2116 = vcmask 1042432
      %v2117 = vsel %vm2116, %v2115, %v2111
      %vm2118 = vcmask 1043456
      %v2119 = vsel %vm2118, %v2117, 0.0
      %vm2120 = vcmask 1044480
      %v2121 = vsel %vm2120, %v2119, 0.0
      %vm2122 = vcmask 1045504
      %v2123 = vsel %vm2122, %v2121, 0.0
      %vm2124 = vcmask 1046528
      %v2125 = vsel %vm2124, %v2123, 0.0
      %2126 = vst [vmem:[%s388] sm:$0xff] %v2125
      %p2127 = scmp.lt.s32.totalorder %s20, 1
      %s2128 = scalar_select %p2127, %s20, 1
      %s2129 = smul.addr %s2128, 8
      %s2130 = smul.addr %s2129, 4
      %s2131 = scalar_lea.vmem %s6, %s2130
      %p2132 = scmp.lt.s32.totalorder %s20, 1
      %s2133 = scalar_select %p2132, %s20, 1
      %s2134 = smul.addr %s2133, 8
      %s2135 = smul.addr %s2134, 4
      %s2136 = scalar_lea.vmem %s7, %s2135
      %p2137 = scmp.lt.s32.totalorder %s20, 1
      %s2138 = scalar_select %p2137, %s20, 1
      %s2139 = smul.addr %s2138, 8
      %s2140 = scalar_lea.vmem %s8, %s2139
      // Predicated region
      $region45: #{basic_block_forward.3} parent=43 // pred_check
        %p2141 = pneg %p184
      $region46: #{basic_block_forward.3} parent=43 // pred_check_branch
        %2143 = sbr.rel (%p2141) target = $region48
      $region47: #{basic_block_forward.3} parent=43 // pred_region
        _
      $region48: #{basic_block_forward.3} parent=43 // pred_fallthru
        _
      // Predicated region
      $region49: #{basic_block_forward.3} parent=43 // pred_check
        %p2144 = pneg %p210
      $region50: #{basic_block_forward.3} parent=43 // pred_check_branch
        %2146 = sbr.rel (%p2144) target = $region52
      $region51: #{basic_block_forward.3} parent=43 // pred_region
        _
      $region52: #{basic_block_forward.3} parent=43 // pred_fallthru
        _
      // Predicated region
      $region53: #{basic_block_forward.3} parent=43 // pred_check
        %p2147 = pneg %p236
      $region54: #{basic_block_forward.3} parent=43 // pred_check_branch
        %2149 = sbr.rel (%p2147) target = $region56
      $region55: #{basic_block_forward.3} parent=43 // pred_region
        _
      $region56: #{basic_block_forward.3} parent=43 // pred_fallthru
        _
    $region44: #{basic_block_forward.3} parent=5 // pred_fallthru
      _
    %p2150 = scmp.le.s32.totalorder 2, %s15
    // Predicated region
    $region57: #{basic_block_forward.3} parent=5 // pred_check
      %p2151 = pneg %p2150
    $region58: #{basic_block_forward.3} parent=5 // pred_check_branch
      %2153 = sbr.rel (%p2151) target = $region60
    $region59: #{basic_block_forward.3} parent=5 // pred_region
      %s2154 = ssub.s32 %s15, 2
      // Predicated region
      $region61: #{basic_block_forward.3} parent=59 // pred_check
        %p2155 = pneg %p190
      $region62: #{basic_block_forward.3} parent=59 // pred_check_branch
        %2157 = sbr.rel (%p2155) target = $region64
      $region63: #{basic_block_forward.3} parent=59 // pred_region
        %p2158 = scmp.lt.s32.totalorder %s21, 1
        %s2159 = scalar_select %p2158, %s21, 1
        %s2160 = smul.addr %s2159, 8
        %s2161 = smul.addr %s2160, 4
        %s2162 = scalar_lea.vmem %s6, %s2161
      $region64: #{basic_block_forward.3} parent=59 // pred_fallthru
        _
      // Predicated region
      $region65: #{basic_block_forward.3} parent=59 // pred_check
        %p2163 = pneg %p216
      $region66: #{basic_block_forward.3} parent=59 // pred_check_branch
        %2165 = sbr.rel (%p2163) target = $region68
      $region67: #{basic_block_forward.3} parent=59 // pred_region
        %p2166 = scmp.lt.s32.totalorder %s21, 1
        %s2167 = scalar_select %p2166, %s21, 1
        %s2168 = smul.addr %s2167, 8
        %s2169 = smul.addr %s2168, 4
        %s2170 = scalar_lea.vmem %s7, %s2169
      $region68: #{basic_block_forward.3} parent=59 // pred_fallthru
        _
      // Predicated region
      $region69: #{basic_block_forward.3} parent=59 // pred_check
        %p2171 = pneg %p242
      $region70: #{basic_block_forward.3} parent=59 // pred_check_branch
        %2173 = sbr.rel (%p2171) target = $region72
      $region71: #{basic_block_forward.3} parent=59 // pred_region
        %p2174 = scmp.lt.s32.totalorder %s21, 1
        %s2175 = scalar_select %p2174, %s21, 1
        %s2176 = smul.addr %s2175, 8
        %s2177 = scalar_lea.vmem %s8, %s2176
      $region72: #{basic_block_forward.3} parent=59 // pred_fallthru
        _
    $region60: #{basic_block_forward.3} parent=5 // pred_fallthru
      _
  $region6: #{basic_block_forward.3} parent=0 // loop_footer
    %s19 = sadd.s32 1, %s15
  $region7: #{basic_block_forward.3} parent=0 // loop_footer_branch
    %14 = sbr.rel target = $region3
  $region8: #{basic_block_forward.3} parent=0 // loop_exit
    _

// kernel: basic_block_forward.4
$region0: #{basic_block_forward.4}
  #allocation0 [shape = 'u32[]', space=smem, size = 0x4, offset = 0x4, fixed_abs, tag = 'smem constant byte address 0x4 - core index']
  #allocation1 [shape = 'u32[72,128]{1,0:T(1,128)}', space=vmem, size = 0x9000, scoped, tag = 'internal scratch']
  #allocation2 [shape = 'bf16[10,10,128]{2,1,0:T(8,128)(2,1)}', space=vmem, size = 0xa000, scoped, tag = 'scratch operand']
  %s0 = inlined_call_operand.vmem [shape: bf16[2,8,8,128], index: 0, kind: input, shape index: {}]
  %s1 = inlined_call_operand.vmem [shape: f32[1,128], index: 1, kind: input, shape index: {}]
  %s2 = inlined_call_operand.vmem [shape: f32[1,128], index: 2, kind: input, shape index: {}]
  %s3 = inlined_call_operand.vmem [shape: bf16[9,128,128], index: 3, kind: input, shape index: {}]
  %s4 = inlined_call_operand.vmem [shape: bf16[2,8,8,128], index: 4, kind: output, shape index: {0}]
  %s5 = inlined_call_operand.vmem [shape: f32[2,8,128], index: 5, kind: output, shape index: {1}]
  %6 = xla_tuple %s4, %s5
  %s7 = sld [smem:[#allocation0]]
  $region57: #{basic_block_forward.4} parent=0
    _
  %s9 = ssub.s32 1, %s7
  %s10 = scalar_select 0, %s9, %s7
  loop: start=0, step=1, limit=4
  $region2: #{basic_block_forward.4} parent=0 // loop_pre_header
    _
  $region3: #{basic_block_forward.4} parent=0 // loop_header
    %s12 = sphi 0, %s16
    %p13 = scmp.ge.s32.totalorder %s12, 4
    %s22 = sphi 0, %s24
    %s25 = sphi 0, %s22
    %s26 = sphi 0, %s25
    %s42 = sphi 0, %s26
    %s46 = sphi 0, %s46
    %s48 = sphi 0, %s46
    %s49 = sphi 0, %s48
    %s63 = sphi 0, %s49
    %s67 = sphi 0, %s67
    %s69 = sphi 0, %s67
    %s70 = sphi 0, %s69
    %s84 = sphi 0, %s70
    %s88 = sphi 0, %s88
    %s90 = sphi 0, %s88
    %s91 = sphi 0, %s90
    %s105 = sphi 0, %s91
    %s111 = sphi 0, %s113
    %s114 = sphi 0, %s111
    %s115 = sphi 0, %s114
    %s131 = sphi 0, %s115
    %s137 = sphi 0, %s139
    %s140 = sphi 0, %s137
    %s141 = sphi 0, %s140
    %s157 = sphi 0, %s141
  $region4: #{basic_block_forward.4} parent=0 // loop_header_branch
    %15 = sbr.rel (%p13) target = $region8
  $region5: #{basic_block_forward.4} parent=0 // loop_body
    %s17 = ssub.s32 %s12, 1
    %s18 = ssub.s32 %s12, 2
    %s19 = sadd.s32 %s12, 1
    %s20 = ssub.s32 %s12, %s19
    %p21 = scmp.eq.s32.totalorder %s20, 0
    %s23 = sadd.s32 %s22, 1
    %s24 = scalar_select %p21, %s22, %s23
    %p27 = pneg %p21
    %p28 = scmp.eq.s32.totalorder %s12, 1
    %p29 = por %p27, %p28
    %p30 = scmp.ne.s32.totalorder %s22, %s25
    %p31 = scmp.eq.s32.totalorder %s12, 0
    %p32 = por %p30, %p31
    %p33 = scmp.ne.s32.totalorder %s22, %s25
    %p34 = scmp.eq.s32.totalorder %s17, 1
    %p35 = por %p33, %p34
    %p36 = scmp.ne.s32.totalorder %s25, %s26
    %p37 = scmp.eq.s32.totalorder %s17, 0
    %p38 = por %p36, %p37
    %p39 = scmp.ne.s32.totalorder %s25, %s26
    %p40 = scmp.eq.s32.totalorder %s18, 1
    %p41 = por %p39, %p40
    %p43 = scmp.ne.s32.totalorder %s26, %s42
    %p44 = scmp.eq.s32.totalorder %s18, 0
    %p45 = por %p43, %p44
    %s47 = sadd.s32 %s46, 1
    %p50 = scmp.eq.s32.totalorder %s12, 1
    %p51 = scmp.ne.s32.totalorder %s46, %s48
    %p52 = scmp.eq.s32.totalorder %s12, 0
    %p53 = por %p51, %p52
    %p54 = scmp.ne.s32.totalorder %s46, %s48
    %p55 = scmp.eq.s32.totalorder %s17, 1
    %p56 = por %p54, %p55
    %p57 = scmp.ne.s32.totalorder %s48, %s49
    %p58 = scmp.eq.s32.totalorder %s17, 0
    %p59 = por %p57, %p58
    %p60 = scmp.ne.s32.totalorder %s48, %s49
    %p61 = scmp.eq.s32.totalorder %s18, 1
    %p62 = por %p60, %p61
    %p64 = scmp.ne.s32.totalorder %s49, %s63
    %p65 = scmp.eq.s32.totalorder %s18, 0
    %p66 = por %p64, %p65
    %s68 = sadd.s32 %s67, 1
    %p71 = scmp.eq.s32.totalorder %s12, 1
    %p72 = scmp.ne.s32.totalorder %s67, %s69
    %p73 = scmp.eq.s32.totalorder %s12, 0
    %p74 = por %p72, %p73
    %p75 = scmp.ne.s32.totalorder %s67, %s69
    %p76 = scmp.eq.s32.totalorder %s17, 1
    %p77 = por %p75, %p76
    %p78 = scmp.ne.s32.totalorder %s69, %s70
    %p79 = scmp.eq.s32.totalorder %s17, 0
    %p80 = por %p78, %p79
    %p81 = scmp.ne.s32.totalorder %s69, %s70
    %p82 = scmp.eq.s32.totalorder %s18, 1
    %p83 = por %p81, %p82
    %p85 = scmp.ne.s32.totalorder %s70, %s84
    %p86 = scmp.eq.s32.totalorder %s18, 0
    %p87 = por %p85, %p86
    %s89 = sadd.s32 %s88, 1
    %p92 = scmp.eq.s32.totalorder %s12, 1
    %p93 = scmp.ne.s32.totalorder %s88, %s90
    %p94 = scmp.eq.s32.totalorder %s12, 0
    %p95 = por %p93, %p94
    %p96 = scmp.ne.s32.totalorder %s88, %s90
    %p97 = scmp.eq.s32.totalorder %s17, 1
    %p98 = por %p96, %p97
    %p99 = scmp.ne.s32.totalorder %s90, %s91
    %p100 = scmp.eq.s32.totalorder %s17, 0
    %p101 = por %p99, %p100
    %p102 = scmp.ne.s32.totalorder %s90, %s91
    %p103 = scmp.eq.s32.totalorder %s18, 1
    %p104 = por %p102, %p103
    %p106 = scmp.ne.s32.totalorder %s91, %s105
    %p107 = scmp.eq.s32.totalorder %s18, 0
    %p108 = por %p106, %p107
    %s109 = ssub.s32 %s12, %s19
    %p110 = scmp.eq.s32.totalorder %s109, 0
    %s112 = sadd.s32 %s111, 1
    %s113 = scalar_select %p110, %s111, %s112
    %p116 = pneg %p110
    %p117 = scmp.eq.s32.totalorder %s12, 1
    %p118 = por %p116, %p117
    %p119 = scmp.ne.s32.totalorder %s111, %s114
    %p120 = scmp.eq.s32.totalorder %s12, 0
    %p121 = por %p119, %p120
    %p122 = scmp.ne.s32.totalorder %s111, %s114
    %p123 = scmp.eq.s32.totalorder %s17, 1
    %p124 = por %p122, %p123
    %p125 = scmp.ne.s32.totalorder %s114, %s115
    %p126 = scmp.eq.s32.totalorder %s17, 0
    %p127 = por %p125, %p126
    %p128 = scmp.ne.s32.totalorder %s114, %s115
    %p129 = scmp.eq.s32.totalorder %s18, 1
    %p130 = por %p128, %p129
    %p132 = scmp.ne.s32.totalorder %s115, %s131
    %p133 = scmp.eq.s32.totalorder %s18, 0
    %p134 = por %p132, %p133
    %s135 = ssub.s32 %s12, %s19
    %p136 = scmp.eq.s32.totalorder %s135, 0
    %s138 = sadd.s32 %s137, 1
    %s139 = scalar_select %p136, %s137, %s138
    %p142 = pneg %p136
    %p143 = scmp.eq.s32.totalorder %s12, 1
    %p144 = por %p142, %p143
    %p145 = scmp.ne.s32.totalorder %s137, %s140
    %p146 = scmp.eq.s32.totalorder %s12, 0
    %p147 = por %p145, %p146
    %p148 = scmp.ne.s32.totalorder %s137, %s140
    %p149 = scmp.eq.s32.totalorder %s17, 1
    %p150 = por %p148, %p149
    %p151 = scmp.ne.s32.totalorder %s140, %s141
    %p152 = scmp.eq.s32.totalorder %s17, 0
    %p153 = por %p151, %p152
    %p154 = scmp.ne.s32.totalorder %s140, %s141
    %p155 = scmp.eq.s32.totalorder %s18, 1
    %p156 = por %p154, %p155
    %p158 = scmp.ne.s32.totalorder %s141, %s157
    %p159 = scmp.eq.s32.totalorder %s18, 0
    %p160 = por %p158, %p159
    %p161 = scmp.le.s32.totalorder 1, %s12
    %p162 = scmp.lt.s32.totalorder %s12, 3
    %p163 = pnand %p161, %p162
    %p164 = pneg %p163
    // Predicated region
    $region9: #{basic_block_forward.4} parent=5 // pred_check
      _
    $region10: #{basic_block_forward.4} parent=5 // pred_check_branch
      %166 = sbr.rel (%p163) target = $region12
    $region11: #{basic_block_forward.4} parent=5 // pred_region
      %s167 = ssub.s32 %s12, 1
      // Predicated region
      $region13: #{basic_block_forward.4} parent=11 // pred_check
        %p168 = pneg %p59
      $region14: #{basic_block_forward.4} parent=11 // pred_check_branch
        %170 = sbr.rel (%p168) target = $region16
      $region15: #{basic_block_forward.4} parent=11 // pred_region
        _
      $region16: #{basic_block_forward.4} parent=11 // pred_fallthru
        _
      // Predicated region
      $region17: #{basic_block_forward.4} parent=11 // pred_check
        %p171 = pneg %p80
      $region18: #{basic_block_forward.4} parent=11 // pred_check_branch
        %173 = sbr.rel (%p171) target = $region20
      $region19: #{basic_block_forward.4} parent=11 // pred_region
        _
      $region20: #{basic_block_forward.4} parent=11 // pred_fallthru
        _
      // Predicated region
      $region21: #{basic_block_forward.4} parent=11 // pred_check
        %p174 = pneg %p101
      $region22: #{basic_block_forward.4} parent=11 // pred_check_branch
        %176 = sbr.rel (%p174) target = $region24
      $region23: #{basic_block_forward.4} parent=11 // pred_region
        _
      $region24: #{basic_block_forward.4} parent=11 // pred_fallthru
        _
    $region12: #{basic_block_forward.4} parent=5 // pred_fallthru
      _
    %p177 = scmp.lt.s32.totalorder %s12, 2
    // Predicated region
    $region25: #{basic_block_forward.4} parent=5 // pred_check
      %p178 = pneg %p177
    $region26: #{basic_block_forward.4} parent=5 // pred_check_branch
      %180 = sbr.rel (%p178) target = $region28
    $region27: #{basic_block_forward.4} parent=5 // pred_region
      // Predicated region
      $region29: #{basic_block_forward.4} parent=27 // pred_check
        %p181 = pneg %p32
      $region30: #{basic_block_forward.4} parent=27 // pred_check_branch
        %183 = sbr.rel (%p181) target = $region32
      $region31: #{basic_block_forward.4} parent=27 // pred_region
        %p184 = scmp.lt.s32.totalorder %s12, 1
        %s185 = scalar_select %p184, %s12, 1
        %s186 = smul.addr %s185, 8
        %s187 = smul.addr %s186, 4
        %s188 = scalar_lea.vmem %s0, %s187
      $region32: #{basic_block_forward.4} parent=27 // pred_fallthru
        _
    $region28: #{basic_block_forward.4} parent=5 // pred_fallthru
      _
    %p189 = scmp.le.s32.totalorder 1, %s12
    %p190 = scmp.lt.s32.totalorder %s12, 3
    %p191 = pnand %p189, %p190
    %p192 = pneg %p191
    // Predicated region
    $region33: #{basic_block_forward.4} parent=5 // pred_check
      _
    $region34: #{basic_block_forward.4} parent=5 // pred_check_branch
      %194 = sbr.rel (%p191) target = $region36
    $region35: #{basic_block_forward.4} parent=5 // pred_region
      %s195 = ssub.s32 %s12, 1
      %p196 = scmp.lt.s32.totalorder %s17, 1
      %s197 = scalar_select %p196, %s17, 1
      %s198 = smul.addr %s197, 8
      %s199 = smul.addr %s198, 4
      %s200 = scalar_lea.vmem %s0, %s199
      %p201 = pneg %p38
      %p202 = pneg %p35
      %p203 = pneg %p59
      %p204 = pneg %p56
      %p205 = pneg %p80
      %p206 = pneg %p77
      %p207 = pneg %p101
      %p208 = pneg %p98
      %p209 = pneg %p127
      %p210 = pneg %p124
      %p211 = scmp.lt.s32.totalorder %s17, 1
      %s212 = scalar_select %p211, %s17, 1
      %s213 = smul.addr %s212, 8
      %s214 = smul.addr %s213, 4
      %s215 = scalar_lea.vmem %s4, %s214
      %p216 = pneg %p153
      %p217 = pneg %p150
      %p218 = scmp.lt.s32.totalorder %s17, 1
      %s219 = scalar_select %p218, %s17, 1
      %s220 = smul.addr %s219, 8
      %s221 = scalar_lea.vmem %s5, %s220
      %p222 = scmp.lt.s32.totalorder %s17, 1
      %s223 = scalar_select %p222, %s17, 1
      %s224 = smul.addr %s223, 8
      %s225 = smul.addr %s224, 4
      %s226 = scalar_lea.vmem %s0, %s225
      %p227 = scmp.lt.s32.totalorder %s17, 1
      %s228 = scalar_select %p227, %s17, 1
      %s229 = smul.addr %s228, 8
      %s230 = smul.addr %s229, 4
      %s231 = scalar_lea.vmem %s4, %s230
      %p232 = scmp.lt.s32.totalorder %s17, 1
      %s233 = scalar_select %p232, %s17, 1
      %s234 = smul.addr %s233, 8
      %s235 = scalar_lea.vmem %s5, %s234
      %v237 = vld [vmem:[%s226] sm:$0xf]
      %v238 = vld [vmem:[%s226 + $0x4] sm:$0xf]
      %v239 = vld [vmem:[%s226 + $0x8] sm:$0xf]
      %v240 = vld [vmem:[%s226 + $0xc] sm:$0xf]
      %v241 = vld [vmem:[%s226 + $0x10] sm:$0xf]
      %v242 = vld [vmem:[%s226 + $0x14] sm:$0xf]
      %v243 = vld [vmem:[%s226 + $0x18] sm:$0xf]
      %v244 = vld [vmem:[%s226 + $0x1c] sm:$0xf]
      %v245 = vunpack.c.l.bf16 %v237
      %v246 = vunpack.c.l.bf16 %v238
      %v247 = vunpack.c.l.bf16 %v239
      %v248 = vunpack.c.l.bf16 %v240
      %v249 = vunpack.c.l.bf16 %v241
      %v250 = vunpack.c.l.bf16 %v242
      %v251 = vunpack.c.l.bf16 %v243
      %v252 = vunpack.c.l.bf16 %v244
      %v253 = vld [vmem:[%s1] sm:$0x1]
      %v255 = vperm.slane %v253, 0
      %v257 = vmul.f32 %v245, %v255
      %v258 = vmul.f32 %v246, %v255
      %v259 = vmul.f32 %v247, %v255
      %v260 = vmul.f32 %v248, %v255
      %v261 = vmul.f32 %v249, %v255
      %v262 = vmul.f32 %v250, %v255
      %v263 = vmul.f32 %v251, %v255
      %v264 = vmul.f32 %v252, %v255
      %v265 = vld [vmem:[%s2] sm:$0x1]
      %v267 = vperm.slane %v265, 0
      %v269 = vadd.f32 %v257, %v267
      %v270 = vadd.f32 %v258, %v267
      %v271 = vadd.f32 %v259, %v267
      %v272 = vadd.f32 %v260, %v267
      %v273 = vadd.f32 %v261, %v267
      %v274 = vadd.f32 %v262, %v267
      %v275 = vadd.f32 %v263, %v267
      %v276 = vadd.f32 %v264, %v267
      %vm277 = vcmp.gt.f32.partialorder %v269, 0.0
      %vm278 = vcmp.gt.f32.partialorder %v270, 0.0
      %vm279 = vcmp.gt.f32.partialorder %v271, 0.0
      %vm280 = vcmp.gt.f32.partialorder %v272, 0.0
      %vm281 = vcmp.gt.f32.partialorder %v273, 0.0
      %vm282 = vcmp.gt.f32.partialorder %v274, 0.0
      %vm283 = vcmp.gt.f32.partialorder %v275, 0.0
      %vm284 = vcmp.gt.f32.partialorder %v276, 0.0
      %v285 = vmul.f32 %v269, 0.01
      %v286 = vmul.f32 %v270, 0.01
      %v287 = vmul.f32 %v271, 0.01
      %v288 = vmul.f32 %v272, 0.01
      %v289 = vmul.f32 %v273, 0.01
      %v290 = vmul.f32 %v274, 0.01
      %v291 = vmul.f32 %v275, 0.01
      %v292 = vmul.f32 %v276, 0.01
      %v293 = vsel %vm277, %v269, %v285
      %v294 = vsel %vm278, %v270, %v286
      %v295 = vsel %vm279, %v271, %v287
      %v296 = vsel %vm280, %v272, %v288
      %v297 = vsel %vm281, %v273, %v289
      %v298 = vsel %vm282, %v274, %v290
      %v299 = vsel %vm283, %v275, %v291
      %v300 = vsel %vm284, %v276, %v292
      %301 = vst [vmem:[#allocation2] sm:$0xf] 0
      %302 = vst [vmem:[#allocation2 + $0x4] sm:$0x1] 0
      %303 = vst [vmem:[#allocation2 + $0x8] sm:$0xf] 0
      %304 = vst [vmem:[#allocation2 + $0xc] sm:$0x1] 0
      %305 = vst [vmem:[#allocation2 + $0x10] sm:$0xf] 0
      %306 = vst [vmem:[#allocation2 + $0x14] sm:$0x1] 0
      %307 = vst [vmem:[#allocation2 + $0x18] sm:$0xf] 0
      %308 = vst [vmem:[#allocation2 + $0x1c] sm:$0x1] 0
      %309 = vst [vmem:[#allocation2 + $0x20] sm:$0xf] 0
      %310 = vst [vmem:[#allocation2 + $0x24] sm:$0x1] 0
      %311 = vst [vmem:[#allocation2 + $0x28] sm:$0xf] 0
      %312 = vst [vmem:[#allocation2 + $0x2c] sm:$0x1] 0
      %313 = vst [vmem:[#allocation2 + $0x30] sm:$0xf] 0
      %314 = vst [vmem:[#allocation2 + $0x34] sm:$0x1] 0
      %315 = vst [vmem:[#allocation2 + $0x38] sm:$0xf] 0
      %316 = vst [vmem:[#allocation2 + $0x3c] sm:$0x1] 0
      %317 = vst [vmem:[#allocation2 + $0x40] sm:$0xf] 0
      %318 = vst [vmem:[#allocation2 + $0x44] sm:$0x1] 0
      %319 = vst [vmem:[#allocation2 + $0x48] sm:$0xf] 0
      %320 = vst [vmem:[#allocation2 + $0x4c] sm:$0x1] 0
      %v321 = vpack.c.bf16 %v293, %v293
      %v322 = vpack.c.bf16 %v294, %v294
      %v323 = vpack.c.bf16 %v295, %v295
      %v324 = vpack.c.bf16 %v296, %v296
      %v325 = vpack.c.bf16 %v297, %v297
      %v326 = vpack.c.bf16 %v298, %v298
      %v327 = vpack.c.bf16 %v299, %v299
      %v328 = vpack.c.bf16 %v300, %v300
      %v330 = vshrl.u32 %v321, 16
      %v332 = vrot.slane %v330, 7
      %v333 = vshll.u32 %v321, 16
      %v335 = vor.u32 %v332, %v333
      %v336 = vrot.slane %v332, 4
      %v338 = vshrl.u32 %v322, 16
      %v340 = vrot.slane %v338, 7
      %v341 = vshll.u32 %v322, 16
      %v343 = vor.u32 %v340, %v341
      %v344 = vrot.slane %v340, 4
      %v346 = vshrl.u32 %v323, 16
      %v348 = vrot.slane %v346, 7
      %v349 = vshll.u32 %v323, 16
      %v351 = vor.u32 %v348, %v349
      %v352 = vrot.slane %v348, 4
      %v354 = vshrl.u32 %v324, 16
      %v356 = vrot.slane %v354, 7
      %v357 = vshll.u32 %v324, 16
      %v359 = vor.u32 %v356, %v357
      %v360 = vrot.slane %v356, 4
      %v362 = vshrl.u32 %v325, 16
      %v364 = vrot.slane %v362, 7
      %v365 = vshll.u32 %v325, 16
      %v367 = vor.u32 %v364, %v365
      %v368 = vrot.slane %v364, 4
      %v370 = vshrl.u32 %v326, 16
      %v372 = vrot.slane %v370, 7
      %v373 = vshll.u32 %v326, 16
      %v375 = vor.u32 %v372, %v373
      %v376 = vrot.slane %v372, 4
      %v378 = vshrl.u32 %v327, 16
      %v380 = vrot.slane %v378, 7
      %v381 = vshll.u32 %v327, 16
      %v383 = vor.u32 %v380, %v381
      %v384 = vrot.slane %v380, 4
      %v386 = vshrl.u32 %v328, 16
      %v388 = vrot.slane %v386, 7
      %v389 = vshll.u32 %v328, 16
      %v391 = vor.u32 %v388, %v389
      %v392 = vrot.slane %v388, 4
      %s409 = scalar_lea.vmem [#allocation2], 8
      %vm410 = vcmask 1043456
      %vm411 = vsmask.f32 7938
      %vm412 = vmand %vm410, %vm411
      %v413 = vld [vmem:[%s409] sm:$0xf]
      %v414 = vsel %vm412, %v335, %v413
      %415 = vst [vmem:[%s409] sm:$0xf] %v414
      %vm416 = vcmask 1040384
      %vm417 = vsmask.f32 256
      %vm418 = vmand %vm416, %vm417
      %v419 = vld [vmem:[%s409 + $0x4] sm:$0x1]
      %v420 = vsel %vm418, %v336, %v419
      %421 = vst [vmem:[%s409 + $0x4] sm:$0x1] %v420
      %v422 = vld [vmem:[%s409 + $0x8] sm:$0xf]
      %v423 = vsel %vm412, %v343, %v422
      %424 = vst [vmem:[%s409 + $0x8] sm:$0xf] %v423
      %v425 = vld [vmem:[%s409 + $0xc] sm:$0x1]
      %v426 = vsel %vm418, %v344, %v425
      %427 = vst [vmem:[%s409 + $0xc] sm:$0x1] %v426
      %v428 = vld [vmem:[%s409 + $0x10] sm:$0xf]
      %v429 = vsel %vm412, %v351, %v428
      %430 = vst [vmem:[%s409 + $0x10] sm:$0xf] %v429
      %v431 = vld [vmem:[%s409 + $0x14] sm:$0x1]
      %v432 = vsel %vm418, %v352, %v431
      %433 = vst [vmem:[%s409 + $0x14] sm:$0x1] %v432
      %v434 = vld [vmem:[%s409 + $0x18] sm:$0xf]
      %v435 = vsel %vm412, %v359, %v434
      %436 = vst [vmem:[%s409 + $0x18] sm:$0xf] %v435
      %v437 = vld [vmem:[%s409 + $0x1c] sm:$0x1]
      %v438 = vsel %vm418, %v360, %v437
      %439 = vst [vmem:[%s409 + $0x1c] sm:$0x1] %v438
      %v440 = vld [vmem:[%s409 + $0x20] sm:$0xf]
      %v441 = vsel %vm412, %v367, %v440
      %442 = vst [vmem:[%s409 + $0x20] sm:$0xf] %v441
      %v443 = vld [vmem:[%s409 + $0x24] sm:$0x1]
      %v444 = vsel %vm418, %v368, %v443
      %445 = vst [vmem:[%s409 + $0x24] sm:$0x1] %v444
      %v446 = vld [vmem:[%s409 + $0x28] sm:$0xf]
      %v447 = vsel %vm412, %v375, %v446
      %448 = vst [vmem:[%s409 + $0x28] sm:$0xf] %v447
      %v449 = vld [vmem:[%s409 + $0x2c] sm:$0x1]
      %v450 = vsel %vm418, %v376, %v449
      %451 = vst [vmem:[%s409 + $0x2c] sm:$0x1] %v450
      %v452 = vld [vmem:[%s409 + $0x30] sm:$0xf]
      %v453 = vsel %vm412, %v383, %v452
      %454 = vst [vmem:[%s409 + $0x30] sm:$0xf] %v453
      %v455 = vld [vmem:[%s409 + $0x34] sm:$0x1]
      %v456 = vsel %vm418, %v384, %v455
      %457 = vst [vmem:[%s409 + $0x34] sm:$0x1] %v456
      %v458 = vld [vmem:[%s409 + $0x38] sm:$0xf]
      %v459 = vsel %vm412, %v391, %v458
      %460 = vst [vmem:[%s409 + $0x38] sm:$0xf] %v459
      %v461 = vld [vmem:[%s409 + $0x3c] sm:$0x1]
      %v462 = vsel %vm418, %v392, %v461
      %463 = vst [vmem:[%s409 + $0x3c] sm:$0x1] %v462
      %v464 = vld [vmem:[#allocation2] sm:$0xf]
      %v465 = vld [vmem:[#allocation2 + $0x8] sm:$0xf]
      %v466 = vld [vmem:[#allocation2 + $0x10] sm:$0xf]
      %v467 = vld [vmem:[#allocation2 + $0x18] sm:$0xf]
      %v468 = vld [vmem:[#allocation2 + $0x20] sm:$0xf]
      %v469 = vld [vmem:[#allocation2 + $0x28] sm:$0xf]
      %v470 = vld [vmem:[#allocation2 + $0x30] sm:$0xf]
      %v471 = vld [vmem:[#allocation2 + $0x38] sm:$0xf]
      %v472 = vld [vmem:[%s3] sm:$0xf]
      %v473 = vld [vmem:[%s3 + $0x4] sm:$0xf]
      %v474 = vld [vmem:[%s3 + $0x8] sm:$0xf]
      %v475 = vld [vmem:[%s3 + $0xc] sm:$0xf]
      %v476 = vld [vmem:[%s3 + $0x10] sm:$0xf]
      %v477 = vld [vmem:[%s3 + $0x14] sm:$0xf]
      %v478 = vld [vmem:[%s3 + $0x18] sm:$0xf]
      %v479 = vld [vmem:[%s3 + $0x1c] sm:$0xf]
      %v480 = vld [vmem:[%s3 + $0x20] sm:$0xf]
      %v481 = vld [vmem:[%s3 + $0x24] sm:$0xf]
      %v482 = vld [vmem:[%s3 + $0x28] sm:$0xf]
      %v483 = vld [vmem:[%s3 + $0x2c] sm:$0xf]
      %v484 = vld [vmem:[%s3 + $0x30] sm:$0xf]
      %v485 = vld [vmem:[%s3 + $0x34] sm:$0xf]
      %v486 = vld [vmem:[%s3 + $0x38] sm:$0xf]
      %v487 = vld [vmem:[%s3 + $0x3c] sm:$0xf]
      %v488 = vld [vmem:[#allocation2 + $0x4] sm:$0x1]
      %v489 = vld [vmem:[#allocation2 + $0xc] sm:$0x1]
      %v490 = vld [vmem:[#allocation2 + $0x14] sm:$0x1]
      %v491 = vld [vmem:[#allocation2 + $0x1c] sm:$0x1]
      %v492 = vld [vmem:[#allocation2 + $0x24] sm:$0x1]
      %v493 = vld [vmem:[#allocation2 + $0x2c] sm:$0x1]
      %v494 = vld [vmem:[#allocation2 + $0x34] sm:$0x1]
      %v495 = vld [vmem:[#allocation2 + $0x3c] sm:$0x1]
      %vm496 = vsmask.f32 3328
      %vm497 = vsmask.f32 7440
      %vm498 = vmor %vm496, %vm497
      %v500 = vshrl.u32 %v464, 16
      %v502 = vrot.slane %v500, 4
      %v503 = vshll.u32 %v464, 16
      %v505 = vrot.slane %v503, 5
      %v506 = vor.u32 %v502, %v505
      %v507 = vrot.slane %v506, 4
      %v509 = vshll.u32 %v488, 16
      %v511 = vrot.slane %v509, 5
      %v512 = vsel %vm498, %v507, %v511
      %v514 = vshrl.u32 %v465, 16
      %v516 = vrot.slane %v514, 4
      %v517 = vshll.u32 %v465, 16
      %v519 = vrot.slane %v517, 5
      %v520 = vor.u32 %v516, %v519
      %v521 = vrot.slane %v520, 4
      %v523 = vshll.u32 %v489, 16
      %v525 = vrot.slane %v523, 5
      %v526 = vsel %vm498, %v521, %v525
      %v528 = vshrl.u32 %v466, 16
      %v530 = vrot.slane %v528, 4
      %v531 = vshll.u32 %v466, 16
      %v533 = vrot.slane %v531, 5
      %v534 = vor.u32 %v530, %v533
      %v535 = vrot.slane %v534, 4
      %v537 = vshll.u32 %v490, 16
      %v539 = vrot.slane %v537, 5
      %v540 = vsel %vm498, %v535, %v539
      %v542 = vshrl.u32 %v467, 16
      %v544 = vrot.slane %v542, 4
      %v545 = vshll.u32 %v467, 16
      %v547 = vrot.slane %v545, 5
      %v548 = vor.u32 %v544, %v547
      %v549 = vrot.slane %v548, 4
      %v551 = vshll.u32 %v491, 16
      %v553 = vrot.slane %v551, 5
      %v554 = vsel %vm498, %v549, %v553
      %v556 = vshrl.u32 %v468, 16
      %v558 = vrot.slane %v556, 4
      %v559 = vshll.u32 %v468, 16
      %v561 = vrot.slane %v559, 5
      %v562 = vor.u32 %v558, %v561
      %v563 = vrot.slane %v562, 4
      %v565 = vshll.u32 %v492, 16
      %v567 = vrot.slane %v565, 5
      %v568 = vsel %vm498, %v563, %v567
      %v570 = vshrl.u32 %v469, 16
      %v572 = vrot.slane %v570, 4
      %v573 = vshll.u32 %v469, 16
      %v575 = vrot.slane %v573, 5
      %v576 = vor.u32 %v572, %v575
      %v577 = vrot.slane %v576, 4
      %v579 = vshll.u32 %v493, 16
      %v581 = vrot.slane %v579, 5
      %v582 = vsel %vm498, %v577, %v581
      %v584 = vshrl.u32 %v470, 16
      %v586 = vrot.slane %v584, 4
      %v587 = vshll.u32 %v470, 16
      %v589 = vrot.slane %v587, 5
      %v590 = vor.u32 %v586, %v589
      %v591 = vrot.slane %v590, 4
      %v593 = vshll.u32 %v494, 16
      %v595 = vrot.slane %v593, 5
      %v596 = vsel %vm498, %v591, %v595
      %v598 = vshrl.u32 %v471, 16
      %v600 = vrot.slane %v598, 4
      %v601 = vshll.u32 %v471, 16
      %v603 = vrot.slane %v601, 5
      %v604 = vor.u32 %v600, %v603
      %v605 = vrot.slane %v604, 4
      %v607 = vshll.u32 %v495, 16
      %v609 = vrot.slane %v607, 5
      %v610 = vsel %vm498, %v605, %v609
      %s611 = scalar_lea.vmem %s3, 64
      %v612 = vld [vmem:[%s611] sm:$0xf]
      %v613 = vld [vmem:[%s611 + $0x4] sm:$0xf]
      %v614 = vld [vmem:[%s611 + $0x8] sm:$0xf]
      %v615 = vld [vmem:[%s611 + $0xc] sm:$0xf]
      %v616 = vld [vmem:[%s611 + $0x10] sm:$0xf]
      %v617 = vld [vmem:[%s611 + $0x14] sm:$0xf]
      %v618 = vld [vmem:[%s611 + $0x18] sm:$0xf]
      %v619 = vld [vmem:[%s611 + $0x1c] sm:$0xf]
      %v620 = vld [vmem:[%s611 + $0x20] sm:$0xf]
      %v621 = vld [vmem:[%s611 + $0x24] sm:$0xf]
      %v622 = vld [vmem:[%s611 + $0x28] sm:$0xf]
      %v623 = vld [vmem:[%s611 + $0x2c] sm:$0xf]
      %v624 = vld [vmem:[%s611 + $0x30] sm:$0xf]
      %v625 = vld [vmem:[%s611 + $0x34] sm:$0xf]
      %v626 = vld [vmem:[%s611 + $0x38] sm:$0xf]
      %v627 = vld [vmem:[%s611 + $0x3c] sm:$0xf]
      %v628 = vunpack.c.l.b16 %v512
      %v629 = vunpack.c.l.b16 %v526
      %v630 = vunpack.c.l.b16 %v540
      %v631 = vunpack.c.l.b16 %v554
      %v632 = vunpack.c.l.b16 %v568
      %v633 = vunpack.c.l.b16 %v582
      %v634 = vunpack.c.l.b16 %v596
      %v635 = vunpack.c.l.b16 %v610
      %v636 = vpack.c.b16 %v629, %v628
      %v637 = vpack.c.b16 %v631, %v630
      %v638 = vpack.c.b16 %v633, %v632
      %v639 = vpack.c.b16 %v635, %v634
      %v660 = vunpack.c.l.b16 %v612
      %v661 = vunpack.c.l.b16 %v613
      %v662 = vunpack.c.l.b16 %v614
      %v663 = vunpack.c.l.b16 %v615
      %v664 = vunpack.c.l.b16 %v616
      %v665 = vunpack.c.l.b16 %v617
      %v666 = vunpack.c.l.b16 %v618
      %v667 = vunpack.c.l.b16 %v619
      %v668 = vunpack.c.l.b16 %v620
      %v669 = vunpack.c.l.b16 %v621
      %v670 = vunpack.c.l.b16 %v622
      %v671 = vunpack.c.l.b16 %v623
      %v672 = vunpack.c.l.b16 %v624
      %v673 = vunpack.c.l.b16 %v625
      %v674 = vunpack.c.l.b16 %v626
      %v675 = vunpack.c.l.b16 %v627
      %v676 = vpack.c.b16 %v661, %v660
      %v677 = vpack.c.b16 %v663, %v662
      %v678 = vpack.c.b16 %v665, %v664
      %v679 = vpack.c.b16 %v667, %v666
      %v680 = vpack.c.b16 %v669, %v668
      %v681 = vpack.c.b16 %v671, %v670
      %v682 = vpack.c.b16 %v673, %v672
      %v683 = vpack.c.b16 %v675, %v674
      %692 = vmatpush.bf16.msra.mxu0 %v683
      %693 = vmatpush.bf16.msra.mxu0 %v682
      %694 = vmatpush.bf16.msra.mxu0 %v681
      %695 = vmatpush.bf16.msra.mxu0 %v680
      %696 = vmatpush.bf16.msra.mxu0 %v679
      %697 = vmatpush.bf16.msra.mxu0 %v678
      %698 = vmatpush.bf16.msra.mxu0 %v677
      %699 = vmatpush.bf16.msra.mxu0 %v676
      %700 = vmatmul.bf16.gmra.mxu0 %v636
      %v701 = vpop.f32.mrf.mxu0
      %v702 = vadd.f32 0.0, %v701
      %v703 = vpop.f32.mrf.mxu0
      %v704 = vadd.f32 0.0, %v703
      %705 = vmatmul.bf16.gmra.mxu0 %v637
      %v706 = vpop.f32.mrf.mxu0
      %v707 = vadd.f32 0.0, %v706
      %v708 = vpop.f32.mrf.mxu0
      %v709 = vadd.f32 0.0, %v708
      %710 = vmatmul.bf16.gmra.mxu0 %v638
      %v711 = vpop.f32.mrf.mxu0
      %v712 = vadd.f32 0.0, %v711
      %v713 = vpop.f32.mrf.mxu0
      %v714 = vadd.f32 0.0, %v713
      %715 = vmatmul.bf16.gmra.mxu0 %v639
      %v716 = vpop.f32.mrf.mxu0
      %v717 = vadd.f32 0.0, %v716
      %v718 = vpop.f32.mrf.mxu0
      %v719 = vadd.f32 0.0, %v718
      %720 = vdwg.mxu0
      %v729 = vunpack.c.l.b16 %v464
      %v730 = vunpack.c.l.b16 %v465
      %v731 = vunpack.c.l.b16 %v466
      %v732 = vunpack.c.l.b16 %v467
      %v733 = vunpack.c.l.b16 %v468
      %v734 = vunpack.c.l.b16 %v469
      %v735 = vunpack.c.l.b16 %v470
      %v736 = vunpack.c.l.b16 %v471
      %v737 = vpack.c.b16 %v730, %v729
      %v738 = vpack.c.b16 %v732, %v731
      %v739 = vpack.c.b16 %v734, %v733
      %v740 = vpack.c.b16 %v736, %v735
      %v761 = vunpack.c.l.b16 %v472
      %v762 = vunpack.c.l.b16 %v473
      %v763 = vunpack.c.l.b16 %v474
      %v764 = vunpack.c.l.b16 %v475
      %v765 = vunpack.c.l.b16 %v476
      %v766 = vunpack.c.l.b16 %v477
      %v767 = vunpack.c.l.b16 %v478
      %v768 = vunpack.c.l.b16 %v479
      %v769 = vunpack.c.l.b16 %v480
      %v770 = vunpack.c.l.b16 %v481
      %v771 = vunpack.c.l.b16 %v482
      %v772 = vunpack.c.l.b16 %v483
      %v773 = vunpack.c.l.b16 %v484
      %v774 = vunpack.c.l.b16 %v485
      %v775 = vunpack.c.l.b16 %v486
      %v776 = vunpack.c.l.b16 %v487
      %v777 = vpack.c.b16 %v762, %v761
      %v778 = vpack.c.b16 %v764, %v763
      %v779 = vpack.c.b16 %v766, %v765
      %v780 = vpack.c.b16 %v768, %v767
      %v781 = vpack.c.b16 %v770, %v769
      %v782 = vpack.c.b16 %v772, %v771
      %v783 = vpack.c.b16 %v774, %v773
      %v784 = vpack.c.b16 %v776, %v775
      %793 = vmatpush.bf16.msra.mxu0 %v784
      %794 = vmatpush.bf16.msra.mxu0 %v783
      %795 = vmatpush.bf16.msra.mxu0 %v782
      %796 = vmatpush.bf16.msra.mxu0 %v781
      %797 = vmatpush.bf16.msra.mxu0 %v780
      %798 = vmatpush.bf16.msra.mxu0 %v779
      %799 = vmatpush.bf16.msra.mxu0 %v778
      %800 = vmatpush.bf16.msra.mxu0 %v777
      %801 = vmatmul.bf16.gmra.mxu0 %v737
      %v802 = vpop.f32.mrf.mxu0
      %v803 = vadd.f32 %v702, %v802
      %v804 = vpop.f32.mrf.mxu0
      %v805 = vadd.f32 %v704, %v804
      %806 = vmatmul.bf16.gmra.mxu0 %v738
      %v807 = vpop.f32.mrf.mxu0
      %v808 = vadd.f32 %v707, %v807
      %v809 = vpop.f32.mrf.mxu0
      %v810 = vadd.f32 %v709, %v809
      %811 = vmatmul.bf16.gmra.mxu0 %v739
      %v812 = vpop.f32.mrf.mxu0
      %v813 = vadd.f32 %v712, %v812
      %v814 = vpop.f32.mrf.mxu0
      %v815 = vadd.f32 %v714, %v814
      %816 = vmatmul.bf16.gmra.mxu0 %v740
      %v817 = vpop.f32.mrf.mxu0
      %v818 = vadd.f32 %v717, %v817
      %v819 = vpop.f32.mrf.mxu0
      %v820 = vadd.f32 %v719, %v819
      %821 = vdwg.mxu0
      %v822 = vld [vmem:[#allocation2] sm:$0xe]
      %v823 = vld [vmem:[#allocation2 + $0x8] sm:$0xe]
      %v824 = vld [vmem:[#allocation2 + $0x10] sm:$0xe]
      %v825 = vld [vmem:[#allocation2 + $0x18] sm:$0xe]
      %v826 = vld [vmem:[#allocation2 + $0x20] sm:$0xe]
      %v827 = vld [vmem:[#allocation2 + $0x28] sm:$0xe]
      %v828 = vld [vmem:[#allocation2 + $0x30] sm:$0xe]
      %v829 = vld [vmem:[#allocation2 + $0x38] sm:$0xe]
      %vm846 = vcmask 1042432
      %vm847 = vcmask 1046532
      %vm848 = vmor %vm846, %vm847
      %v849 = vrot.slane %v822, 5
      %v850 = vrot.slane %v849, 4
      %v851 = vrot.slane %v488, 5
      %v852 = vsel %vm848, %v850, %v851
      %v853 = vrot.slane %v823, 5
      %v854 = vrot.slane %v853, 4
      %v855 = vrot.slane %v489, 5
      %v856 = vsel %vm848, %v854, %v855
      %v857 = vrot.slane %v824, 5
      %v858 = vrot.slane %v857, 4
      %v859 = vrot.slane %v490, 5
      %v860 = vsel %vm848, %v858, %v859
      %v861 = vrot.slane %v825, 5
      %v862 = vrot.slane %v861, 4
      %v863 = vrot.slane %v491, 5
      %v864 = vsel %vm848, %v862, %v863
      %v865 = vrot.slane %v826, 5
      %v866 = vrot.slane %v865, 4
      %v867 = vrot.slane %v492, 5
      %v868 = vsel %vm848, %v866, %v867
      %v869 = vrot.slane %v827, 5
      %v870 = vrot.slane %v869, 4
      %v871 = vrot.slane %v493, 5
      %v872 = vsel %vm848, %v870, %v871
      %v873 = vrot.slane %v828, 5
      %v874 = vrot.slane %v873, 4
      %v875 = vrot.slane %v494, 5
      %v876 = vsel %vm848, %v874, %v875
      %v877 = vrot.slane %v829, 5
      %v878 = vrot.slane %v877, 4
      %v879 = vrot.slane %v495, 5
      %v880 = vsel %vm848, %v878, %v879
      %s881 = scalar_lea.vmem %s3, 128
      %v882 = vld [vmem:[%s881] sm:$0xf]
      %v883 = vld [vmem:[%s881 + $0x4] sm:$0xf]
      %v884 = vld [vmem:[%s881 + $0x8] sm:$0xf]
      %v885 = vld [vmem:[%s881 + $0xc] sm:$0xf]
      %v886 = vld [vmem:[%s881 + $0x10] sm:$0xf]
      %v887 = vld [vmem:[%s881 + $0x14] sm:$0xf]
      %v888 = vld [vmem:[%s881 + $0x18] sm:$0xf]
      %v889 = vld [vmem:[%s881 + $0x1c] sm:$0xf]
      %v890 = vld [vmem:[%s881 + $0x20] sm:$0xf]
      %v891 = vld [vmem:[%s881 + $0x24] sm:$0xf]
      %v892 = vld [vmem:[%s881 + $0x28] sm:$0xf]
      %v893 = vld [vmem:[%s881 + $0x2c] sm:$0xf]
      %v894 = vld [vmem:[%s881 + $0x30] sm:$0xf]
      %v895 = vld [vmem:[%s881 + $0x34] sm:$0xf]
      %v896 = vld [vmem:[%s881 + $0x38] sm:$0xf]
      %v897 = vld [vmem:[%s881 + $0x3c] sm:$0xf]
      %v898 = vunpack.c.l.b16 %v852
      %v899 = vunpack.c.l.b16 %v856
      %v900 = vunpack.c.l.b16 %v860
      %v901 = vunpack.c.l.b16 %v864
      %v902 = vunpack.c.l.b16 %v868
      %v903 = vunpack.c.l.b16 %v872
      %v904 = vunpack.c.l.b16 %v876
      %v905 = vunpack.c.l.b16 %v880
      %v906 = vpack.c.b16 %v899, %v898
      %v907 = vpack.c.b16 %v901, %v900
      %v908 = vpack.c.b16 %v903, %v902
      %v909 = vpack.c.b16 %v905, %v904
      %v930 = vunpack.c.l.b16 %v882
      %v931 = vunpack.c.l.b16 %v883
      %v932 = vunpack.c.l.b16 %v884
      %v933 = vunpack.c.l.b16 %v885
      %v934 = vunpack.c.l.b16 %v886
      %v935 = vunpack.c.l.b16 %v887
      %v936 = vunpack.c.l.b16 %v888
      %v937 = vunpack.c.l.b16 %v889
      %v938 = vunpack.c.l.b16 %v890
      %v939 = vunpack.c.l.b16 %v891
      %v940 = vunpack.c.l.b16 %v892
      %v941 = vunpack.c.l.b16 %v893
      %v942 = vunpack.c.l.b16 %v894
      %v943 = vunpack.c.l.b16 %v895
      %v944 = vunpack.c.l.b16 %v896
      %v945 = vunpack.c.l.b16 %v897
      %v946 = vpack.c.b16 %v931, %v930
      %v947 = vpack.c.b16 %v933, %v932
      %v948 = vpack.c.b16 %v935, %v934
      %v949 = vpack.c.b16 %v937, %v936
      %v950 = vpack.c.b16 %v939, %v938
      %v951 = vpack.c.b16 %v941, %v940
      %v952 = vpack.c.b16 %v943, %v942
      %v953 = vpack.c.b16 %v945, %v944
      %962 = vmatpush.bf16.msra.mxu0 %v953
      %963 = vmatpush.bf16.msra.mxu0 %v952
      %964 = vmatpush.bf16.msra.mxu0 %v951
      %965 = vmatpush.bf16.msra.mxu0 %v950
      %966 = vmatpush.bf16.msra.mxu0 %v949
      %967 = vmatpush.bf16.msra.mxu0 %v948
      %968 = vmatpush.bf16.msra.mxu0 %v947
      %969 = vmatpush.bf16.msra.mxu0 %v946
      %970 = vmatmul.bf16.gmra.mxu0 %v906
      %v971 = vpop.f32.mrf.mxu0
      %v972 = vadd.f32 0.0, %v971
      %v973 = vpop.f32.mrf.mxu0
      %v974 = vadd.f32 0.0, %v973
      %975 = vmatmul.bf16.gmra.mxu0 %v907
      %v976 = vpop.f32.mrf.mxu0
      %v977 = vadd.f32 0.0, %v976
      %v978 = vpop.f32.mrf.mxu0
      %v979 = vadd.f32 0.0, %v978
      %980 = vmatmul.bf16.gmra.mxu0 %v908
      %v981 = vpop.f32.mrf.mxu0
      %v982 = vadd.f32 0.0, %v981
      %v983 = vpop.f32.mrf.mxu0
      %v984 = vadd.f32 0.0, %v983
      %985 = vmatmul.bf16.gmra.mxu0 %v909
      %v986 = vpop.f32.mrf.mxu0
      %v987 = vadd.f32 0.0, %v986
      %v988 = vpop.f32.mrf.mxu0
      %v989 = vadd.f32 0.0, %v988
      %990 = vdwg.mxu0
      %v991 = vadd.f32 %v803, %v972
      %v992 = vadd.f32 %v805, %v974
      %v993 = vadd.f32 %v808, %v977
      %v994 = vadd.f32 %v810, %v979
      %v995 = vadd.f32 %v813, %v982
      %v996 = vadd.f32 %v815, %v984
      %v997 = vadd.f32 %v818, %v987
      %v998 = vadd.f32 %v820, %v989
      %v999 = vld [vmem:[%s409] sm:$0xf]
      %v1000 = vld [vmem:[%s409 + $0x8] sm:$0xf]
      %v1001 = vld [vmem:[%s409 + $0x10] sm:$0xf]
      %v1002 = vld [vmem:[%s409 + $0x18] sm:$0xf]
      %v1003 = vld [vmem:[%s409 + $0x20] sm:$0xf]
      %v1004 = vld [vmem:[%s409 + $0x28] sm:$0xf]
      %v1005 = vld [vmem:[%s409 + $0x30] sm:$0xf]
      %v1006 = vld [vmem:[%s409 + $0x38] sm:$0xf]
      %s1007 = scalar_lea.vmem %s3, 192
      %v1008 = vld [vmem:[%s1007] sm:$0xf]
      %v1009 = vld [vmem:[%s1007 + $0x4] sm:$0xf]
      %v1010 = vld [vmem:[%s1007 + $0x8] sm:$0xf]
      %v1011 = vld [vmem:[%s1007 + $0xc] sm:$0xf]
      %v1012 = vld [vmem:[%s1007 + $0x10] sm:$0xf]
      %v1013 = vld [vmem:[%s1007 + $0x14] sm:$0xf]
      %v1014 = vld [vmem:[%s1007 + $0x18] sm:$0xf]
      %v1015 = vld [vmem:[%s1007 + $0x1c] sm:$0xf]
      %v1016 = vld [vmem:[%s1007 + $0x20] sm:$0xf]
      %v1017 = vld [vmem:[%s1007 + $0x24] sm:$0xf]
      %v1018 = vld [vmem:[%s1007 + $0x28] sm:$0xf]
      %v1019 = vld [vmem:[%s1007 + $0x2c] sm:$0xf]
      %v1020 = vld [vmem:[%s1007 + $0x30] sm:$0xf]
      %v1021 = vld [vmem:[%s1007 + $0x34] sm:$0xf]
      %v1022 = vld [vmem:[%s1007 + $0x38] sm:$0xf]
      %v1023 = vld [vmem:[%s1007 + $0x3c] sm:$0xf]
      %v1032 = vunpack.c.l.b16 %v999
      %v1033 = vunpack.c.l.b16 %v1000
      %v1034 = vunpack.c.l.b16 %v1001
      %v1035 = vunpack.c.l.b16 %v1002
      %v1036 = vunpack.c.l.b16 %v1003
      %v1037 = vunpack.c.l.b16 %v1004
      %v1038 = vunpack.c.l.b16 %v1005
      %v1039 = vunpack.c.l.b16 %v1006
      %v1040 = vpack.c.b16 %v1033, %v1032
      %v1041 = vpack.c.b16 %v1035, %v1034
      %v1042 = vpack.c.b16 %v1037, %v1036
      %v1043 = vpack.c.b16 %v1039, %v1038
      %v1064 = vunpack.c.l.b16 %v1008
      %v1065 = vunpack.c.l.b16 %v1009
      %v1066 = vunpack.c.l.b16 %v1010
      %v1067 = vunpack.c.l.b16 %v1011
      %v1068 = vunpack.c.l.b16 %v1012
      %v1069 = vunpack.c.l.b16 %v1013
      %v1070 = vunpack.c.l.b16 %v1014
      %v1071 = vunpack.c.l.b16 %v1015
      %v1072 = vunpack.c.l.b16 %v1016
      %v1073 = vunpack.c.l.b16 %v1017
      %v1074 = vunpack.c.l.b16 %v1018
      %v1075 = vunpack.c.l.b16 %v1019
      %v1076 = vunpack.c.l.b16 %v1020
      %v1077 = vunpack.c.l.b16 %v1021
      %v1078 = vunpack.c.l.b16 %v1022
      %v1079 = vunpack.c.l.b16 %v1023
      %v1080 = vpack.c.b16 %v1065, %v1064
      %v1081 = vpack.c.b16 %v1067, %v1066
      %v1082 = vpack.c.b16 %v1069, %v1068
      %v1083 = vpack.c.b16 %v1071, %v1070
      %v1084 = vpack.c.b16 %v1073, %v1072
      %v1085 = vpack.c.b16 %v1075, %v1074
      %v1086 = vpack.c.b16 %v1077, %v1076
      %v1087 = vpack.c.b16 %v1079, %v1078
      %1096 = vmatpush.bf16.msra.mxu0 %v1087
      %1097 = vmatpush.bf16.msra.mxu0 %v1086
      %1098 = vmatpush.bf16.msra.mxu0 %v1085
      %1099 = vmatpush.bf16.msra.mxu0 %v1084
      %1100 = vmatpush.bf16.msra.mxu0 %v1083
      %1101 = vmatpush.bf16.msra.mxu0 %v1082
      %1102 = vmatpush.bf16.msra.mxu0 %v1081
      %1103 = vmatpush.bf16.msra.mxu0 %v1080
      %1104 = vmatmul.bf16.gmra.mxu0 %v1040
      %v1105 = vpop.f32.mrf.mxu0
      %v1106 = vadd.f32 0.0, %v1105
      %v1107 = vpop.f32.mrf.mxu0
      %v1108 = vadd.f32 0.0, %v1107
      %1109 = vmatmul.bf16.gmra.mxu0 %v1041
      %v1110 = vpop.f32.mrf.mxu0
      %v1111 = vadd.f32 0.0, %v1110
      %v1112 = vpop.f32.mrf.mxu0
      %v1113 = vadd.f32 0.0, %v1112
      %1114 = vmatmul.bf16.gmra.mxu0 %v1042
      %v1115 = vpop.f32.mrf.mxu0
      %v1116 = vadd.f32 0.0, %v1115
      %v1117 = vpop.f32.mrf.mxu0
      %v1118 = vadd.f32 0.0, %v1117
      %1119 = vmatmul.bf16.gmra.mxu0 %v1043
      %v1120 = vpop.f32.mrf.mxu0
      %v1121 = vadd.f32 0.0, %v1120
      %v1122 = vpop.f32.mrf.mxu0
      %v1123 = vadd.f32 0.0, %v1122
      %1124 = vdwg.mxu0
      %v1125 = vadd.f32 %v991, %v1106
      %v1126 = vadd.f32 %v992, %v1108
      %v1127 = vadd.f32 %v993, %v1111
      %v1128 = vadd.f32 %v994, %v1113
      %v1129 = vadd.f32 %v995, %v1116
      %v1130 = vadd.f32 %v996, %v1118
      %v1131 = vadd.f32 %v997, %v1121
      %v1132 = vadd.f32 %v998, %v1123
      %v1133 = vld [vmem:[%s409] sm:$0xf]
      %v1134 = vld [vmem:[%s409 + $0x4] sm:$0x1]
      %v1135 = vld [vmem:[%s409 + $0x8] sm:$0xf]
      %v1136 = vld [vmem:[%s409 + $0xc] sm:$0x1]
      %v1137 = vld [vmem:[%s409 + $0x10] sm:$0xf]
      %v1138 = vld [vmem:[%s409 + $0x14] sm:$0x1]
      %v1139 = vld [vmem:[%s409 + $0x18] sm:$0xf]
      %v1140 = vld [vmem:[%s409 + $0x1c] sm:$0x1]
      %v1141 = vld [vmem:[%s409 + $0x20] sm:$0xf]
      %v1142 = vld [vmem:[%s409 + $0x24] sm:$0x1]
      %v1143 = vld [vmem:[%s409 + $0x28] sm:$0xf]
      %v1144 = vld [vmem:[%s409 + $0x2c] sm:$0x1]
      %v1145 = vld [vmem:[%s409 + $0x30] sm:$0xf]
      %v1146 = vld [vmem:[%s409 + $0x34] sm:$0x1]
      %v1147 = vld [vmem:[%s409 + $0x38] sm:$0xf]
      %v1148 = vld [vmem:[%s409 + $0x3c] sm:$0x1]
      %v1150 = vshrl.u32 %v1133, 16
      %v1152 = vrot.slane %v1150, 4
      %v1153 = vshll.u32 %v1133, 16
      %v1155 = vrot.slane %v1153, 5
      %v1156 = vor.u32 %v1152, %v1155
      %v1157 = vrot.slane %v1156, 4
      %v1159 = vshll.u32 %v1134, 16
      %v1161 = vrot.slane %v1159, 5
      %v1162 = vsel %vm498, %v1157, %v1161
      %v1164 = vshrl.u32 %v1135, 16
      %v1166 = vrot.slane %v1164, 4
      %v1167 = vshll.u32 %v1135, 16
      %v1169 = vrot.slane %v1167, 5
      %v1170 = vor.u32 %v1166, %v1169
      %v1171 = vrot.slane %v1170, 4
      %v1173 = vshll.u32 %v1136, 16
      %v1175 = vrot.slane %v1173, 5
      %v1176 = vsel %vm498, %v1171, %v1175
      %v1178 = vshrl.u32 %v1137, 16
      %v1180 = vrot.slane %v1178, 4
      %v1181 = vshll.u32 %v1137, 16
      %v1183 = vrot.slane %v1181, 5
      %v1184 = vor.u32 %v1180, %v1183
      %v1185 = vrot.slane %v1184, 4
      %v1187 = vshll.u32 %v1138, 16
      %v1189 = vrot.slane %v1187, 5
      %v1190 = vsel %vm498, %v1185, %v1189
      %v1192 = vshrl.u32 %v1139, 16
      %v1194 = vrot.slane %v1192, 4
      %v1195 = vshll.u32 %v1139, 16
      %v1197 = vrot.slane %v1195, 5
      %v1198 = vor.u32 %v1194, %v1197
      %v1199 = vrot.slane %v1198, 4
      %v1201 = vshll.u32 %v1140, 16
      %v1203 = vrot.slane %v1201, 5
      %v1204 = vsel %vm498, %v1199, %v1203
      %v1206 = vshrl.u32 %v1141, 16
      %v1208 = vrot.slane %v1206, 4
      %v1209 = vshll.u32 %v1141, 16
      %v1211 = vrot.slane %v1209, 5
      %v1212 = vor.u32 %v1208, %v1211
      %v1213 = vrot.slane %v1212, 4
      %v1215 = vshll.u32 %v1142, 16
      %v1217 = vrot.slane %v1215, 5
      %v1218 = vsel %vm498, %v1213, %v1217
      %v1220 = vshrl.u32 %v1143, 16
      %v1222 = vrot.slane %v1220, 4
      %v1223 = vshll.u32 %v1143, 16
      %v1225 = vrot.slane %v1223, 5
      %v1226 = vor.u32 %v1222, %v1225
      %v1227 = vrot.slane %v1226, 4
      %v1229 = vshll.u32 %v1144, 16
      %v1231 = vrot.slane %v1229, 5
      %v1232 = vsel %vm498, %v1227, %v1231
      %v1234 = vshrl.u32 %v1145, 16
      %v1236 = vrot.slane %v1234, 4
      %v1237 = vshll.u32 %v1145, 16
      %v1239 = vrot.slane %v1237, 5
      %v1240 = vor.u32 %v1236, %v1239
      %v1241 = vrot.slane %v1240, 4
      %v1243 = vshll.u32 %v1146, 16
      %v1245 = vrot.slane %v1243, 5
      %v1246 = vsel %vm498, %v1241, %v1245
      %v1248 = vshrl.u32 %v1147, 16
      %v1250 = vrot.slane %v1248, 4
      %v1251 = vshll.u32 %v1147, 16
      %v1253 = vrot.slane %v1251, 5
      %v1254 = vor.u32 %v1250, %v1253
      %v1255 = vrot.slane %v1254, 4
      %v1257 = vshll.u32 %v1148, 16
      %v1259 = vrot.slane %v1257, 5
      %v1260 = vsel %vm498, %v1255, %v1259
      %s1261 = scalar_lea.vmem %s3, 256
      %v1262 = vld [vmem:[%s1261] sm:$0xf]
      %v1263 = vld [vmem:[%s1261 + $0x4] sm:$0xf]
      %v1264 = vld [vmem:[%s1261 + $0x8] sm:$0xf]
      %v1265 = vld [vmem:[%s1261 + $0xc] sm:$0xf]
      %v1266 = vld [vmem:[%s1261 + $0x10] sm:$0xf]
      %v1267 = vld [vmem:[%s1261 + $0x14] sm:$0xf]
      %v1268 = vld [vmem:[%s1261 + $0x18] sm:$0xf]
      %v1269 = vld [vmem:[%s1261 + $0x1c] sm:$0xf]
      %v1270 = vld [vmem:[%s1261 + $0x20] sm:$0xf]
      %v1271 = vld [vmem:[%s1261 + $0x24] sm:$0xf]
      %v1272 = vld [vmem:[%s1261 + $0x28] sm:$0xf]
      %v1273 = vld [vmem:[%s1261 + $0x2c] sm:$0xf]
      %v1274 = vld [vmem:[%s1261 + $0x30] sm:$0xf]
      %v1275 = vld [vmem:[%s1261 + $0x34] sm:$0xf]
      %v1276 = vld [vmem:[%s1261 + $0x38] sm:$0xf]
      %v1277 = vld [vmem:[%s1261 + $0x3c] sm:$0xf]
      %v1278 = vunpack.c.l.b16 %v1162
      %v1279 = vunpack.c.l.b16 %v1176
      %v1280 = vunpack.c.l.b16 %v1190
      %v1281 = vunpack.c.l.b16 %v1204
      %v1282 = vunpack.c.l.b16 %v1218
      %v1283 = vunpack.c.l.b16 %v1232
      %v1284 = vunpack.c.l.b16 %v1246
      %v1285 = vunpack.c.l.b16 %v1260
      %v1286 = vpack.c.b16 %v1279, %v1278
      %v1287 = vpack.c.b16 %v1281, %v1280
      %v1288 = vpack.c.b16 %v1283, %v1282
      %v1289 = vpack.c.b16 %v1285, %v1284
      %v1310 = vunpack.c.l.b16 %v1262
      %v1311 = vunpack.c.l.b16 %v1263
      %v1312 = vunpack.c.l.b16 %v1264
      %v1313 = vunpack.c.l.b16 %v1265
      %v1314 = vunpack.c.l.b16 %v1266
      %v1315 = vunpack.c.l.b16 %v1267
      %v1316 = vunpack.c.l.b16 %v1268
      %v1317 = vunpack.c.l.b16 %v1269
      %v1318 = vunpack.c.l.b16 %v1270
      %v1319 = vunpack.c.l.b16 %v1271
      %v1320 = vunpack.c.l.b16 %v1272
      %v1321 = vunpack.c.l.b16 %v1273
      %v1322 = vunpack.c.l.b16 %v1274
      %v1323 = vunpack.c.l.b16 %v1275
      %v1324 = vunpack.c.l.b16 %v1276
      %v1325 = vunpack.c.l.b16 %v1277
      %v1326 = vpack.c.b16 %v1311, %v1310
      %v1327 = vpack.c.b16 %v1313, %v1312
      %v1328 = vpack.c.b16 %v1315, %v1314
      %v1329 = vpack.c.b16 %v1317, %v1316
      %v1330 = vpack.c.b16 %v1319, %v1318
      %v1331 = vpack.c.b16 %v1321, %v1320
      %v1332 = vpack.c.b16 %v1323, %v1322
      %v1333 = vpack.c.b16 %v1325, %v1324
      %1342 = vmatpush.bf16.msra.mxu0 %v1333
      %1343 = vmatpush.bf16.msra.mxu0 %v1332
      %1344 = vmatpush.bf16.msra.mxu0 %v1331
      %1345 = vmatpush.bf16.msra.mxu0 %v1330
      %1346 = vmatpush.bf16.msra.mxu0 %v1329
      %1347 = vmatpush.bf16.msra.mxu0 %v1328
      %1348 = vmatpush.bf16.msra.mxu0 %v1327
      %1349 = vmatpush.bf16.msra.mxu0 %v1326
      %1350 = vmatmul.bf16.gmra.mxu0 %v1286
      %v1351 = vpop.f32.mrf.mxu0
      %v1352 = vadd.f32 0.0, %v1351
      %v1353 = vpop.f32.mrf.mxu0
      %v1354 = vadd.f32 0.0, %v1353
      %1355 = vmatmul.bf16.gmra.mxu0 %v1287
      %v1356 = vpop.f32.mrf.mxu0
      %v1357 = vadd.f32 0.0, %v1356
      %v1358 = vpop.f32.mrf.mxu0
      %v1359 = vadd.f32 0.0, %v1358
      %1360 = vmatmul.bf16.gmra.mxu0 %v1288
      %v1361 = vpop.f32.mrf.mxu0
      %v1362 = vadd.f32 0.0, %v1361
      %v1363 = vpop.f32.mrf.mxu0
      %v1364 = vadd.f32 0.0, %v1363
      %1365 = vmatmul.bf16.gmra.mxu0 %v1289
      %v1366 = vpop.f32.mrf.mxu0
      %v1367 = vadd.f32 0.0, %v1366
      %v1368 = vpop.f32.mrf.mxu0
      %v1369 = vadd.f32 0.0, %v1368
      %1370 = vdwg.mxu0
      %v1371 = vadd.f32 %v1125, %v1352
      %v1372 = vadd.f32 %v1126, %v1354
      %v1373 = vadd.f32 %v1127, %v1357
      %v1374 = vadd.f32 %v1128, %v1359
      %v1375 = vadd.f32 %v1129, %v1362
      %v1376 = vadd.f32 %v1130, %v1364
      %v1377 = vadd.f32 %v1131, %v1367
      %v1378 = vadd.f32 %v1132, %v1369
      %v1379 = vld [vmem:[%s409] sm:$0xe]
      %v1380 = vld [vmem:[%s409 + $0x8] sm:$0xe]
      %v1381 = vld [vmem:[%s409 + $0x10] sm:$0xe]
      %v1382 = vld [vmem:[%s409 + $0x18] sm:$0xe]
      %v1383 = vld [vmem:[%s409 + $0x20] sm:$0xe]
      %v1384 = vld [vmem:[%s409 + $0x28] sm:$0xe]
      %v1385 = vld [vmem:[%s409 + $0x30] sm:$0xe]
      %v1386 = vld [vmem:[%s409 + $0x38] sm:$0xe]
      %v1403 = vrot.slane %v1379, 5
      %v1404 = vrot.slane %v1403, 4
      %v1405 = vrot.slane %v1134, 5
      %v1406 = vsel %vm848, %v1404, %v1405
      %v1407 = vrot.slane %v1380, 5
      %v1408 = vrot.slane %v1407, 4
      %v1409 = vrot.slane %v1136, 5
      %v1410 = vsel %vm848, %v1408, %v1409
      %v1411 = vrot.slane %v1381, 5
      %v1412 = vrot.slane %v1411, 4
      %v1413 = vrot.slane %v1138, 5
      %v1414 = vsel %vm848, %v1412, %v1413
      %v1415 = vrot.slane %v1382, 5
      %v1416 = vrot.slane %v1415, 4
      %v1417 = vrot.slane %v1140, 5
      %v1418 = vsel %vm848, %v1416, %v1417
      %v1419 = vrot.slane %v1383, 5
      %v1420 = vrot.slane %v1419, 4
      %v1421 = vrot.slane %v1142, 5
      %v1422 = vsel %vm848, %v1420, %v1421
      %v1423 = vrot.slane %v1384, 5
      %v1424 = vrot.slane %v1423, 4
      %v1425 = vrot.slane %v1144, 5
      %v1426 = vsel %vm848, %v1424, %v1425
      %v1427 = vrot.slane %v1385, 5
      %v1428 = vrot.slane %v1427, 4
      %v1429 = vrot.slane %v1146, 5
      %v1430 = vsel %vm848, %v1428, %v1429
      %v1431 = vrot.slane %v1386, 5
      %v1432 = vrot.slane %v1431, 4
      %v1433 = vrot.slane %v1148, 5
      %v1434 = vsel %vm848, %v1432, %v1433
      %s1435 = scalar_lea.vmem %s3, 320
      %v1436 = vld [vmem:[%s1435] sm:$0xf]
      %v1437 = vld [vmem:[%s1435 + $0x4] sm:$0xf]
      %v1438 = vld [vmem:[%s1435 + $0x8] sm:$0xf]
      %v1439 = vld [vmem:[%s1435 + $0xc] sm:$0xf]
      %v1440 = vld [vmem:[%s1435 + $0x10] sm:$0xf]
      %v1441 = vld [vmem:[%s1435 + $0x14] sm:$0xf]
      %v1442 = vld [vmem:[%s1435 + $0x18] sm:$0xf]
      %v1443 = vld [vmem:[%s1435 + $0x1c] sm:$0xf]
      %v1444 = vld [vmem:[%s1435 + $0x20] sm:$0xf]
      %v1445 = vld [vmem:[%s1435 + $0x24] sm:$0xf]
      %v1446 = vld [vmem:[%s1435 + $0x28] sm:$0xf]
      %v1447 = vld [vmem:[%s1435 + $0x2c] sm:$0xf]
      %v1448 = vld [vmem:[%s1435 + $0x30] sm:$0xf]
      %v1449 = vld [vmem:[%s1435 + $0x34] sm:$0xf]
      %v1450 = vld [vmem:[%s1435 + $0x38] sm:$0xf]
      %v1451 = vld [vmem:[%s1435 + $0x3c] sm:$0xf]
      %v1452 = vunpack.c.l.b16 %v1406
      %v1453 = vunpack.c.l.b16 %v1410
      %v1454 = vunpack.c.l.b16 %v1414
      %v1455 = vunpack.c.l.b16 %v1418
      %v1456 = vunpack.c.l.b16 %v1422
      %v1457 = vunpack.c.l.b16 %v1426
      %v1458 = vunpack.c.l.b16 %v1430
      %v1459 = vunpack.c.l.b16 %v1434
      %v1460 = vpack.c.b16 %v1453, %v1452
      %v1461 = vpack.c.b16 %v1455, %v1454
      %v1462 = vpack.c.b16 %v1457, %v1456
      %v1463 = vpack.c.b16 %v1459, %v1458
      %v1484 = vunpack.c.l.b16 %v1436
      %v1485 = vunpack.c.l.b16 %v1437
      %v1486 = vunpack.c.l.b16 %v1438
      %v1487 = vunpack.c.l.b16 %v1439
      %v1488 = vunpack.c.l.b16 %v1440
      %v1489 = vunpack.c.l.b16 %v1441
      %v1490 = vunpack.c.l.b16 %v1442
      %v1491 = vunpack.c.l.b16 %v1443
      %v1492 = vunpack.c.l.b16 %v1444
      %v1493 = vunpack.c.l.b16 %v1445
      %v1494 = vunpack.c.l.b16 %v1446
      %v1495 = vunpack.c.l.b16 %v1447
      %v1496 = vunpack.c.l.b16 %v1448
      %v1497 = vunpack.c.l.b16 %v1449
      %v1498 = vunpack.c.l.b16 %v1450
      %v1499 = vunpack.c.l.b16 %v1451
      %v1500 = vpack.c.b16 %v1485, %v1484
      %v1501 = vpack.c.b16 %v1487, %v1486
      %v1502 = vpack.c.b16 %v1489, %v1488
      %v1503 = vpack.c.b16 %v1491, %v1490
      %v1504 = vpack.c.b16 %v1493, %v1492
      %v1505 = vpack.c.b16 %v1495, %v1494
      %v1506 = vpack.c.b16 %v1497, %v1496
      %v1507 = vpack.c.b16 %v1499, %v1498
      %1516 = vmatpush.bf16.msra.mxu0 %v1507
      %1517 = vmatpush.bf16.msra.mxu0 %v1506
      %1518 = vmatpush.bf16.msra.mxu0 %v1505
      %1519 = vmatpush.bf16.msra.mxu0 %v1504
      %1520 = vmatpush.bf16.msra.mxu0 %v1503
      %1521 = vmatpush.bf16.msra.mxu0 %v1502
      %1522 = vmatpush.bf16.msra.mxu0 %v1501
      %1523 = vmatpush.bf16.msra.mxu0 %v1500
      %1524 = vmatmul.bf16.gmra.mxu0 %v1460
      %v1525 = vpop.f32.mrf.mxu0
      %v1526 = vadd.f32 0.0, %v1525
      %v1527 = vpop.f32.mrf.mxu0
      %v1528 = vadd.f32 0.0, %v1527
      %1529 = vmatmul.bf16.gmra.mxu0 %v1461
      %v1530 = vpop.f32.mrf.mxu0
      %v1531 = vadd.f32 0.0, %v1530
      %v1532 = vpop.f32.mrf.mxu0
      %v1533 = vadd.f32 0.0, %v1532
      %1534 = vmatmul.bf16.gmra.mxu0 %v1462
      %v1535 = vpop.f32.mrf.mxu0
      %v1536 = vadd.f32 0.0, %v1535
      %v1537 = vpop.f32.mrf.mxu0
      %v1538 = vadd.f32 0.0, %v1537
      %1539 = vmatmul.bf16.gmra.mxu0 %v1463
      %v1540 = vpop.f32.mrf.mxu0
      %v1541 = vadd.f32 0.0, %v1540
      %v1542 = vpop.f32.mrf.mxu0
      %v1543 = vadd.f32 0.0, %v1542
      %1544 = vdwg.mxu0
      %v1545 = vadd.f32 %v1371, %v1526
      %v1546 = vadd.f32 %v1372, %v1528
      %v1547 = vadd.f32 %v1373, %v1531
      %v1548 = vadd.f32 %v1374, %v1533
      %v1549 = vadd.f32 %v1375, %v1536
      %v1550 = vadd.f32 %v1376, %v1538
      %v1551 = vadd.f32 %v1377, %v1541
      %v1552 = vadd.f32 %v1378, %v1543
      %s1553 = scalar_lea.vmem [#allocation2], 16
      %v1554 = vld [vmem:[%s1553] sm:$0xf]
      %v1555 = vld [vmem:[%s1553 + $0x8] sm:$0xf]
      %v1556 = vld [vmem:[%s1553 + $0x10] sm:$0xf]
      %v1557 = vld [vmem:[%s1553 + $0x18] sm:$0xf]
      %v1558 = vld [vmem:[%s1553 + $0x20] sm:$0xf]
      %v1559 = vld [vmem:[%s1553 + $0x28] sm:$0xf]
      %v1560 = vld [vmem:[%s1553 + $0x30] sm:$0xf]
      %v1561 = vld [vmem:[%s1553 + $0x38] sm:$0xf]
      %s1562 = scalar_lea.vmem %s3, 384
      %v1563 = vld [vmem:[%s1562] sm:$0xf]
      %v1564 = vld [vmem:[%s1562 + $0x4] sm:$0xf]
      %v1565 = vld [vmem:[%s1562 + $0x8] sm:$0xf]
      %v1566 = vld [vmem:[%s1562 + $0xc] sm:$0xf]
      %v1567 = vld [vmem:[%s1562 + $0x10] sm:$0xf]
      %v1568 = vld [vmem:[%s1562 + $0x14] sm:$0xf]
      %v1569 = vld [vmem:[%s1562 + $0x18] sm:$0xf]
      %v1570 = vld [vmem:[%s1562 + $0x1c] sm:$0xf]
      %v1571 = vld [vmem:[%s1562 + $0x20] sm:$0xf]
      %v1572 = vld [vmem:[%s1562 + $0x24] sm:$0xf]
      %v1573 = vld [vmem:[%s1562 + $0x28] sm:$0xf]
      %v1574 = vld [vmem:[%s1562 + $0x2c] sm:$0xf]
      %v1575 = vld [vmem:[%s1562 + $0x30] sm:$0xf]
      %v1576 = vld [vmem:[%s1562 + $0x34] sm:$0xf]
      %v1577 = vld [vmem:[%s1562 + $0x38] sm:$0xf]
      %v1578 = vld [vmem:[%s1562 + $0x3c] sm:$0xf]
      %v1587 = vunpack.c.l.b16 %v1554
      %v1588 = vunpack.c.l.b16 %v1555
      %v1589 = vunpack.c.l.b16 %v1556
      %v1590 = vunpack.c.l.b16 %v1557
      %v1591 = vunpack.c.l.b16 %v1558
      %v1592 = vunpack.c.l.b16 %v1559
      %v1593 = vunpack.c.l.b16 %v1560
      %v1594 = vunpack.c.l.b16 %v1561
      %v1595 = vpack.c.b16 %v1588, %v1587
      %v1596 = vpack.c.b16 %v1590, %v1589
      %v1597 = vpack.c.b16 %v1592, %v1591
      %v1598 = vpack.c.b16 %v1594, %v1593
      %v1619 = vunpack.c.l.b16 %v1563
      %v1620 = vunpack.c.l.b16 %v1564
      %v1621 = vunpack.c.l.b16 %v1565
      %v1622 = vunpack.c.l.b16 %v1566
      %v1623 = vunpack.c.l.b16 %v1567
      %v1624 = vunpack.c.l.b16 %v1568
      %v1625 = vunpack.c.l.b16 %v1569
      %v1626 = vunpack.c.l.b16 %v1570
      %v1627 = vunpack.c.l.b16 %v1571
      %v1628 = vunpack.c.l.b16 %v1572
      %v1629 = vunpack.c.l.b16 %v1573
      %v1630 = vunpack.c.l.b16 %v1574
      %v1631 = vunpack.c.l.b16 %v1575
      %v1632 = vunpack.c.l.b16 %v1576
      %v1633 = vunpack.c.l.b16 %v1577
      %v1634 = vunpack.c.l.b16 %v1578
      %v1635 = vpack.c.b16 %v1620, %v1619
      %v1636 = vpack.c.b16 %v1622, %v1621
      %v1637 = vpack.c.b16 %v1624, %v1623
      %v1638 = vpack.c.b16 %v1626, %v1625
      %v1639 = vpack.c.b16 %v1628, %v1627
      %v1640 = vpack.c.b16 %v1630, %v1629
      %v1641 = vpack.c.b16 %v1632, %v1631
      %v1642 = vpack.c.b16 %v1634, %v1633
      %1651 = vmatpush.bf16.msra.mxu0 %v1642
      %1652 = vmatpush.bf16.msra.mxu0 %v1641
      %1653 = vmatpush.bf16.msra.mxu0 %v1640
      %1654 = vmatpush.bf16.msra.mxu0 %v1639
      %1655 = vmatpush.bf16.msra.mxu0 %v1638
      %1656 = vmatpush.bf16.msra.mxu0 %v1637
      %1657 = vmatpush.bf16.msra.mxu0 %v1636
      %1658 = vmatpush.bf16.msra.mxu0 %v1635
      %1659 = vmatmul.bf16.gmra.mxu0 %v1595
      %v1660 = vpop.f32.mrf.mxu0
      %v1661 = vadd.f32 0.0, %v1660
      %v1662 = vpop.f32.mrf.mxu0
      %v1663 = vadd.f32 0.0, %v1662
      %1664 = vmatmul.bf16.gmra.mxu0 %v1596
      %v1665 = vpop.f32.mrf.mxu0
      %v1666 = vadd.f32 0.0, %v1665
      %v1667 = vpop.f32.mrf.mxu0
      %v1668 = vadd.f32 0.0, %v1667
      %1669 = vmatmul.bf16.gmra.mxu0 %v1597
      %v1670 = vpop.f32.mrf.mxu0
      %v1671 = vadd.f32 0.0, %v1670
      %v1672 = vpop.f32.mrf.mxu0
      %v1673 = vadd.f32 0.0, %v1672
      %1674 = vmatmul.bf16.gmra.mxu0 %v1598
      %v1675 = vpop.f32.mrf.mxu0
      %v1676 = vadd.f32 0.0, %v1675
      %v1677 = vpop.f32.mrf.mxu0
      %v1678 = vadd.f32 0.0, %v1677
      %1679 = vdwg.mxu0
      %v1680 = vadd.f32 %v1545, %v1661
      %v1681 = vadd.f32 %v1546, %v1663
      %v1682 = vadd.f32 %v1547, %v1666
      %v1683 = vadd.f32 %v1548, %v1668
      %v1684 = vadd.f32 %v1549, %v1671
      %v1685 = vadd.f32 %v1550, %v1673
      %v1686 = vadd.f32 %v1551, %v1676
      %v1687 = vadd.f32 %v1552, %v1678
      %v1688 = vld [vmem:[%s1553] sm:$0xf]
      %v1689 = vld [vmem:[%s1553 + $0x4] sm:$0x1]
      %v1690 = vld [vmem:[%s1553 + $0x8] sm:$0xf]
      %v1691 = vld [vmem:[%s1553 + $0xc] sm:$0x1]
      %v1692 = vld [vmem:[%s1553 + $0x10] sm:$0xf]
      %v1693 = vld [vmem:[%s1553 + $0x14] sm:$0x1]
      %v1694 = vld [vmem:[%s1553 + $0x18] sm:$0xf]
      %v1695 = vld [vmem:[%s1553 + $0x1c] sm:$0x1]
      %v1696 = vld [vmem:[%s1553 + $0x20] sm:$0xf]
      %v1697 = vld [vmem:[%s1553 + $0x24] sm:$0x1]
      %v1698 = vld [vmem:[%s1553 + $0x28] sm:$0xf]
      %v1699 = vld [vmem:[%s1553 + $0x2c] sm:$0x1]
      %v1700 = vld [vmem:[%s1553 + $0x30] sm:$0xf]
      %v1701 = vld [vmem:[%s1553 + $0x34] sm:$0x1]
      %v1702 = vld [vmem:[%s1553 + $0x38] sm:$0xf]
      %v1703 = vld [vmem:[%s1553 + $0x3c] sm:$0x1]
      %v1705 = vshrl.u32 %v1688, 16
      %v1707 = vrot.slane %v1705, 4
      %v1708 = vshll.u32 %v1688, 16
      %v1710 = vrot.slane %v1708, 5
      %v1711 = vor.u32 %v1707, %v1710
      %v1712 = vrot.slane %v1711, 4
      %v1714 = vshll.u32 %v1689, 16
      %v1716 = vrot.slane %v1714, 5
      %v1717 = vsel %vm498, %v1712, %v1716
      %v1719 = vshrl.u32 %v1690, 16
      %v1721 = vrot.slane %v1719, 4
      %v1722 = vshll.u32 %v1690, 16
      %v1724 = vrot.slane %v1722, 5
      %v1725 = vor.u32 %v1721, %v1724
      %v1726 = vrot.slane %v1725, 4
      %v1728 = vshll.u32 %v1691, 16
      %v1730 = vrot.slane %v1728, 5
      %v1731 = vsel %vm498, %v1726, %v1730
      %v1733 = vshrl.u32 %v1692, 16
      %v1735 = vrot.slane %v1733, 4
      %v1736 = vshll.u32 %v1692, 16
      %v1738 = vrot.slane %v1736, 5
      %v1739 = vor.u32 %v1735, %v1738
      %v1740 = vrot.slane %v1739, 4
      %v1742 = vshll.u32 %v1693, 16
      %v1744 = vrot.slane %v1742, 5
      %v1745 = vsel %vm498, %v1740, %v1744
      %v1747 = vshrl.u32 %v1694, 16
      %v1749 = vrot.slane %v1747, 4
      %v1750 = vshll.u32 %v1694, 16
      %v1752 = vrot.slane %v1750, 5
      %v1753 = vor.u32 %v1749, %v1752
      %v1754 = vrot.slane %v1753, 4
      %v1756 = vshll.u32 %v1695, 16
      %v1758 = vrot.slane %v1756, 5
      %v1759 = vsel %vm498, %v1754, %v1758
      %v1761 = vshrl.u32 %v1696, 16
      %v1763 = vrot.slane %v1761, 4
      %v1764 = vshll.u32 %v1696, 16
      %v1766 = vrot.slane %v1764, 5
      %v1767 = vor.u32 %v1763, %v1766
      %v1768 = vrot.slane %v1767, 4
      %v1770 = vshll.u32 %v1697, 16
      %v1772 = vrot.slane %v1770, 5
      %v1773 = vsel %vm498, %v1768, %v1772
      %v1775 = vshrl.u32 %v1698, 16
      %v1777 = vrot.slane %v1775, 4
      %v1778 = vshll.u32 %v1698, 16
      %v1780 = vrot.slane %v1778, 5
      %v1781 = vor.u32 %v1777, %v1780
      %v1782 = vrot.slane %v1781, 4
      %v1784 = vshll.u32 %v1699, 16
      %v1786 = vrot.slane %v1784, 5
      %v1787 = vsel %vm498, %v1782, %v1786
      %v1789 = vshrl.u32 %v1700, 16
      %v1791 = vrot.slane %v1789, 4
      %v1792 = vshll.u32 %v1700, 16
      %v1794 = vrot.slane %v1792, 5
      %v1795 = vor.u32 %v1791, %v1794
      %v1796 = vrot.slane %v1795, 4
      %v1798 = vshll.u32 %v1701, 16
      %v1800 = vrot.slane %v1798, 5
      %v1801 = vsel %vm498, %v1796, %v1800
      %v1803 = vshrl.u32 %v1702, 16
      %v1805 = vrot.slane %v1803, 4
      %v1806 = vshll.u32 %v1702, 16
      %v1808 = vrot.slane %v1806, 5
      %v1809 = vor.u32 %v1805, %v1808
      %v1810 = vrot.slane %v1809, 4
      %v1812 = vshll.u32 %v1703, 16
      %v1814 = vrot.slane %v1812, 5
      %v1815 = vsel %vm498, %v1810, %v1814
      %s1816 = scalar_lea.vmem %s3, 448
      %v1817 = vld [vmem:[%s1816] sm:$0xf]
      %v1818 = vld [vmem:[%s1816 + $0x4] sm:$0xf]
      %v1819 = vld [vmem:[%s1816 + $0x8] sm:$0xf]
      %v1820 = vld [vmem:[%s1816 + $0xc] sm:$0xf]
      %v1821 = vld [vmem:[%s1816 + $0x10] sm:$0xf]
      %v1822 = vld [vmem:[%s1816 + $0x14] sm:$0xf]
      %v1823 = vld [vmem:[%s1816 + $0x18] sm:$0xf]
      %v1824 = vld [vmem:[%s1816 + $0x1c] sm:$0xf]
      %v1825 = vld [vmem:[%s1816 + $0x20] sm:$0xf]
      %v1826 = vld [vmem:[%s1816 + $0x24] sm:$0xf]
      %v1827 = vld [vmem:[%s1816 + $0x28] sm:$0xf]
      %v1828 = vld [vmem:[%s1816 + $0x2c] sm:$0xf]
      %v1829 = vld [vmem:[%s1816 + $0x30] sm:$0xf]
      %v1830 = vld [vmem:[%s1816 + $0x34] sm:$0xf]
      %v1831 = vld [vmem:[%s1816 + $0x38] sm:$0xf]
      %v1832 = vld [vmem:[%s1816 + $0x3c] sm:$0xf]
      %v1833 = vunpack.c.l.b16 %v1717
      %v1834 = vunpack.c.l.b16 %v1731
      %v1835 = vunpack.c.l.b16 %v1745
      %v1836 = vunpack.c.l.b16 %v1759
      %v1837 = vunpack.c.l.b16 %v1773
      %v1838 = vunpack.c.l.b16 %v1787
      %v1839 = vunpack.c.l.b16 %v1801
      %v1840 = vunpack.c.l.b16 %v1815
      %v1841 = vpack.c.b16 %v1834, %v1833
      %v1842 = vpack.c.b16 %v1836, %v1835
      %v1843 = vpack.c.b16 %v1838, %v1837
      %v1844 = vpack.c.b16 %v1840, %v1839
      %v1865 = vunpack.c.l.b16 %v1817
      %v1866 = vunpack.c.l.b16 %v1818
      %v1867 = vunpack.c.l.b16 %v1819
      %v1868 = vunpack.c.l.b16 %v1820
      %v1869 = vunpack.c.l.b16 %v1821
      %v1870 = vunpack.c.l.b16 %v1822
      %v1871 = vunpack.c.l.b16 %v1823
      %v1872 = vunpack.c.l.b16 %v1824
      %v1873 = vunpack.c.l.b16 %v1825
      %v1874 = vunpack.c.l.b16 %v1826
      %v1875 = vunpack.c.l.b16 %v1827
      %v1876 = vunpack.c.l.b16 %v1828
      %v1877 = vunpack.c.l.b16 %v1829
      %v1878 = vunpack.c.l.b16 %v1830
      %v1879 = vunpack.c.l.b16 %v1831
      %v1880 = vunpack.c.l.b16 %v1832
      %v1881 = vpack.c.b16 %v1866, %v1865
      %v1882 = vpack.c.b16 %v1868, %v1867
      %v1883 = vpack.c.b16 %v1870, %v1869
      %v1884 = vpack.c.b16 %v1872, %v1871
      %v1885 = vpack.c.b16 %v1874, %v1873
      %v1886 = vpack.c.b16 %v1876, %v1875
      %v1887 = vpack.c.b16 %v1878, %v1877
      %v1888 = vpack.c.b16 %v1880, %v1879
      %1897 = vmatpush.bf16.msra.mxu0 %v1888
      %1898 = vmatpush.bf16.msra.mxu0 %v1887
      %1899 = vmatpush.bf16.msra.mxu0 %v1886
      %1900 = vmatpush.bf16.msra.mxu0 %v1885
      %1901 = vmatpush.bf16.msra.mxu0 %v1884
      %1902 = vmatpush.bf16.msra.mxu0 %v1883
      %1903 = vmatpush.bf16.msra.mxu0 %v1882
      %1904 = vmatpush.bf16.msra.mxu0 %v1881
      %1905 = vmatmul.bf16.gmra.mxu0 %v1841
      %v1906 = vpop.f32.mrf.mxu0
      %v1907 = vadd.f32 0.0, %v1906
      %v1908 = vpop.f32.mrf.mxu0
      %v1909 = vadd.f32 0.0, %v1908
      %1910 = vmatmul.bf16.gmra.mxu0 %v1842
      %v1911 = vpop.f32.mrf.mxu0
      %v1912 = vadd.f32 0.0, %v1911
      %v1913 = vpop.f32.mrf.mxu0
      %v1914 = vadd.f32 0.0, %v1913
      %1915 = vmatmul.bf16.gmra.mxu0 %v1843
      %v1916 = vpop.f32.mrf.mxu0
      %v1917 = vadd.f32 0.0, %v1916
      %v1918 = vpop.f32.mrf.mxu0
      %v1919 = vadd.f32 0.0, %v1918
      %1920 = vmatmul.bf16.gmra.mxu0 %v1844
      %v1921 = vpop.f32.mrf.mxu0
      %v1922 = vadd.f32 0.0, %v1921
      %v1923 = vpop.f32.mrf.mxu0
      %v1924 = vadd.f32 0.0, %v1923
      %1925 = vdwg.mxu0
      %v1926 = vadd.f32 %v1680, %v1907
      %v1927 = vadd.f32 %v1681, %v1909
      %v1928 = vadd.f32 %v1682, %v1912
      %v1929 = vadd.f32 %v1683, %v1914
      %v1930 = vadd.f32 %v1684, %v1917
      %v1931 = vadd.f32 %v1685, %v1919
      %v1932 = vadd.f32 %v1686, %v1922
      %v1933 = vadd.f32 %v1687, %v1924
      %v1934 = vld [vmem:[%s1553] sm:$0xe]
      %v1935 = vld [vmem:[%s1553 + $0x8] sm:$0xe]
      %v1936 = vld [vmem:[%s1553 + $0x10] sm:$0xe]
      %v1937 = vld [vmem:[%s1553 + $0x18] sm:$0xe]
      %v1938 = vld [vmem:[%s1553 + $0x20] sm:$0xe]
      %v1939 = vld [vmem:[%s1553 + $0x28] sm:$0xe]
      %v1940 = vld [vmem:[%s1553 + $0x30] sm:$0xe]
      %v1941 = vld [vmem:[%s1553 + $0x38] sm:$0xe]
      %v1958 = vrot.slane %v1934, 5
      %v1959 = vrot.slane %v1958, 4
      %v1960 = vrot.slane %v1689, 5
      %v1961 = vsel %vm848, %v1959, %v1960
      %v1962 = vrot.slane %v1935, 5
      %v1963 = vrot.slane %v1962, 4
      %v1964 = vrot.slane %v1691, 5
      %v1965 = vsel %vm848, %v1963, %v1964
      %v1966 = vrot.slane %v1936, 5
      %v1967 = vrot.slane %v1966, 4
      %v1968 = vrot.slane %v1693, 5
      %v1969 = vsel %vm848, %v1967, %v1968
      %v1970 = vrot.slane %v1937, 5
      %v1971 = vrot.slane %v1970, 4
      %v1972 = vrot.slane %v1695, 5
      %v1973 = vsel %vm848, %v1971, %v1972
      %v1974 = vrot.slane %v1938, 5
      %v1975 = vrot.slane %v1974, 4
      %v1976 = vrot.slane %v1697, 5
      %v1977 = vsel %vm848, %v1975, %v1976
      %v1978 = vrot.slane %v1939, 5
      %v1979 = vrot.slane %v1978, 4
      %v1980 = vrot.slane %v1699, 5
      %v1981 = vsel %vm848, %v1979, %v1980
      %v1982 = vrot.slane %v1940, 5
      %v1983 = vrot.slane %v1982, 4
      %v1984 = vrot.slane %v1701, 5
      %v1985 = vsel %vm848, %v1983, %v1984
      %v1986 = vrot.slane %v1941, 5
      %v1987 = vrot.slane %v1986, 4
      %v1988 = vrot.slane %v1703, 5
      %v1989 = vsel %vm848, %v1987, %v1988
      %s1990 = scalar_lea.vmem %s3, 512
      %v1991 = vld [vmem:[%s1990] sm:$0xf]
      %v1992 = vld [vmem:[%s1990 + $0x4] sm:$0xf]
      %v1993 = vld [vmem:[%s1990 + $0x8] sm:$0xf]
      %v1994 = vld [vmem:[%s1990 + $0xc] sm:$0xf]
      %v1995 = vld [vmem:[%s1990 + $0x10] sm:$0xf]
      %v1996 = vld [vmem:[%s1990 + $0x14] sm:$0xf]
      %v1997 = vld [vmem:[%s1990 + $0x18] sm:$0xf]
      %v1998 = vld [vmem:[%s1990 + $0x1c] sm:$0xf]
      %v1999 = vld [vmem:[%s1990 + $0x20] sm:$0xf]
      %v2000 = vld [vmem:[%s1990 + $0x24] sm:$0xf]
      %v2001 = vld [vmem:[%s1990 + $0x28] sm:$0xf]
      %v2002 = vld [vmem:[%s1990 + $0x2c] sm:$0xf]
      %v2003 = vld [vmem:[%s1990 + $0x30] sm:$0xf]
      %v2004 = vld [vmem:[%s1990 + $0x34] sm:$0xf]
      %v2005 = vld [vmem:[%s1990 + $0x38] sm:$0xf]
      %v2006 = vld [vmem:[%s1990 + $0x3c] sm:$0xf]
      %v2007 = vunpack.c.l.b16 %v1961
      %v2008 = vunpack.c.l.b16 %v1965
      %v2009 = vunpack.c.l.b16 %v1969
      %v2010 = vunpack.c.l.b16 %v1973
      %v2011 = vunpack.c.l.b16 %v1977
      %v2012 = vunpack.c.l.b16 %v1981
      %v2013 = vunpack.c.l.b16 %v1985
      %v2014 = vunpack.c.l.b16 %v1989
      %v2015 = vpack.c.b16 %v2008, %v2007
      %v2016 = vpack.c.b16 %v2010, %v2009
      %v2017 = vpack.c.b16 %v2012, %v2011
      %v2018 = vpack.c.b16 %v2014, %v2013
      %v2039 = vunpack.c.l.b16 %v1991
      %v2040 = vunpack.c.l.b16 %v1992
      %v2041 = vunpack.c.l.b16 %v1993
      %v2042 = vunpack.c.l.b16 %v1994
      %v2043 = vunpack.c.l.b16 %v1995
      %v2044 = vunpack.c.l.b16 %v1996
      %v2045 = vunpack.c.l.b16 %v1997
      %v2046 = vunpack.c.l.b16 %v1998
      %v2047 = vunpack.c.l.b16 %v1999
      %v2048 = vunpack.c.l.b16 %v2000
      %v2049 = vunpack.c.l.b16 %v2001
      %v2050 = vunpack.c.l.b16 %v2002
      %v2051 = vunpack.c.l.b16 %v2003
      %v2052 = vunpack.c.l.b16 %v2004
      %v2053 = vunpack.c.l.b16 %v2005
      %v2054 = vunpack.c.l.b16 %v2006
      %v2055 = vpack.c.b16 %v2040, %v2039
      %v2056 = vpack.c.b16 %v2042, %v2041
      %v2057 = vpack.c.b16 %v2044, %v2043
      %v2058 = vpack.c.b16 %v2046, %v2045
      %v2059 = vpack.c.b16 %v2048, %v2047
      %v2060 = vpack.c.b16 %v2050, %v2049
      %v2061 = vpack.c.b16 %v2052, %v2051
      %v2062 = vpack.c.b16 %v2054, %v2053
      %2071 = vmatpush.bf16.msra.mxu0 %v2062
      %2072 = vmatpush.bf16.msra.mxu0 %v2061
      %2073 = vmatpush.bf16.msra.mxu0 %v2060
      %2074 = vmatpush.bf16.msra.mxu0 %v2059
      %2075 = vmatpush.bf16.msra.mxu0 %v2058
      %2076 = vmatpush.bf16.msra.mxu0 %v2057
      %2077 = vmatpush.bf16.msra.mxu0 %v2056
      %2078 = vmatpush.bf16.msra.mxu0 %v2055
      %2079 = vmatmul.bf16.gmra.mxu0 %v2015
      %v2080 = vpop.f32.mrf.mxu0
      %v2081 = vadd.f32 0.0, %v2080
      %v2082 = vpop.f32.mrf.mxu0
      %v2083 = vadd.f32 0.0, %v2082
      %2084 = vmatmul.bf16.gmra.mxu0 %v2016
      %v2085 = vpop.f32.mrf.mxu0
      %v2086 = vadd.f32 0.0, %v2085
      %v2087 = vpop.f32.mrf.mxu0
      %v2088 = vadd.f32 0.0, %v2087
      %2089 = vmatmul.bf16.gmra.mxu0 %v2017
      %v2090 = vpop.f32.mrf.mxu0
      %v2091 = vadd.f32 0.0, %v2090
      %v2092 = vpop.f32.mrf.mxu0
      %v2093 = vadd.f32 0.0, %v2092
      %2094 = vmatmul.bf16.gmra.mxu0 %v2018
      %v2095 = vpop.f32.mrf.mxu0
      %v2096 = vadd.f32 0.0, %v2095
      %v2097 = vpop.f32.mrf.mxu0
      %v2098 = vadd.f32 0.0, %v2097
      %2099 = vdwg.mxu0
      %v2100 = vadd.f32 %v1926, %v2081
      %v2101 = vadd.f32 %v1927, %v2083
      %v2102 = vadd.f32 %v1928, %v2086
      %v2103 = vadd.f32 %v1929, %v2088
      %v2104 = vadd.f32 %v1930, %v2091
      %v2105 = vadd.f32 %v1931, %v2093
      %v2106 = vadd.f32 %v1932, %v2096
      %v2107 = vadd.f32 %v1933, %v2098
      %v2108 = vpack.c.bf16 %v2100, %v2100
      %v2109 = vpack.c.bf16 %v2101, %v2101
      %v2110 = vpack.c.bf16 %v2102, %v2102
      %v2111 = vpack.c.bf16 %v2103, %v2103
      %v2112 = vpack.c.bf16 %v2104, %v2104
      %v2113 = vpack.c.bf16 %v2105, %v2105
      %v2114 = vpack.c.bf16 %v2106, %v2106
      %v2115 = vpack.c.bf16 %v2107, %v2107
      %2116 = vst [vmem:[%s231] sm:$0xf] %v2108
      %2117 = vst [vmem:[%s231 + $0x4] sm:$0xf] %v2109
      %2118 = vst [vmem:[%s231 + $0x8] sm:$0xf] %v2110
      %2119 = vst [vmem:[%s231 + $0xc] sm:$0xf] %v2111
      %2120 = vst [vmem:[%s231 + $0x10] sm:$0xf] %v2112
      %2121 = vst [vmem:[%s231 + $0x14] sm:$0xf] %v2113
      %2122 = vst [vmem:[%s231 + $0x18] sm:$0xf] %v2114
      %2123 = vst [vmem:[%s231 + $0x1c] sm:$0xf] %v2115
      %v2124 = vadd.f32 %v2100, %v2101
      %v2125 = vadd.f32 %v2124, %v2102
      %v2126 = vadd.f32 %v2125, %v2103
      %v2127 = vadd.f32 %v2126, %v2104
      %v2128 = vadd.f32 %v2127, %v2105
      %v2129 = vadd.f32 %v2128, %v2106
      %v2130 = vadd.f32 %v2129, %v2107
      %v2131 = vrot.slane %v2130, 4
      %v2132 = vadd.f32 %v2130, %v2131
      %v2133 = vrot.slane %v2132, 2
      %v2134 = vadd.f32 %v2132, %v2133
      %v2135 = vrot.slane %v2134, 1
      %v2136 = vadd.f32 %v2134, %v2135
      %v2137 = vmul.f32 %v2100, %v2100
      %v2138 = vmul.f32 %v2101, %v2101
      %v2139 = vmul.f32 %v2102, %v2102
      %v2140 = vmul.f32 %v2103, %v2103
      %v2141 = vmul.f32 %v2104, %v2104
      %v2142 = vmul.f32 %v2105, %v2105
      %v2143 = vmul.f32 %v2106, %v2106
      %v2144 = vmul.f32 %v2107, %v2107
      %v2145 = vadd.f32 %v2137, %v2138
      %v2146 = vadd.f32 %v2145, %v2139
      %v2147 = vadd.f32 %v2146, %v2140
      %v2148 = vadd.f32 %v2147, %v2141
      %v2149 = vadd.f32 %v2148, %v2142
      %v2150 = vadd.f32 %v2149, %v2143
      %v2151 = vadd.f32 %v2150, %v2144
      %v2152 = vrot.slane %v2151, 4
      %v2153 = vadd.f32 %v2151, %v2152
      %v2154 = vrot.slane %v2153, 2
      %v2155 = vadd.f32 %v2153, %v2154
      %v2156 = vrot.slane %v2155, 1
      %v2157 = vadd.f32 %v2155, %v2156
      %vm2158 = vcmask 1040384
      %v2159 = vsel %vm2158, %v2136, %v2157
      %vm2160 = vcmask 1041408
      %v2161 = vsel %vm2160, %v2159, 0.0
      %vm2162 = vcmask 1042432
      %v2163 = vsel %vm2162, %v2161, 0.0
      %vm2164 = vcmask 1043456
      %v2165 = vsel %vm2164, %v2163, 0.0
      %vm2166 = vcmask 1044480
      %v2167 = vsel %vm2166, %v2165, 0.0
      %vm2168 = vcmask 1045504
      %v2169 = vsel %vm2168, %v2167, 0.0
      %vm2170 = vcmask 1046528
      %v2171 = vsel %vm2170, %v2169, 0.0
      %2172 = vst [vmem:[%s235] sm:$0xff] %v2171
      %p2173 = scmp.lt.s32.totalorder %s17, 1
      %s2174 = scalar_select %p2173, %s17, 1
      %s2175 = smul.addr %s2174, 8
      %s2176 = smul.addr %s2175, 4
      %s2177 = scalar_lea.vmem %s4, %s2176
      %p2178 = scmp.lt.s32.totalorder %s17, 1
      %s2179 = scalar_select %p2178, %s17, 1
      %s2180 = smul.addr %s2179, 8
      %s2181 = scalar_lea.vmem %s5, %s2180
      // Predicated region
      $region37: #{basic_block_forward.4} parent=35 // pred_check
        %p2182 = pneg %p124
      $region38: #{basic_block_forward.4} parent=35 // pred_check_branch
        %2184 = sbr.rel (%p2182) target = $region40
      $region39: #{basic_block_forward.4} parent=35 // pred_region
        _
      $region40: #{basic_block_forward.4} parent=35 // pred_fallthru
        _
      // Predicated region
      $region41: #{basic_block_forward.4} parent=35 // pred_check
        %p2185 = pneg %p150
      $region42: #{basic_block_forward.4} parent=35 // pred_check_branch
        %2187 = sbr.rel (%p2185) target = $region44
      $region43: #{basic_block_forward.4} parent=35 // pred_region
        _
      $region44: #{basic_block_forward.4} parent=35 // pred_fallthru
        _
    $region36: #{basic_block_forward.4} parent=5 // pred_fallthru
      _
    %p2188 = scmp.le.s32.totalorder 2, %s12
    // Predicated region
    $region45: #{basic_block_forward.4} parent=5 // pred_check
      %p2189 = pneg %p2188
    $region46: #{basic_block_forward.4} parent=5 // pred_check_branch
      %2191 = sbr.rel (%p2189) target = $region48
    $region47: #{basic_block_forward.4} parent=5 // pred_region
      %s2192 = ssub.s32 %s12, 2
      // Predicated region
      $region49: #{basic_block_forward.4} parent=47 // pred_check
        %p2193 = pneg %p130
      $region50: #{basic_block_forward.4} parent=47 // pred_check_branch
        %2195 = sbr.rel (%p2193) target = $region52
      $region51: #{basic_block_forward.4} parent=47 // pred_region
        %p2196 = scmp.lt.s32.totalorder %s18, 1
        %s2197 = scalar_select %p2196, %s18, 1
        %s2198 = smul.addr %s2197, 8
        %s2199 = smul.addr %s2198, 4
        %s2200 = scalar_lea.vmem %s4, %s2199
      $region52: #{basic_block_forward.4} parent=47 // pred_fallthru
        _
      // Predicated region
      $region53: #{basic_block_forward.4} parent=47 // pred_check
        %p2201 = pneg %p156
      $region54: #{basic_block_forward.4} parent=47 // pred_check_branch
        %2203 = sbr.rel (%p2201) target = $region56
      $region55: #{basic_block_forward.4} parent=47 // pred_region
        %p2204 = scmp.lt.s32.totalorder %s18, 1
        %s2205 = scalar_select %p2204, %s18, 1
        %s2206 = smul.addr %s2205, 8
        %s2207 = scalar_lea.vmem %s5, %s2206
      $region56: #{basic_block_forward.4} parent=47 // pred_fallthru
        _
    $region48: #{basic_block_forward.4} parent=5 // pred_fallthru
      _
  $region6: #{basic_block_forward.4} parent=0 // loop_footer
    %s16 = sadd.s32 1, %s12
  $region7: #{basic_block_forward.4} parent=0 // loop_footer_branch
    %11 = sbr.rel target = $region3
  $region8: #{basic_block_forward.4} parent=0 // loop_exit
    _

</llo_original>
